<compile_context>
chip_gen: v7x
topology: tpu7x:2x2x1
jax: 0.10.0
libtpu: 0.0.40
codegen_flags: <defaults>
</compile_context>

<pallas_src>
import functools

import jax
import jax.numpy as jnp
from jax import lax
from jax.experimental import pallas as pl
from jax.experimental.pallas import tpu as pltpu

_MASK_VALUE = -1e30  # large finite negative: exp underflows to 0, no NaN path


def _gelu_tanh(x):
    # TODO(synk): nn.GELU() default is the exact erf form; Mosaic-safe tanh
    # approximation used in-kernel (max abs deviation ~3e-4).
    c = 0.7978845608028654  # sqrt(2/pi)
    return 0.5 * x * (1.0 + jnp.tanh(c * (x + 0.044715 * x * x * x)))


def _layer_norm(x, g, b, eps):
    mu = jnp.mean(x, axis=-1, keepdims=True)
    xc = x - mu
    var = jnp.mean(xc * xc, axis=-1, keepdims=True)
    return xc * lax.rsqrt(var + eps) * g + b


def _transformer_layer_kernel(x_ref, mask_ref, wq_ref, wk_ref, wv_ref, wd_ref,
                              bd_ref, g1_ref, be1_ref, w1_ref, b1_ref, w2_ref,
                              b2_ref, g2_ref, be2_ref, out_ref, *,
                              num_heads, eps):
    # x_ref: (1, N, H)  mask_ref: (1, 1, N) f32
    # wq/wk/wv: (nh, H, d) bf16 (q pre-scaled)   wd: (nh, d, H) bf16
    # w1: (H, I) bf16   w2: (I, H) bf16   biases / LN params: (1, X) f32
    x16 = x_ref[0].astype(jnp.bfloat16)            # (N, H) matmul input
    x_f32 = x_ref[0].astype(jnp.float32)           # (N, H) residual path
    N, H = x_f32.shape

    # ---------------- MHSA (head-batched, no lane slicing) ----------------
    xb = jnp.broadcast_to(x16[None, :, :], (num_heads, N, H))   # hoisted, one copy

    q = jnp.einsum('hnk,hkd->hnd', xb, wq_ref[...],
                   preferred_element_type=jnp.float32)           # (nh, N, d), scaled
    k = jnp.einsum('hnk,hkd->hnd', xb, wk_ref[...],
                   preferred_element_type=jnp.float32)
    v = jnp.einsum('hnk,hkd->hnd', xb, wv_ref[...],
                   preferred_element_type=jnp.float32)
    q16 = q.astype(jnp.bfloat16)
    k16 = k.astype(jnp.bfloat16)
    v16 = v.astype(jnp.bfloat16)

    s = jnp.einsum('hnd,hmd->hnm', q16, k16,
                   preferred_element_type=jnp.float32)           # (nh, N, N)
    masked_keys = mask_ref[...] == 0.0                           # (1, 1, N)
    s = jnp.where(masked_keys, jnp.float32(_MASK_VALUE), s)

    s_max = jnp.max(s, axis=-1, keepdims=True)
    e = jnp.exp(s - s_max)
    denom = jnp.sum(e, axis=-1, keepdims=True)                   # >= 1 (finite mask)
    attn = e * pl.reciprocal(denom, approx=True)

    o = jnp.einsum('hnm,hmd->hnd', attn.astype(jnp.bfloat16), v16,
                   preferred_element_type=jnp.float32)           # (nh, N, d)

    # ---- output projection fused over heads (no concat / relayout) ----
    y_h = jnp.einsum('hnd,hdk->hnk', o.astype(jnp.bfloat16), wd_ref[...],
                     preferred_element_type=jnp.float32)         # (nh, N, H)
    y = jnp.sum(y_h, axis=0) + bd_ref[...]                       # (N, H)

    # dropout = eval identity
    att = _layer_norm(y + x_f32, g1_ref[...], be1_ref[...], eps)

    # ---------------- FeedForward + residual + LayerNorm ----------------
    h1 = jnp.dot(att.astype(jnp.bfloat16), w1_ref[...],
                 preferred_element_type=jnp.float32) + b1_ref[...]
    h1 = _gelu_tanh(h1)
    h2 = jnp.dot(h1.astype(jnp.bfloat16), w2_ref[...],
                 preferred_element_type=jnp.float32) + b2_ref[...]
    out = _layer_norm(att + h2, g2_ref[...], be2_ref[...], eps)

    out_ref[0, :, :] = out.astype(out_ref.dtype)   # single full-width store


def _run_transformer_layer(x, mask3, wp, *, num_heads, eps, out_dtype):
    B, N, H = x.shape
    d = H // num_heads
    I = wp["w1"].shape[1]

    kernel = functools.partial(_transformer_layer_kernel,
                               num_heads=num_heads, eps=eps)

    def const2(b):
        return (0, 0)

    def const3(b):
        return (0, 0, 0)

    # Constant-block weights: single-buffered (they never change across grid steps).
    def wspec(shape, idx):
        return pl.BlockSpec(shape, idx, pipeline_mode=pl.Buffered(1))

    in_specs = [
        pl.BlockSpec((1, N, H), lambda b: (b, 0, 0)),    # hidden_states (per-batch)
        pl.BlockSpec((1, 1, N), lambda b: (b, 0, 0)),    # attention mask (per-batch)
        wspec((num_heads, H, d), const3),                # wq head-major, scale folded
        wspec((num_heads, H, d), const3),                # wk
        wspec((num_heads, H, d), const3),                # wv
        wspec((num_heads, d, H), const3),                # wd head-major
        wspec((1, H), const2),                           # b_dense
        wspec((1, H), const2),                           # LN1 gamma
        wspec((1, H), const2),                           # LN1 beta
        wspec((H, I), const2),                           # w_ffn1^T
        wspec((1, I), const2),                           # b_ffn1
        wspec((I, H), const2),                           # w_ffn2^T
        wspec((1, H), const2),                           # b_ffn2
        wspec((1, H), const2),                           # LN2 gamma
        wspec((1, H), const2),                           # LN2 beta
    ]

    flops = B * (8 * N * H * H + 4 * N * N * H + 4 * N * H * I)
    transcendentals = B * (num_heads * N * N + N * I)
    bytes_accessed = (2 * (4 * H * H + 2 * H * I)        # bf16 weights
                      + 4 * (6 * H + 2 * I)              # f32 biases / LN params
                      + 2 * 2 * B * N * H                # bf16 activations in+out
                      + 4 * B * N)                       # mask

    return pl.pallas_call(
        kernel,
        out_shape=jax.ShapeDtypeStruct((B, N, H), out_dtype),
        grid_spec=pltpu.PrefetchScalarGridSpec(
            num_scalar_prefetch=0,
            grid=(B,),
            in_specs=in_specs,
            out_specs=pl.BlockSpec((1, N, H), lambda b: (b, 0, 0)),
        ),
        compiler_params=pltpu.CompilerParams(
            dimension_semantics=("parallel",),
            vmem_limit_bytes=48 * 1024 * 1024),
        cost_estimate=pl.CostEstimate(flops=int(flops),
                                      transcendentals=int(transcendentals),
                                      bytes_accessed=int(bytes_accessed)),
    )(x, mask3, wp["wq"], wp["wk"], wp["wv"], wp["wd"], wp["bd"], wp["g1"],
      wp["be1"], wp["w1"], wp["b1"], wp["w2"], wp["b2"], wp["g2"], wp["be2"])


def prepare_transformer_weights(layer_params, num_heads):
    """One-time setup: transpose / head-major pack / bf16 cast / fold q-scale."""
    packed = []
    for lp in layer_params:
        H = lp["wd"].shape[0]
        d = H // num_heads
        scale = float(H) ** (-0.5)                       # module uses hidden_size^-0.5
        wh = lp["w_heads"]                               # (nh, 3d, H): [0:d]=q [d:2d]=k [2d:3d]=v
        wq = jnp.transpose(wh[:, 0 * d:1 * d, :], (0, 2, 1)) * scale   # (nh, H, d)
        wk = jnp.transpose(wh[:, 1 * d:2 * d, :], (0, 2, 1))
        wv = jnp.transpose(wh[:, 2 * d:3 * d, :], (0, 2, 1))
        wd_hm = lp["wd"].T.reshape(num_heads, d, H)                     # (nh, d, H)
        packed.append({
            "wq": wq.astype(jnp.bfloat16),
            "wk": wk.astype(jnp.bfloat16),
            "wv": wv.astype(jnp.bfloat16),
            "wd": wd_hm.astype(jnp.bfloat16),
            "bd": lp["bd"].reshape(1, -1).astype(jnp.float32),
            "g1": lp["g1"].reshape(1, -1).astype(jnp.float32),
            "be1": lp["be1"].reshape(1, -1).astype(jnp.float32),
            "w1": lp["w1"].T.astype(jnp.bfloat16),
            "b1": lp["b1"].reshape(1, -1).astype(jnp.float32),
            "w2": lp["w2"].T.astype(jnp.bfloat16),
            "b2": lp["b2"].reshape(1, -1).astype(jnp.float32),
            "g2": lp["g2"].reshape(1, -1).astype(jnp.float32),
            "be2": lp["be2"].reshape(1, -1).astype(jnp.float32),
        })
    return packed


@functools.partial(jax.jit, static_argnames=("num_heads", "eps"))
def transformer_layers_pallas(hidden_states, attention_mask, packed_layers,
                              num_heads, eps=1e-12):
    B, N, H = hidden_states.shape
    if attention_mask is None:                           # TransformerLayers default mask
        attention_mask = jnp.ones((B, N), dtype=jnp.float32)
    mask3 = attention_mask.reshape(B, 1, N).astype(jnp.float32)
    # Inter-layer activations carried in bf16; final layer writes caller dtype.
    x = hidden_states.astype(jnp.bfloat16)
    n_layers = len(packed_layers)
    for li, wp in enumerate(packed_layers):
        out_dtype = hidden_states.dtype if li == n_layers - 1 else jnp.bfloat16
        x = _run_transformer_layer(x, mask3, wp, num_heads=num_heads, eps=eps,
                                   out_dtype=out_dtype)
    return x


def transformer_layers_reference(hidden_states, attention_mask, layer_params,
                                 num_heads, eps=1e-12):
    """Pure-JAX f32 reference mirroring the PyTorch forward (eval mode)."""
    B, N, H = hidden_states.shape
    d = H // num_heads
    scale = float(H) ** (-0.5)
    if attention_mask is None:
        attention_mask = jnp.ones((B, N), dtype=hidden_states.dtype)

    def layer_norm(v, g, b):
        mu = jnp.mean(v, axis=-1, keepdims=True)
        var = jnp.mean((v - mu) ** 2, axis=-1, keepdims=True)
        return (v - mu) / jnp.sqrt(var + eps) * g + b

    x = hidden_states
    for lp in layer_params:
        qkv = jnp.stack([x @ lp["w_heads"][h].T for h in range(num_heads)])  # (nh,B,N,3d)
        qkv = qkv.reshape(num_heads, B, N, 3, d)
        q = jnp.transpose(qkv[:, :, :, 0, :], (1, 0, 2, 3))  # (B, nh, N, d)
        k = jnp.transpose(qkv[:, :, :, 1, :], (1, 0, 2, 3))
        v = jnp.transpose(qkv[:, :, :, 2, :], (1, 0, 2, 3))
        s = jnp.einsum("bhid,bhjd->bhij", q, k) * scale
        s = jnp.where(attention_mask[:, None, None, :] == 0, -jnp.inf, s)
        a = jax.nn.softmax(s, axis=-1)
        r = jnp.einsum("bhij,bhjd->bhid", a, v)
        mhsa = jnp.transpose(r, (0, 2, 1, 3)).reshape(B, N, H)
        y = mhsa @ lp["wd"].T + lp["bd"]
        att = layer_norm(y + x, lp["g1"], lp["be1"])
        f = att @ lp["w1"].T + lp["b1"]
        f = jax.nn.gelu(f, approximate=False)
        f = f @ lp["w2"].T + lp["b2"]
        x = layer_norm(att + f, lp["g2"], lp["be2"])
    return x


if __name__ == "__main__":
    # Small config: batch=2, seq=8, hidden=32, heads=4 (head_dim=8), ffn=64, 2 layers
    B, N, H, NUM_HEADS, INTER, N_LAYERS = 2, 8, 32, 4, 64, 2
    EPS = 1e-12
    d = H // NUM_HEADS

    key = jax.random.PRNGKey(0)

    def uniform(k, shape, fan_in):
        bound = 1.0 / (fan_in ** 0.5)
        return jax.random.uniform(k, shape, jnp.float32, -bound, bound)

    layer_params = []
    for _ in range(N_LAYERS):
        key, *ks = jax.random.split(key, 12)
        layer_params.append({
            "w_heads": uniform(ks[0], (NUM_HEADS, 3 * d, H), H),   # per-head qkv, no bias
            "wd": uniform(ks[1], (H, H), H),
            "bd": uniform(ks[2], (H,), H),
            "g1": 1.0 + 0.1 * jax.random.normal(ks[3], (H,), jnp.float32),
            "be1": 0.1 * jax.random.normal(ks[4], (H,), jnp.float32),
            "w1": uniform(ks[5], (INTER, H), H),
            "b1": uniform(ks[6], (INTER,), H),
            "w2": uniform(ks[7], (H, INTER), INTER),
            "b2": uniform(ks[8], (H,), INTER),
            "g2": 1.0 + 0.1 * jax.random.normal(ks[9], (H,), jnp.float32),
            "be2": 0.1 * jax.random.normal(ks[10], (H,), jnp.float32),
        })

    key, k_x, k_m = jax.random.split(key, 3)
    hidden_states = jax.random.normal(k_x, (B, N, H), dtype=jnp.float32)
    attention_mask = (jax.random.uniform(k_m, (B, N)) > 0.3).astype(jnp.float32)
    attention_mask = attention_mask.at[:, 0].set(1.0)   # keep >=1 unmasked key per batch

    # One-time weight packing (hoisted out of the forward pass).
    packed = prepare_transformer_weights(layer_params, NUM_HEADS)

    out = transformer_layers_pallas(hidden_states, attention_mask, packed,
                                    num_heads=NUM_HEADS, eps=EPS)
    out = jax.block_until_ready(out)

    ref = transformer_layers_reference(hidden_states, attention_mask, layer_params,
                                       NUM_HEADS, EPS)
    assert out.shape == (B, N, H)
    max_err = float(jnp.max(jnp.abs(out - ref)))
    assert jnp.allclose(out, ref, atol=5e-2, rtol=5e-2), \
        f"mismatch vs reference (max abs err {max_err})"
    print("KERNEL_OK")
</pallas_src>

<mosaic_0001>
module attributes {stable_mosaic.version = 11 : i64} {
  func.func @_transformer_layer_kernel(%arg0: i32, %arg1: memref<1x8x32xbf16, #tpu.memory_space<vmem>>, %arg2: memref<1x1x8xf32, #tpu.memory_space<vmem>>, %arg3: memref<4x32x8xbf16, #tpu.memory_space<vmem>>, %arg4: memref<4x32x8xbf16, #tpu.memory_space<vmem>>, %arg5: memref<4x32x8xbf16, #tpu.memory_space<vmem>>, %arg6: memref<4x8x32xbf16, #tpu.memory_space<vmem>>, %arg7: memref<1x32xf32, #tpu.memory_space<vmem>>, %arg8: memref<1x32xf32, #tpu.memory_space<vmem>>, %arg9: memref<1x32xf32, #tpu.memory_space<vmem>>, %arg10: memref<32x64xbf16, #tpu.memory_space<vmem>>, %arg11: memref<1x64xf32, #tpu.memory_space<vmem>>, %arg12: memref<64x32xbf16, #tpu.memory_space<vmem>>, %arg13: memref<1x32xf32, #tpu.memory_space<vmem>>, %arg14: memref<1x32xf32, #tpu.memory_space<vmem>>, %arg15: memref<1x32xf32, #tpu.memory_space<vmem>>, %arg16: memref<1x8x32xbf16, #tpu.memory_space<vmem>>) attributes {dimension_semantics = [#tpu.dimension_semantics<parallel>], iteration_bounds = array<i64: 2>, scalar_prefetch = 0 : i64, scratch_operands = 0 : i64, tpu.core_type = #tpu.core_type<tc>, window_params = [{transform_indices = @transform_0, window_bounds = array<i64: 1, 8, 32>}, {transform_indices = @transform_1, window_bounds = array<i64: 1, 1, 8>}, {pipeline_mode = #tpu.pipeline_mode<synchronous>, transform_indices = @transform_2, window_bounds = array<i64: 4, 32, 8>}, {pipeline_mode = #tpu.pipeline_mode<synchronous>, transform_indices = @transform_3, window_bounds = array<i64: 4, 32, 8>}, {pipeline_mode = #tpu.pipeline_mode<synchronous>, transform_indices = @transform_4, window_bounds = array<i64: 4, 32, 8>}, {pipeline_mode = #tpu.pipeline_mode<synchronous>, transform_indices = @transform_5, window_bounds = array<i64: 4, 8, 32>}, {pipeline_mode = #tpu.pipeline_mode<synchronous>, transform_indices = @transform_6, window_bounds = array<i64: 1, 32>}, {pipeline_mode = #tpu.pipeline_mode<synchronous>, transform_indices = @transform_7, window_bounds = array<i64: 1, 32>}, {pipeline_mode = #tpu.pipeline_mode<synchronous>, transform_indices = @transform_8, window_bounds = array<i64: 1, 32>}, {pipeline_mode = #tpu.pipeline_mode<synchronous>, transform_indices = @transform_9, window_bounds = array<i64: 32, 64>}, {pipeline_mode = #tpu.pipeline_mode<synchronous>, transform_indices = @transform_10, window_bounds = array<i64: 1, 64>}, {pipeline_mode = #tpu.pipeline_mode<synchronous>, transform_indices = @transform_11, window_bounds = array<i64: 64, 32>}, {pipeline_mode = #tpu.pipeline_mode<synchronous>, transform_indices = @transform_12, window_bounds = array<i64: 1, 32>}, {pipeline_mode = #tpu.pipeline_mode<synchronous>, transform_indices = @transform_13, window_bounds = array<i64: 1, 32>}, {pipeline_mode = #tpu.pipeline_mode<synchronous>, transform_indices = @transform_14, window_bounds = array<i64: 1, 32>}, {transform_indices = @transform_15, window_bounds = array<i64: 1, 8, 32>}]} {
    %c0 = arith.constant 0 : index
    %c0_0 = arith.constant 0 : index
    %c0_1 = arith.constant 0 : index
    %0 = vector.load %arg1[%c0, %c0_0, %c0_1] : memref<1x8x32xbf16, #tpu.memory_space<vmem>>, vector<1x8x32xbf16>
    %1 = vector.shape_cast %0 : vector<1x8x32xbf16> to vector<8x32xbf16>
    %c0_2 = arith.constant 0 : index
    %c0_3 = arith.constant 0 : index
    %c0_4 = arith.constant 0 : index
    %2 = vector.load %arg1[%c0_2, %c0_3, %c0_4] : memref<1x8x32xbf16, #tpu.memory_space<vmem>>, vector<1x8x32xbf16>
    %3 = vector.shape_cast %2 : vector<1x8x32xbf16> to vector<8x32xbf16>
    %4 = arith.extf %3 : vector<8x32xbf16> to vector<8x32xf32>
    %5 = vector.shape_cast %1 : vector<8x32xbf16> to vector<1x8x32xbf16>
    %6 = vector.shape_cast %5 : vector<1x8x32xbf16> to vector<1x8x32xbf16>
    %7 = vector.broadcast %6 : vector<1x8x32xbf16> to vector<4x8x32xbf16>
    %c0_5 = arith.constant 0 : index
    %c0_6 = arith.constant 0 : index
    %c0_7 = arith.constant 0 : index
    %8 = vector.load %arg3[%c0_5, %c0_6, %c0_7] : memref<4x32x8xbf16, #tpu.memory_space<vmem>>, vector<4x32x8xbf16>
    "tpu.trace_start"() <{level = 10 : i32, message = "hnk,hkd->hnd"}> : () -> ()
    %cst = arith.constant dense<0.000000e+00> : vector<4x8x8xf32>
    %9 = tpu.matmul %7, %8, %cst {dimension_numbers = #tpu.dot_dimension_numbers<[2], [1], [1], [2], [0, 0, 0, 1, 1, 2], [0], [0]>} : vector<4x8x32xbf16>, vector<4x32x8xbf16>, vector<4x8x8xf32> -> vector<4x8x8xf32>
    "tpu.trace_stop"() : () -> ()
    %c0_8 = arith.constant 0 : index
    %c0_9 = arith.constant 0 : index
    %c0_10 = arith.constant 0 : index
    %10 = vector.load %arg4[%c0_8, %c0_9, %c0_10] : memref<4x32x8xbf16, #tpu.memory_space<vmem>>, vector<4x32x8xbf16>
    "tpu.trace_start"() <{level = 10 : i32, message = "hnk,hkd->hnd"}> : () -> ()
    %cst_11 = arith.constant dense<0.000000e+00> : vector<4x8x8xf32>
    %11 = tpu.matmul %7, %10, %cst_11 {dimension_numbers = #tpu.dot_dimension_numbers<[2], [1], [1], [2], [0, 0, 0, 1, 1, 2], [0], [0]>} : vector<4x8x32xbf16>, vector<4x32x8xbf16>, vector<4x8x8xf32> -> vector<4x8x8xf32>
    "tpu.trace_stop"() : () -> ()
    %c0_12 = arith.constant 0 : index
    %c0_13 = arith.constant 0 : index
    %c0_14 = arith.constant 0 : index
    %12 = vector.load %arg5[%c0_12, %c0_13, %c0_14] : memref<4x32x8xbf16, #tpu.memory_space<vmem>>, vector<4x32x8xbf16>
    "tpu.trace_start"() <{level = 10 : i32, message = "hnk,hkd->hnd"}> : () -> ()
    %cst_15 = arith.constant dense<0.000000e+00> : vector<4x8x8xf32>
    %13 = tpu.matmul %7, %12, %cst_15 {dimension_numbers = #tpu.dot_dimension_numbers<[2], [1], [1], [2], [0, 0, 0, 1, 1, 2], [0], [0]>} : vector<4x8x32xbf16>, vector<4x32x8xbf16>, vector<4x8x8xf32> -> vector<4x8x8xf32>
    "tpu.trace_stop"() : () -> ()
    %14 = arith.truncf %9 : vector<4x8x8xf32> to vector<4x8x8xbf16>
    %15 = arith.truncf %11 : vector<4x8x8xf32> to vector<4x8x8xbf16>
    %16 = arith.truncf %13 : vector<4x8x8xf32> to vector<4x8x8xbf16>
    "tpu.trace_start"() <{level = 10 : i32, message = "hnd,hmd->hnm"}> : () -> ()
    %cst_16 = arith.constant dense<0.000000e+00> : vector<4x8x8xf32>
    %17 = tpu.matmul %14, %15, %cst_16 {dimension_numbers = #tpu.dot_dimension_numbers<[2], [2], [1], [1], [0, 0, 0, 1, 1, 1], [0], [0]>} : vector<4x8x8xbf16>, vector<4x8x8xbf16>, vector<4x8x8xf32> -> vector<4x8x8xf32>
    "tpu.trace_stop"() : () -> ()
    %c0_17 = arith.constant 0 : index
    %c0_18 = arith.constant 0 : index
    %c0_19 = arith.constant 0 : index
    %18 = vector.load %arg2[%c0_17, %c0_18, %c0_19] : memref<1x1x8xf32, #tpu.memory_space<vmem>>, vector<1x1x8xf32>
    %cst_20 = arith.constant 0.000000e+00 : f32
    %19 = vector.broadcast %cst_20 : f32 to vector<1x1x8xf32>
    %20 = arith.cmpf oeq, %18, %19 : vector<1x1x8xf32>
    %cst_21 = arith.constant -1.000000e+30 : f32
    %21 = vector.shape_cast %20 : vector<1x1x8xi1> to vector<1x1x8xi1>
    %22 = vector.broadcast %21 : vector<1x1x8xi1> to vector<4x8x8xi1>
    %23 = vector.broadcast %cst_21 : f32 to vector<4x8x8xf32>
    %24 = arith.select %22, %23, %17 : vector<4x8x8xi1>, vector<4x8x8xf32>
    %cst_22 = arith.constant dense<0xFF800000> : vector<4x8xf32>
    %25 = vector.multi_reduction <maximumf>, %24, %cst_22 [2] : vector<4x8x8xf32> to vector<4x8xf32>
    %26 = vector.shape_cast %25 : vector<4x8xf32> to vector<4x8x1xf32>
    %27 = vector.broadcast %26 : vector<4x8x1xf32> to vector<4x8x8xf32>
    %28 = arith.subf %24, %27 : vector<4x8x8xf32>
    %29 = math.exp %28 : vector<4x8x8xf32>
    %cst_23 = arith.constant dense<0.000000e+00> : vector<4x8xf32>
    %30 = vector.multi_reduction <add>, %29, %cst_23 [2] : vector<4x8x8xf32> to vector<4x8xf32>
    %31 = vector.shape_cast %30 : vector<4x8xf32> to vector<4x8x1xf32>
    %32 = tpu.reciprocal %31 {approx = true} : vector<4x8x1xf32> -> vector<4x8x1xf32>
    %33 = vector.broadcast %32 : vector<4x8x1xf32> to vector<4x8x8xf32>
    %34 = arith.mulf %29, %33 : vector<4x8x8xf32>
    %35 = arith.truncf %34 : vector<4x8x8xf32> to vector<4x8x8xbf16>
    "tpu.trace_start"() <{level = 10 : i32, message = "hnm,hmd->hnd"}> : () -> ()
    %cst_24 = arith.constant dense<0.000000e+00> : vector<4x8x8xf32>
    %36 = tpu.matmul %35, %16, %cst_24 {dimension_numbers = #tpu.dot_dimension_numbers<[2], [1], [1], [2], [0, 0, 0, 1, 1, 2], [0], [0]>} : vector<4x8x8xbf16>, vector<4x8x8xbf16>, vector<4x8x8xf32> -> vector<4x8x8xf32>
    "tpu.trace_stop"() : () -> ()
    %37 = arith.truncf %36 : vector<4x8x8xf32> to vector<4x8x8xbf16>
    %c0_25 = arith.constant 0 : index
    %c0_26 = arith.constant 0 : index
    %c0_27 = arith.constant 0 : index
    %38 = vector.load %arg6[%c0_25, %c0_26, %c0_27] : memref<4x8x32xbf16, #tpu.memory_space<vmem>>, vector<4x8x32xbf16>
    "tpu.trace_start"() <{level = 10 : i32, message = "hnd,hdk->hnk"}> : () -> ()
    %cst_28 = arith.constant dense<0.000000e+00> : vector<4x8x32xf32>
    %39 = tpu.matmul %37, %38, %cst_28 {dimension_numbers = #tpu.dot_dimension_numbers<[2], [1], [1], [2], [0, 0, 0, 1, 1, 2], [0], [0]>} : vector<4x8x8xbf16>, vector<4x8x32xbf16>, vector<4x8x32xf32> -> vector<4x8x32xf32>
    "tpu.trace_stop"() : () -> ()
    %cst_29 = arith.constant dense<0.000000e+00> : vector<8x32xf32>
    %40 = vector.multi_reduction <add>, %39, %cst_29 [0] : vector<4x8x32xf32> to vector<8x32xf32>
    %c0_30 = arith.constant 0 : index
    %c0_31 = arith.constant 0 : index
    %41 = vector.load %arg7[%c0_30, %c0_31] : memref<1x32xf32, #tpu.memory_space<vmem>>, vector<1x32xf32>
    %42 = vector.broadcast %41 : vector<1x32xf32> to vector<8x32xf32>
    %43 = arith.addf %40, %42 : vector<8x32xf32>
    %44 = arith.addf %43, %4 : vector<8x32xf32>
    %c0_32 = arith.constant 0 : index
    %c0_33 = arith.constant 0 : index
    %45 = vector.load %arg8[%c0_32, %c0_33] : memref<1x32xf32, #tpu.memory_space<vmem>>, vector<1x32xf32>
    %c0_34 = arith.constant 0 : index
    %c0_35 = arith.constant 0 : index
    %46 = vector.load %arg9[%c0_34, %c0_35] : memref<1x32xf32, #tpu.memory_space<vmem>>, vector<1x32xf32>
    %cst_36 = arith.constant dense<0.000000e+00> : vector<8xf32>
    %47 = vector.multi_reduction <add>, %44, %cst_36 [1] : vector<8x32xf32> to vector<8xf32>
    %48 = vector.shape_cast %47 : vector<8xf32> to vector<8x1xf32>
    %cst_37 = arith.constant 3.200000e+01 : f32
    %49 = vector.broadcast %cst_37 : f32 to vector<8x1xf32>
    %50 = arith.divf %48, %49 : vector<8x1xf32>
    %51 = vector.broadcast %50 : vector<8x1xf32> to vector<8x32xf32>
    %52 = arith.subf %44, %51 : vector<8x32xf32>
    %53 = arith.mulf %52, %52 : vector<8x32xf32>
    %cst_38 = arith.constant dense<0.000000e+00> : vector<8xf32>
    %54 = vector.multi_reduction <add>, %53, %cst_38 [1] : vector<8x32xf32> to vector<8xf32>
    %55 = vector.shape_cast %54 : vector<8xf32> to vector<8x1xf32>
    %cst_39 = arith.constant 3.200000e+01 : f32
    %56 = vector.broadcast %cst_39 : f32 to vector<8x1xf32>
    %57 = arith.divf %55, %56 : vector<8x1xf32>
    %cst_40 = arith.constant 9.99999996E-13 : f32
    %58 = vector.broadcast %cst_40 : f32 to vector<8x1xf32>
    %59 = arith.addf %57, %58 : vector<8x1xf32>
    %60 = math.rsqrt %59 : vector<8x1xf32>
    %61 = vector.broadcast %60 : vector<8x1xf32> to vector<8x32xf32>
    %62 = arith.mulf %52, %61 : vector<8x32xf32>
    %63 = vector.broadcast %45 : vector<1x32xf32> to vector<8x32xf32>
    %64 = arith.mulf %62, %63 : vector<8x32xf32>
    %65 = vector.broadcast %46 : vector<1x32xf32> to vector<8x32xf32>
    %66 = arith.addf %64, %65 : vector<8x32xf32>
    %67 = arith.truncf %66 : vector<8x32xf32> to vector<8x32xbf16>
    %c0_41 = arith.constant 0 : index
    %c0_42 = arith.constant 0 : index
    %68 = vector.load %arg10[%c0_41, %c0_42] : memref<32x64xbf16, #tpu.memory_space<vmem>>, vector<32x64xbf16>
    %cst_43 = arith.constant dense<0.000000e+00> : vector<8x64xf32>
    %69 = tpu.matmul %67, %68, %cst_43 {dimension_numbers = #tpu.dot_dimension_numbers<[1], [0], [0], [1], [0, 0, 1, 1], [], []>} : vector<8x32xbf16>, vector<32x64xbf16>, vector<8x64xf32> -> vector<8x64xf32>
    %c0_44 = arith.constant 0 : index
    %c0_45 = arith.constant 0 : index
    %70 = vector.load %arg11[%c0_44, %c0_45] : memref<1x64xf32, #tpu.memory_space<vmem>>, vector<1x64xf32>
    %71 = vector.broadcast %70 : vector<1x64xf32> to vector<8x64xf32>
    %72 = arith.addf %69, %71 : vector<8x64xf32>
    %cst_46 = arith.constant 5.000000e-01 : f32
    %73 = vector.broadcast %cst_46 : f32 to vector<8x64xf32>
    %74 = arith.mulf %73, %72 : vector<8x64xf32>
    %cst_47 = arith.constant 4.471500e-02 : f32
    %75 = vector.broadcast %cst_47 : f32 to vector<8x64xf32>
    %76 = arith.mulf %75, %72 : vector<8x64xf32>
    %77 = arith.mulf %76, %72 : vector<8x64xf32>
    %78 = arith.mulf %77, %72 : vector<8x64xf32>
    %79 = arith.addf %72, %78 : vector<8x64xf32>
    %cst_48 = arith.constant 0.797884583 : f32
    %80 = vector.broadcast %cst_48 : f32 to vector<8x64xf32>
    %81 = arith.mulf %80, %79 : vector<8x64xf32>
    %82 = math.tanh %81 : vector<8x64xf32>
    %cst_49 = arith.constant 1.000000e+00 : f32
    %83 = vector.broadcast %cst_49 : f32 to vector<8x64xf32>
    %84 = arith.addf %83, %82 : vector<8x64xf32>
    %85 = arith.mulf %74, %84 : vector<8x64xf32>
    %86 = arith.truncf %85 : vector<8x64xf32> to vector<8x64xbf16>
    %c0_50 = arith.constant 0 : index
    %c0_51 = arith.constant 0 : index
    %87 = vector.load %arg12[%c0_50, %c0_51] : memref<64x32xbf16, #tpu.memory_space<vmem>>, vector<64x32xbf16>
    %cst_52 = arith.constant dense<0.000000e+00> : vector<8x32xf32>
    %88 = tpu.matmul %86, %87, %cst_52 {dimension_numbers = #tpu.dot_dimension_numbers<[1], [0], [0], [1], [0, 0, 1, 1], [], []>} : vector<8x64xbf16>, vector<64x32xbf16>, vector<8x32xf32> -> vector<8x32xf32>
    %c0_53 = arith.constant 0 : index
    %c0_54 = arith.constant 0 : index
    %89 = vector.load %arg13[%c0_53, %c0_54] : memref<1x32xf32, #tpu.memory_space<vmem>>, vector<1x32xf32>
    %90 = vector.broadcast %89 : vector<1x32xf32> to vector<8x32xf32>
    %91 = arith.addf %88, %90 : vector<8x32xf32>
    %92 = arith.addf %66, %91 : vector<8x32xf32>
    %c0_55 = arith.constant 0 : index
    %c0_56 = arith.constant 0 : index
    %93 = vector.load %arg14[%c0_55, %c0_56] : memref<1x32xf32, #tpu.memory_space<vmem>>, vector<1x32xf32>
    %c0_57 = arith.constant 0 : index
    %c0_58 = arith.constant 0 : index
    %94 = vector.load %arg15[%c0_57, %c0_58] : memref<1x32xf32, #tpu.memory_space<vmem>>, vector<1x32xf32>
    %cst_59 = arith.constant dense<0.000000e+00> : vector<8xf32>
    %95 = vector.multi_reduction <add>, %92, %cst_59 [1] : vector<8x32xf32> to vector<8xf32>
    %96 = vector.shape_cast %95 : vector<8xf32> to vector<8x1xf32>
    %cst_60 = arith.constant 3.200000e+01 : f32
    %97 = vector.broadcast %cst_60 : f32 to vector<8x1xf32>
    %98 = arith.divf %96, %97 : vector<8x1xf32>
    %99 = vector.broadcast %98 : vector<8x1xf32> to vector<8x32xf32>
    %100 = arith.subf %92, %99 : vector<8x32xf32>
    %101 = arith.mulf %100, %100 : vector<8x32xf32>
    %cst_61 = arith.constant dense<0.000000e+00> : vector<8xf32>
    %102 = vector.multi_reduction <add>, %101, %cst_61 [1] : vector<8x32xf32> to vector<8xf32>
    %103 = vector.shape_cast %102 : vector<8xf32> to vector<8x1xf32>
    %cst_62 = arith.constant 3.200000e+01 : f32
    %104 = vector.broadcast %cst_62 : f32 to vector<8x1xf32>
    %105 = arith.divf %103, %104 : vector<8x1xf32>
    %cst_63 = arith.constant 9.99999996E-13 : f32
    %106 = vector.broadcast %cst_63 : f32 to vector<8x1xf32>
    %107 = arith.addf %105, %106 : vector<8x1xf32>
    %108 = math.rsqrt %107 : vector<8x1xf32>
    %109 = vector.broadcast %108 : vector<8x1xf32> to vector<8x32xf32>
    %110 = arith.mulf %100, %109 : vector<8x32xf32>
    %111 = vector.broadcast %93 : vector<1x32xf32> to vector<8x32xf32>
    %112 = arith.mulf %110, %111 : vector<8x32xf32>
    %113 = vector.broadcast %94 : vector<1x32xf32> to vector<8x32xf32>
    %114 = arith.addf %112, %113 : vector<8x32xf32>
    %115 = arith.truncf %114 : vector<8x32xf32> to vector<8x32xbf16>
    %c0_64 = arith.constant 0 : index
    %c0_65 = arith.constant 0 : index
    %c0_66 = arith.constant 0 : index
    %116 = vector.load %arg16[%c0_64, %c0_65, %c0_66] : memref<1x8x32xbf16, #tpu.memory_space<vmem>>, vector<1x8x32xbf16>
    %117 = vector.shape_cast %116 : vector<1x8x32xbf16> to vector<8x32xbf16>
    %118 = vector.shape_cast %115 : vector<8x32xbf16> to vector<1x8x32xbf16>
    tpu.vector_store %arg16[%c0_64, %c0_65, %c0_66], %118 {strides = array<i32>} : memref<1x8x32xbf16, #tpu.memory_space<vmem>>, vector<1x8x32xbf16>,
    return
  }
  func.func @transform_0(%arg0: i32) -> (i32, i32, i32) {
    %c0_i32 = arith.constant 0 : i32
    %c0_i32_0 = arith.constant 0 : i32
    %c0_i32_1 = arith.constant 0 : i32
    return %arg0, %c0_i32, %c0_i32_0 : i32, i32, i32
  }
  func.func @transform_1(%arg0: i32) -> (i32, i32, i32) {
    %c0_i32 = arith.constant 0 : i32
    %c0_i32_0 = arith.constant 0 : i32
    %c0_i32_1 = arith.constant 0 : i32
    return %arg0, %c0_i32, %c0_i32_0 : i32, i32, i32
  }
  func.func @transform_2(%arg0: i32) -> (i32, i32, i32) {
    %c0_i32 = arith.constant 0 : i32
    %c0_i32_0 = arith.constant 0 : i32
    %c0_i32_1 = arith.constant 0 : i32
    %c0_i32_2 = arith.constant 0 : i32
    return %c0_i32, %c0_i32_0, %c0_i32_1 : i32, i32, i32
  }
  func.func @transform_3(%arg0: i32) -> (i32, i32, i32) {
    %c0_i32 = arith.constant 0 : i32
    %c0_i32_0 = arith.constant 0 : i32
    %c0_i32_1 = arith.constant 0 : i32
    %c0_i32_2 = arith.constant 0 : i32
    return %c0_i32, %c0_i32_0, %c0_i32_1 : i32, i32, i32
  }
  func.func @transform_4(%arg0: i32) -> (i32, i32, i32) {
    %c0_i32 = arith.constant 0 : i32
    %c0_i32_0 = arith.constant 0 : i32
    %c0_i32_1 = arith.constant 0 : i32
    %c0_i32_2 = arith.constant 0 : i32
    return %c0_i32, %c0_i32_0, %c0_i32_1 : i32, i32, i32
  }
  func.func @transform_5(%arg0: i32) -> (i32, i32, i32) {
    %c0_i32 = arith.constant 0 : i32
    %c0_i32_0 = arith.constant 0 : i32
    %c0_i32_1 = arith.constant 0 : i32
    %c0_i32_2 = arith.constant 0 : i32
    return %c0_i32, %c0_i32_0, %c0_i32_1 : i32, i32, i32
  }
  func.func @transform_6(%arg0: i32) -> (i32, i32) {
    %c0_i32 = arith.constant 0 : i32
    %c0_i32_0 = arith.constant 0 : i32
    %c0_i32_1 = arith.constant 0 : i32
    return %c0_i32, %c0_i32_0 : i32, i32
  }
  func.func @transform_7(%arg0: i32) -> (i32, i32) {
    %c0_i32 = arith.constant 0 : i32
    %c0_i32_0 = arith.constant 0 : i32
    %c0_i32_1 = arith.constant 0 : i32
    return %c0_i32, %c0_i32_0 : i32, i32
  }
  func.func @transform_8(%arg0: i32) -> (i32, i32) {
    %c0_i32 = arith.constant 0 : i32
    %c0_i32_0 = arith.constant 0 : i32
    %c0_i32_1 = arith.constant 0 : i32
    return %c0_i32, %c0_i32_0 : i32, i32
  }
  func.func @transform_9(%arg0: i32) -> (i32, i32) {
    %c0_i32 = arith.constant 0 : i32
    %c0_i32_0 = arith.constant 0 : i32
    %c0_i32_1 = arith.constant 0 : i32
    return %c0_i32, %c0_i32_0 : i32, i32
  }
  func.func @transform_10(%arg0: i32) -> (i32, i32) {
    %c0_i32 = arith.constant 0 : i32
    %c0_i32_0 = arith.constant 0 : i32
    %c0_i32_1 = arith.constant 0 : i32
    return %c0_i32, %c0_i32_0 : i32, i32
  }
  func.func @transform_11(%arg0: i32) -> (i32, i32) {
    %c0_i32 = arith.constant 0 : i32
    %c0_i32_0 = arith.constant 0 : i32
    %c0_i32_1 = arith.constant 0 : i32
    return %c0_i32, %c0_i32_0 : i32, i32
  }
  func.func @transform_12(%arg0: i32) -> (i32, i32) {
    %c0_i32 = arith.constant 0 : i32
    %c0_i32_0 = arith.constant 0 : i32
    %c0_i32_1 = arith.constant 0 : i32
    return %c0_i32, %c0_i32_0 : i32, i32
  }
  func.func @transform_13(%arg0: i32) -> (i32, i32) {
    %c0_i32 = arith.constant 0 : i32
    %c0_i32_0 = arith.constant 0 : i32
    %c0_i32_1 = arith.constant 0 : i32
    return %c0_i32, %c0_i32_0 : i32, i32
  }
  func.func @transform_14(%arg0: i32) -> (i32, i32) {
    %c0_i32 = arith.constant 0 : i32
    %c0_i32_0 = arith.constant 0 : i32
    %c0_i32_1 = arith.constant 0 : i32
    return %c0_i32, %c0_i32_0 : i32, i32
  }
  func.func @transform_15(%arg0: i32) -> (i32, i32, i32) {
    %c0_i32 = arith.constant 0 : i32
    %c0_i32_0 = arith.constant 0 : i32
    %c0_i32_1 = arith.constant 0 : i32
    return %arg0, %c0_i32, %c0_i32_0 : i32, i32, i32
  }
}

module attributes {stable_mosaic.version = 11 : i64} {
  func.func @_transformer_layer_kernel(%arg0: i32, %arg1: memref<1x8x32xbf16, #tpu.memory_space<vmem>>, %arg2: memref<1x1x8xf32, #tpu.memory_space<vmem>>, %arg3: memref<4x32x8xbf16, #tpu.memory_space<vmem>>, %arg4: memref<4x32x8xbf16, #tpu.memory_space<vmem>>, %arg5: memref<4x32x8xbf16, #tpu.memory_space<vmem>>, %arg6: memref<4x8x32xbf16, #tpu.memory_space<vmem>>, %arg7: memref<1x32xf32, #tpu.memory_space<vmem>>, %arg8: memref<1x32xf32, #tpu.memory_space<vmem>>, %arg9: memref<1x32xf32, #tpu.memory_space<vmem>>, %arg10: memref<32x64xbf16, #tpu.memory_space<vmem>>, %arg11: memref<1x64xf32, #tpu.memory_space<vmem>>, %arg12: memref<64x32xbf16, #tpu.memory_space<vmem>>, %arg13: memref<1x32xf32, #tpu.memory_space<vmem>>, %arg14: memref<1x32xf32, #tpu.memory_space<vmem>>, %arg15: memref<1x32xf32, #tpu.memory_space<vmem>>, %arg16: memref<1x8x32xf32, #tpu.memory_space<vmem>>) attributes {dimension_semantics = [#tpu.dimension_semantics<parallel>], iteration_bounds = array<i64: 2>, scalar_prefetch = 0 : i64, scratch_operands = 0 : i64, tpu.core_type = #tpu.core_type<tc>, window_params = [{transform_indices = @transform_0, window_bounds = array<i64: 1, 8, 32>}, {transform_indices = @transform_1, window_bounds = array<i64: 1, 1, 8>}, {pipeline_mode = #tpu.pipeline_mode<synchronous>, transform_indices = @transform_2, window_bounds = array<i64: 4, 32, 8>}, {pipeline_mode = #tpu.pipeline_mode<synchronous>, transform_indices = @transform_3, window_bounds = array<i64: 4, 32, 8>}, {pipeline_mode = #tpu.pipeline_mode<synchronous>, transform_indices = @transform_4, window_bounds = array<i64: 4, 32, 8>}, {pipeline_mode = #tpu.pipeline_mode<synchronous>, transform_indices = @transform_5, window_bounds = array<i64: 4, 8, 32>}, {pipeline_mode = #tpu.pipeline_mode<synchronous>, transform_indices = @transform_6, window_bounds = array<i64: 1, 32>}, {pipeline_mode = #tpu.pipeline_mode<synchronous>, transform_indices = @transform_7, window_bounds = array<i64: 1, 32>}, {pipeline_mode = #tpu.pipeline_mode<synchronous>, transform_indices = @transform_8, window_bounds = array<i64: 1, 32>}, {pipeline_mode = #tpu.pipeline_mode<synchronous>, transform_indices = @transform_9, window_bounds = array<i64: 32, 64>}, {pipeline_mode = #tpu.pipeline_mode<synchronous>, transform_indices = @transform_10, window_bounds = array<i64: 1, 64>}, {pipeline_mode = #tpu.pipeline_mode<synchronous>, transform_indices = @transform_11, window_bounds = array<i64: 64, 32>}, {pipeline_mode = #tpu.pipeline_mode<synchronous>, transform_indices = @transform_12, window_bounds = array<i64: 1, 32>}, {pipeline_mode = #tpu.pipeline_mode<synchronous>, transform_indices = @transform_13, window_bounds = array<i64: 1, 32>}, {pipeline_mode = #tpu.pipeline_mode<synchronous>, transform_indices = @transform_14, window_bounds = array<i64: 1, 32>}, {transform_indices = @transform_15, window_bounds = array<i64: 1, 8, 32>}]} {
    %c0 = arith.constant 0 : index
    %c0_0 = arith.constant 0 : index
    %c0_1 = arith.constant 0 : index
    %0 = vector.load %arg1[%c0, %c0_0, %c0_1] : memref<1x8x32xbf16, #tpu.memory_space<vmem>>, vector<1x8x32xbf16>
    %1 = vector.shape_cast %0 : vector<1x8x32xbf16> to vector<8x32xbf16>
    %c0_2 = arith.constant 0 : index
    %c0_3 = arith.constant 0 : index
    %c0_4 = arith.constant 0 : index
    %2 = vector.load %arg1[%c0_2, %c0_3, %c0_4] : memref<1x8x32xbf16, #tpu.memory_space<vmem>>, vector<1x8x32xbf16>
    %3 = vector.shape_cast %2 : vector<1x8x32xbf16> to vector<8x32xbf16>
    %4 = arith.extf %3 : vector<8x32xbf16> to vector<8x32xf32>
    %5 = vector.shape_cast %1 : vector<8x32xbf16> to vector<1x8x32xbf16>
    %6 = vector.shape_cast %5 : vector<1x8x32xbf16> to vector<1x8x32xbf16>
    %7 = vector.broadcast %6 : vector<1x8x32xbf16> to vector<4x8x32xbf16>
    %c0_5 = arith.constant 0 : index
    %c0_6 = arith.constant 0 : index
    %c0_7 = arith.constant 0 : index
    %8 = vector.load %arg3[%c0_5, %c0_6, %c0_7] : memref<4x32x8xbf16, #tpu.memory_space<vmem>>, vector<4x32x8xbf16>
    "tpu.trace_start"() <{level = 10 : i32, message = "hnk,hkd->hnd"}> : () -> ()
    %cst = arith.constant dense<0.000000e+00> : vector<4x8x8xf32>
    %9 = tpu.matmul %7, %8, %cst {dimension_numbers = #tpu.dot_dimension_numbers<[2], [1], [1], [2], [0, 0, 0, 1, 1, 2], [0], [0]>} : vector<4x8x32xbf16>, vector<4x32x8xbf16>, vector<4x8x8xf32> -> vector<4x8x8xf32>
    "tpu.trace_stop"() : () -> ()
    %c0_8 = arith.constant 0 : index
    %c0_9 = arith.constant 0 : index
    %c0_10 = arith.constant 0 : index
    %10 = vector.load %arg4[%c0_8, %c0_9, %c0_10] : memref<4x32x8xbf16, #tpu.memory_space<vmem>>, vector<4x32x8xbf16>
    "tpu.trace_start"() <{level = 10 : i32, message = "hnk,hkd->hnd"}> : () -> ()
    %cst_11 = arith.constant dense<0.000000e+00> : vector<4x8x8xf32>
    %11 = tpu.matmul %7, %10, %cst_11 {dimension_numbers = #tpu.dot_dimension_numbers<[2], [1], [1], [2], [0, 0, 0, 1, 1, 2], [0], [0]>} : vector<4x8x32xbf16>, vector<4x32x8xbf16>, vector<4x8x8xf32> -> vector<4x8x8xf32>
    "tpu.trace_stop"() : () -> ()
    %c0_12 = arith.constant 0 : index
    %c0_13 = arith.constant 0 : index
    %c0_14 = arith.constant 0 : index
    %12 = vector.load %arg5[%c0_12, %c0_13, %c0_14] : memref<4x32x8xbf16, #tpu.memory_space<vmem>>, vector<4x32x8xbf16>
    "tpu.trace_start"() <{level = 10 : i32, message = "hnk,hkd->hnd"}> : () -> ()
    %cst_15 = arith.constant dense<0.000000e+00> : vector<4x8x8xf32>
    %13 = tpu.matmul %7, %12, %cst_15 {dimension_numbers = #tpu.dot_dimension_numbers<[2], [1], [1], [2], [0, 0, 0, 1, 1, 2], [0], [0]>} : vector<4x8x32xbf16>, vector<4x32x8xbf16>, vector<4x8x8xf32> -> vector<4x8x8xf32>
    "tpu.trace_stop"() : () -> ()
    %14 = arith.truncf %9 : vector<4x8x8xf32> to vector<4x8x8xbf16>
    %15 = arith.truncf %11 : vector<4x8x8xf32> to vector<4x8x8xbf16>
    %16 = arith.truncf %13 : vector<4x8x8xf32> to vector<4x8x8xbf16>
    "tpu.trace_start"() <{level = 10 : i32, message = "hnd,hmd->hnm"}> : () -> ()
    %cst_16 = arith.constant dense<0.000000e+00> : vector<4x8x8xf32>
    %17 = tpu.matmul %14, %15, %cst_16 {dimension_numbers = #tpu.dot_dimension_numbers<[2], [2], [1], [1], [0, 0, 0, 1, 1, 1], [0], [0]>} : vector<4x8x8xbf16>, vector<4x8x8xbf16>, vector<4x8x8xf32> -> vector<4x8x8xf32>
    "tpu.trace_stop"() : () -> ()
    %c0_17 = arith.constant 0 : index
    %c0_18 = arith.constant 0 : index
    %c0_19 = arith.constant 0 : index
    %18 = vector.load %arg2[%c0_17, %c0_18, %c0_19] : memref<1x1x8xf32, #tpu.memory_space<vmem>>, vector<1x1x8xf32>
    %cst_20 = arith.constant 0.000000e+00 : f32
    %19 = vector.broadcast %cst_20 : f32 to vector<1x1x8xf32>
    %20 = arith.cmpf oeq, %18, %19 : vector<1x1x8xf32>
    %cst_21 = arith.constant -1.000000e+30 : f32
    %21 = vector.shape_cast %20 : vector<1x1x8xi1> to vector<1x1x8xi1>
    %22 = vector.broadcast %21 : vector<1x1x8xi1> to vector<4x8x8xi1>
    %23 = vector.broadcast %cst_21 : f32 to vector<4x8x8xf32>
    %24 = arith.select %22, %23, %17 : vector<4x8x8xi1>, vector<4x8x8xf32>
    %cst_22 = arith.constant dense<0xFF800000> : vector<4x8xf32>
    %25 = vector.multi_reduction <maximumf>, %24, %cst_22 [2] : vector<4x8x8xf32> to vector<4x8xf32>
    %26 = vector.shape_cast %25 : vector<4x8xf32> to vector<4x8x1xf32>
    %27 = vector.broadcast %26 : vector<4x8x1xf32> to vector<4x8x8xf32>
    %28 = arith.subf %24, %27 : vector<4x8x8xf32>
    %29 = math.exp %28 : vector<4x8x8xf32>
    %cst_23 = arith.constant dense<0.000000e+00> : vector<4x8xf32>
    %30 = vector.multi_reduction <add>, %29, %cst_23 [2] : vector<4x8x8xf32> to vector<4x8xf32>
    %31 = vector.shape_cast %30 : vector<4x8xf32> to vector<4x8x1xf32>
    %32 = tpu.reciprocal %31 {approx = true} : vector<4x8x1xf32> -> vector<4x8x1xf32>
    %33 = vector.broadcast %32 : vector<4x8x1xf32> to vector<4x8x8xf32>
    %34 = arith.mulf %29, %33 : vector<4x8x8xf32>
    %35 = arith.truncf %34 : vector<4x8x8xf32> to vector<4x8x8xbf16>
    "tpu.trace_start"() <{level = 10 : i32, message = "hnm,hmd->hnd"}> : () -> ()
    %cst_24 = arith.constant dense<0.000000e+00> : vector<4x8x8xf32>
    %36 = tpu.matmul %35, %16, %cst_24 {dimension_numbers = #tpu.dot_dimension_numbers<[2], [1], [1], [2], [0, 0, 0, 1, 1, 2], [0], [0]>} : vector<4x8x8xbf16>, vector<4x8x8xbf16>, vector<4x8x8xf32> -> vector<4x8x8xf32>
    "tpu.trace_stop"() : () -> ()
    %37 = arith.truncf %36 : vector<4x8x8xf32> to vector<4x8x8xbf16>
    %c0_25 = arith.constant 0 : index
    %c0_26 = arith.constant 0 : index
    %c0_27 = arith.constant 0 : index
    %38 = vector.load %arg6[%c0_25, %c0_26, %c0_27] : memref<4x8x32xbf16, #tpu.memory_space<vmem>>, vector<4x8x32xbf16>
    "tpu.trace_start"() <{level = 10 : i32, message = "hnd,hdk->hnk"}> : () -> ()
    %cst_28 = arith.constant dense<0.000000e+00> : vector<4x8x32xf32>
    %39 = tpu.matmul %37, %38, %cst_28 {dimension_numbers = #tpu.dot_dimension_numbers<[2], [1], [1], [2], [0, 0, 0, 1, 1, 2], [0], [0]>} : vector<4x8x8xbf16>, vector<4x8x32xbf16>, vector<4x8x32xf32> -> vector<4x8x32xf32>
    "tpu.trace_stop"() : () -> ()
    %cst_29 = arith.constant dense<0.000000e+00> : vector<8x32xf32>
    %40 = vector.multi_reduction <add>, %39, %cst_29 [0] : vector<4x8x32xf32> to vector<8x32xf32>
    %c0_30 = arith.constant 0 : index
    %c0_31 = arith.constant 0 : index
    %41 = vector.load %arg7[%c0_30, %c0_31] : memref<1x32xf32, #tpu.memory_space<vmem>>, vector<1x32xf32>
    %42 = vector.broadcast %41 : vector<1x32xf32> to vector<8x32xf32>
    %43 = arith.addf %40, %42 : vector<8x32xf32>
    %44 = arith.addf %43, %4 : vector<8x32xf32>
    %c0_32 = arith.constant 0 : index
    %c0_33 = arith.constant 0 : index
    %45 = vector.load %arg8[%c0_32, %c0_33] : memref<1x32xf32, #tpu.memory_space<vmem>>, vector<1x32xf32>
    %c0_34 = arith.constant 0 : index
    %c0_35 = arith.constant 0 : index
    %46 = vector.load %arg9[%c0_34, %c0_35] : memref<1x32xf32, #tpu.memory_space<vmem>>, vector<1x32xf32>
    %cst_36 = arith.constant dense<0.000000e+00> : vector<8xf32>
    %47 = vector.multi_reduction <add>, %44, %cst_36 [1] : vector<8x32xf32> to vector<8xf32>
    %48 = vector.shape_cast %47 : vector<8xf32> to vector<8x1xf32>
    %cst_37 = arith.constant 3.200000e+01 : f32
    %49 = vector.broadcast %cst_37 : f32 to vector<8x1xf32>
    %50 = arith.divf %48, %49 : vector<8x1xf32>
    %51 = vector.broadcast %50 : vector<8x1xf32> to vector<8x32xf32>
    %52 = arith.subf %44, %51 : vector<8x32xf32>
    %53 = arith.mulf %52, %52 : vector<8x32xf32>
    %cst_38 = arith.constant dense<0.000000e+00> : vector<8xf32>
    %54 = vector.multi_reduction <add>, %53, %cst_38 [1] : vector<8x32xf32> to vector<8xf32>
    %55 = vector.shape_cast %54 : vector<8xf32> to vector<8x1xf32>
    %cst_39 = arith.constant 3.200000e+01 : f32
    %56 = vector.broadcast %cst_39 : f32 to vector<8x1xf32>
    %57 = arith.divf %55, %56 : vector<8x1xf32>
    %cst_40 = arith.constant 9.99999996E-13 : f32
    %58 = vector.broadcast %cst_40 : f32 to vector<8x1xf32>
    %59 = arith.addf %57, %58 : vector<8x1xf32>
    %60 = math.rsqrt %59 : vector<8x1xf32>
    %61 = vector.broadcast %60 : vector<8x1xf32> to vector<8x32xf32>
    %62 = arith.mulf %52, %61 : vector<8x32xf32>
    %63 = vector.broadcast %45 : vector<1x32xf32> to vector<8x32xf32>
    %64 = arith.mulf %62, %63 : vector<8x32xf32>
    %65 = vector.broadcast %46 : vector<1x32xf32> to vector<8x32xf32>
    %66 = arith.addf %64, %65 : vector<8x32xf32>
    %67 = arith.truncf %66 : vector<8x32xf32> to vector<8x32xbf16>
    %c0_41 = arith.constant 0 : index
    %c0_42 = arith.constant 0 : index
    %68 = vector.load %arg10[%c0_41, %c0_42] : memref<32x64xbf16, #tpu.memory_space<vmem>>, vector<32x64xbf16>
    %cst_43 = arith.constant dense<0.000000e+00> : vector<8x64xf32>
    %69 = tpu.matmul %67, %68, %cst_43 {dimension_numbers = #tpu.dot_dimension_numbers<[1], [0], [0], [1], [0, 0, 1, 1], [], []>} : vector<8x32xbf16>, vector<32x64xbf16>, vector<8x64xf32> -> vector<8x64xf32>
    %c0_44 = arith.constant 0 : index
    %c0_45 = arith.constant 0 : index
    %70 = vector.load %arg11[%c0_44, %c0_45] : memref<1x64xf32, #tpu.memory_space<vmem>>, vector<1x64xf32>
    %71 = vector.broadcast %70 : vector<1x64xf32> to vector<8x64xf32>
    %72 = arith.addf %69, %71 : vector<8x64xf32>
    %cst_46 = arith.constant 5.000000e-01 : f32
    %73 = vector.broadcast %cst_46 : f32 to vector<8x64xf32>
    %74 = arith.mulf %73, %72 : vector<8x64xf32>
    %cst_47 = arith.constant 4.471500e-02 : f32
    %75 = vector.broadcast %cst_47 : f32 to vector<8x64xf32>
    %76 = arith.mulf %75, %72 : vector<8x64xf32>
    %77 = arith.mulf %76, %72 : vector<8x64xf32>
    %78 = arith.mulf %77, %72 : vector<8x64xf32>
    %79 = arith.addf %72, %78 : vector<8x64xf32>
    %cst_48 = arith.constant 0.797884583 : f32
    %80 = vector.broadcast %cst_48 : f32 to vector<8x64xf32>
    %81 = arith.mulf %80, %79 : vector<8x64xf32>
    %82 = math.tanh %81 : vector<8x64xf32>
    %cst_49 = arith.constant 1.000000e+00 : f32
    %83 = vector.broadcast %cst_49 : f32 to vector<8x64xf32>
    %84 = arith.addf %83, %82 : vector<8x64xf32>
    %85 = arith.mulf %74, %84 : vector<8x64xf32>
    %86 = arith.truncf %85 : vector<8x64xf32> to vector<8x64xbf16>
    %c0_50 = arith.constant 0 : index
    %c0_51 = arith.constant 0 : index
    %87 = vector.load %arg12[%c0_50, %c0_51] : memref<64x32xbf16, #tpu.memory_space<vmem>>, vector<64x32xbf16>
    %cst_52 = arith.constant dense<0.000000e+00> : vector<8x32xf32>
    %88 = tpu.matmul %86, %87, %cst_52 {dimension_numbers = #tpu.dot_dimension_numbers<[1], [0], [0], [1], [0, 0, 1, 1], [], []>} : vector<8x64xbf16>, vector<64x32xbf16>, vector<8x32xf32> -> vector<8x32xf32>
    %c0_53 = arith.constant 0 : index
    %c0_54 = arith.constant 0 : index
    %89 = vector.load %arg13[%c0_53, %c0_54] : memref<1x32xf32, #tpu.memory_space<vmem>>, vector<1x32xf32>
    %90 = vector.broadcast %89 : vector<1x32xf32> to vector<8x32xf32>
    %91 = arith.addf %88, %90 : vector<8x32xf32>
    %92 = arith.addf %66, %91 : vector<8x32xf32>
    %c0_55 = arith.constant 0 : index
    %c0_56 = arith.constant 0 : index
    %93 = vector.load %arg14[%c0_55, %c0_56] : memref<1x32xf32, #tpu.memory_space<vmem>>, vector<1x32xf32>
    %c0_57 = arith.constant 0 : index
    %c0_58 = arith.constant 0 : index
    %94 = vector.load %arg15[%c0_57, %c0_58] : memref<1x32xf32, #tpu.memory_space<vmem>>, vector<1x32xf32>
    %cst_59 = arith.constant dense<0.000000e+00> : vector<8xf32>
    %95 = vector.multi_reduction <add>, %92, %cst_59 [1] : vector<8x32xf32> to vector<8xf32>
    %96 = vector.shape_cast %95 : vector<8xf32> to vector<8x1xf32>
    %cst_60 = arith.constant 3.200000e+01 : f32
    %97 = vector.broadcast %cst_60 : f32 to vector<8x1xf32>
    %98 = arith.divf %96, %97 : vector<8x1xf32>
    %99 = vector.broadcast %98 : vector<8x1xf32> to vector<8x32xf32>
    %100 = arith.subf %92, %99 : vector<8x32xf32>
    %101 = arith.mulf %100, %100 : vector<8x32xf32>
    %cst_61 = arith.constant dense<0.000000e+00> : vector<8xf32>
    %102 = vector.multi_reduction <add>, %101, %cst_61 [1] : vector<8x32xf32> to vector<8xf32>
    %103 = vector.shape_cast %102 : vector<8xf32> to vector<8x1xf32>
    %cst_62 = arith.constant 3.200000e+01 : f32
    %104 = vector.broadcast %cst_62 : f32 to vector<8x1xf32>
    %105 = arith.divf %103, %104 : vector<8x1xf32>
    %cst_63 = arith.constant 9.99999996E-13 : f32
    %106 = vector.broadcast %cst_63 : f32 to vector<8x1xf32>
    %107 = arith.addf %105, %106 : vector<8x1xf32>
    %108 = math.rsqrt %107 : vector<8x1xf32>
    %109 = vector.broadcast %108 : vector<8x1xf32> to vector<8x32xf32>
    %110 = arith.mulf %100, %109 : vector<8x32xf32>
    %111 = vector.broadcast %93 : vector<1x32xf32> to vector<8x32xf32>
    %112 = arith.mulf %110, %111 : vector<8x32xf32>
    %113 = vector.broadcast %94 : vector<1x32xf32> to vector<8x32xf32>
    %114 = arith.addf %112, %113 : vector<8x32xf32>
    %c0_64 = arith.constant 0 : index
    %c0_65 = arith.constant 0 : index
    %c0_66 = arith.constant 0 : index
    %115 = vector.load %arg16[%c0_64, %c0_65, %c0_66] : memref<1x8x32xf32, #tpu.memory_space<vmem>>, vector<1x8x32xf32>
    %116 = vector.shape_cast %115 : vector<1x8x32xf32> to vector<8x32xf32>
    %117 = vector.shape_cast %114 : vector<8x32xf32> to vector<1x8x32xf32>
    tpu.vector_store %arg16[%c0_64, %c0_65, %c0_66], %117 {strides = array<i32>} : memref<1x8x32xf32, #tpu.memory_space<vmem>>, vector<1x8x32xf32>,
    return
  }
  func.func @transform_0(%arg0: i32) -> (i32, i32, i32) {
    %c0_i32 = arith.constant 0 : i32
    %c0_i32_0 = arith.constant 0 : i32
    %c0_i32_1 = arith.constant 0 : i32
    return %arg0, %c0_i32, %c0_i32_0 : i32, i32, i32
  }
  func.func @transform_1(%arg0: i32) -> (i32, i32, i32) {
    %c0_i32 = arith.constant 0 : i32
    %c0_i32_0 = arith.constant 0 : i32
    %c0_i32_1 = arith.constant 0 : i32
    return %arg0, %c0_i32, %c0_i32_0 : i32, i32, i32
  }
  func.func @transform_2(%arg0: i32) -> (i32, i32, i32) {
    %c0_i32 = arith.constant 0 : i32
    %c0_i32_0 = arith.constant 0 : i32
    %c0_i32_1 = arith.constant 0 : i32
    %c0_i32_2 = arith.constant 0 : i32
    return %c0_i32, %c0_i32_0, %c0_i32_1 : i32, i32, i32
  }
  func.func @transform_3(%arg0: i32) -> (i32, i32, i32) {
    %c0_i32 = arith.constant 0 : i32
    %c0_i32_0 = arith.constant 0 : i32
    %c0_i32_1 = arith.constant 0 : i32
    %c0_i32_2 = arith.constant 0 : i32
    return %c0_i32, %c0_i32_0, %c0_i32_1 : i32, i32, i32
  }
  func.func @transform_4(%arg0: i32) -> (i32, i32, i32) {
    %c0_i32 = arith.constant 0 : i32
    %c0_i32_0 = arith.constant 0 : i32
    %c0_i32_1 = arith.constant 0 : i32
    %c0_i32_2 = arith.constant 0 : i32
    return %c0_i32, %c0_i32_0, %c0_i32_1 : i32, i32, i32
  }
  func.func @transform_5(%arg0: i32) -> (i32, i32, i32) {
    %c0_i32 = arith.constant 0 : i32
    %c0_i32_0 = arith.constant 0 : i32
    %c0_i32_1 = arith.constant 0 : i32
    %c0_i32_2 = arith.constant 0 : i32
    return %c0_i32, %c0_i32_0, %c0_i32_1 : i32, i32, i32
  }
  func.func @transform_6(%arg0: i32) -> (i32, i32) {
    %c0_i32 = arith.constant 0 : i32
    %c0_i32_0 = arith.constant 0 : i32
    %c0_i32_1 = arith.constant 0 : i32
    return %c0_i32, %c0_i32_0 : i32, i32
  }
  func.func @transform_7(%arg0: i32) -> (i32, i32) {
    %c0_i32 = arith.constant 0 : i32
    %c0_i32_0 = arith.constant 0 : i32
    %c0_i32_1 = arith.constant 0 : i32
    return %c0_i32, %c0_i32_0 : i32, i32
  }
  func.func @transform_8(%arg0: i32) -> (i32, i32) {
    %c0_i32 = arith.constant 0 : i32
    %c0_i32_0 = arith.constant 0 : i32
    %c0_i32_1 = arith.constant 0 : i32
    return %c0_i32, %c0_i32_0 : i32, i32
  }
  func.func @transform_9(%arg0: i32) -> (i32, i32) {
    %c0_i32 = arith.constant 0 : i32
    %c0_i32_0 = arith.constant 0 : i32
    %c0_i32_1 = arith.constant 0 : i32
    return %c0_i32, %c0_i32_0 : i32, i32
  }
  func.func @transform_10(%arg0: i32) -> (i32, i32) {
    %c0_i32 = arith.constant 0 : i32
    %c0_i32_0 = arith.constant 0 : i32
    %c0_i32_1 = arith.constant 0 : i32
    return %c0_i32, %c0_i32_0 : i32, i32
  }
  func.func @transform_11(%arg0: i32) -> (i32, i32) {
    %c0_i32 = arith.constant 0 : i32
    %c0_i32_0 = arith.constant 0 : i32
    %c0_i32_1 = arith.constant 0 : i32
    return %c0_i32, %c0_i32_0 : i32, i32
  }
  func.func @transform_12(%arg0: i32) -> (i32, i32) {
    %c0_i32 = arith.constant 0 : i32
    %c0_i32_0 = arith.constant 0 : i32
    %c0_i32_1 = arith.constant 0 : i32
    return %c0_i32, %c0_i32_0 : i32, i32
  }
  func.func @transform_13(%arg0: i32) -> (i32, i32) {
    %c0_i32 = arith.constant 0 : i32
    %c0_i32_0 = arith.constant 0 : i32
    %c0_i32_1 = arith.constant 0 : i32
    return %c0_i32, %c0_i32_0 : i32, i32
  }
  func.func @transform_14(%arg0: i32) -> (i32, i32) {
    %c0_i32 = arith.constant 0 : i32
    %c0_i32_0 = arith.constant 0 : i32
    %c0_i32_1 = arith.constant 0 : i32
    return %c0_i32, %c0_i32_0 : i32, i32
  }
  func.func @transform_15(%arg0: i32) -> (i32, i32, i32) {
    %c0_i32 = arith.constant 0 : i32
    %c0_i32_0 = arith.constant 0 : i32
    %c0_i32_1 = arith.constant 0 : i32
    return %arg0, %c0_i32, %c0_i32_0 : i32, i32, i32
  }
}

</mosaic_0001>

<llo_original>
// kernel: transformer_layers_pallas.3
$region0: #{transformer_layers_pallas.3}
  #allocation0 [shape = 'u32[]', space=smem, size = 0x4, offset = 0x4, fixed_abs, tag = 'smem constant byte address 0x4 - core index']
  #allocation1 [shape = 'u32[144,128]{1,0:T(1,128)}', space=vmem, size = 0x12000, scoped, tag = 'internal scratch']
  %s0 = inlined_call_operand.vmem [shape: bf16[2,8,32], index: 0, kind: input, shape index: {}]
  %s1 = inlined_call_operand.vmem [shape: f32[2,1,8], index: 1, kind: input, shape index: {}]
  %s2 = inlined_call_operand.vmem [shape: bf16[4,32,8], index: 2, kind: input, shape index: {}]
  %s3 = inlined_call_operand.vmem [shape: bf16[4,32,8], index: 3, kind: input, shape index: {}]
  %s4 = inlined_call_operand.vmem [shape: bf16[4,32,8], index: 4, kind: input, shape index: {}]
  %s5 = inlined_call_operand.vmem [shape: bf16[4,8,32], index: 5, kind: input, shape index: {}]
  %s6 = inlined_call_operand.vmem [shape: f32[1,32], index: 6, kind: input, shape index: {}]
  %s7 = inlined_call_operand.vmem [shape: f32[1,32], index: 7, kind: input, shape index: {}]
  %s8 = inlined_call_operand.vmem [shape: f32[1,32], index: 8, kind: input, shape index: {}]
  %s9 = inlined_call_operand.vmem [shape: bf16[32,64], index: 9, kind: input, shape index: {}]
  %s10 = inlined_call_operand.vmem [shape: f32[1,64], index: 10, kind: input, shape index: {}]
  %s11 = inlined_call_operand.vmem [shape: bf16[64,32], index: 11, kind: input, shape index: {}]
  %s12 = inlined_call_operand.vmem [shape: f32[1,32], index: 12, kind: input, shape index: {}]
  %s13 = inlined_call_operand.vmem [shape: f32[1,32], index: 13, kind: input, shape index: {}]
  %s14 = inlined_call_operand.vmem [shape: f32[1,32], index: 14, kind: input, shape index: {}]
  %s15 = inlined_call_operand.hbm [shape: f32[2,8,32], index: 15, kind: output, shape index: {}]
  %s16 = sld [smem:[#allocation0]]
  $region93: #{transformer_layers_pallas.3} parent=0
    _
  %s18 = ssub.s32 1, %s16
  %s19 = scalar_select 0, %s18, %s16
  $region1: #{transformer_layers_pallas.3} parent=0
    #allocation2 [shape = 'u8[8192]{0}', space=vmem, size = 0x2000, scoped, tag = 'output window, operand 0']
    #allocation3 [shape = 's32[2]{0}', space=sflag, size = 0x8, scoped, tag = 'scoped memory for transformer_layers_pallas.3']
    %20 = vsyncpa [#allocation3], 0
    %s21 = scalar_lea.sflag [#allocation3], 1
    %22 = vsyncpa %s21, 0
    loop: start=0, step=1, limit=4
    $region2: #{transformer_layers_pallas.3} parent=1 // loop_pre_header
      _
    $region3: #{transformer_layers_pallas.3} parent=1 // loop_header
      %s24 = sphi 0, %s28
      %p25 = scmp.ge.s32.totalorder %s24, 4
      %s34 = sphi 0, %s36
      %s37 = sphi 0, %s34
      %s38 = sphi 0, %s37
      %s54 = sphi 0, %s38
      %s60 = sphi 0, %s62
      %s63 = sphi 0, %s60
      %s64 = sphi 0, %s63
      %s80 = sphi 0, %s64
      %s84 = sphi 0, %s84
      %s86 = sphi 0, %s84
      %s87 = sphi 0, %s86
      %s101 = sphi 0, %s87
      %s105 = sphi 0, %s105
      %s107 = sphi 0, %s105
      %s108 = sphi 0, %s107
      %s122 = sphi 0, %s108
      %s126 = sphi 0, %s126
      %s128 = sphi 0, %s126
      %s129 = sphi 0, %s128
      %s143 = sphi 0, %s129
      %s147 = sphi 0, %s147
      %s149 = sphi 0, %s147
      %s150 = sphi 0, %s149
      %s164 = sphi 0, %s150
      %s168 = sphi 0, %s168
      %s170 = sphi 0, %s168
      %s171 = sphi 0, %s170
      %s185 = sphi 0, %s171
      %s189 = sphi 0, %s189
      %s191 = sphi 0, %s189
      %s192 = sphi 0, %s191
      %s206 = sphi 0, %s192
      %s210 = sphi 0, %s210
      %s212 = sphi 0, %s210
      %s213 = sphi 0, %s212
      %s227 = sphi 0, %s213
      %s231 = sphi 0, %s231
      %s233 = sphi 0, %s231
      %s234 = sphi 0, %s233
      %s248 = sphi 0, %s234
      %s252 = sphi 0, %s252
      %s254 = sphi 0, %s252
      %s255 = sphi 0, %s254
      %s269 = sphi 0, %s255
      %s273 = sphi 0, %s273
      %s275 = sphi 0, %s273
      %s276 = sphi 0, %s275
      %s290 = sphi 0, %s276
      %s294 = sphi 0, %s294
      %s296 = sphi 0, %s294
      %s297 = sphi 0, %s296
      %s311 = sphi 0, %s297
      %s315 = sphi 0, %s315
      %s317 = sphi 0, %s315
      %s318 = sphi 0, %s317
      %s332 = sphi 0, %s318
      %s336 = sphi 0, %s336
      %s338 = sphi 0, %s336
      %s339 = sphi 0, %s338
      %s353 = sphi 0, %s339
      %s359 = sphi 0, %s361
      %s362 = sphi 0, %s359
      %s363 = sphi 0, %s362
      %s379 = sphi 0, %s363
    $region4: #{transformer_layers_pallas.3} parent=1 // loop_header_branch
      %27 = sbr.rel (%p25) target = $region8
    $region5: #{transformer_layers_pallas.3} parent=1 // loop_body
      %s29 = ssub.s32 %s24, 1
      %s30 = ssub.s32 %s24, 2
      %s31 = sadd.s32 %s24, 1
      %s32 = ssub.s32 %s24, %s31
      %p33 = scmp.eq.s32.totalorder %s32, 0
      %s35 = sadd.s32 %s34, 1
      %s36 = scalar_select %p33, %s34, %s35
      %p39 = pneg %p33
      %p40 = scmp.eq.s32.totalorder %s24, 1
      %p41 = por %p39, %p40
      %p42 = scmp.ne.s32.totalorder %s34, %s37
      %p43 = scmp.eq.s32.totalorder %s24, 0
      %p44 = por %p42, %p43
      %p45 = scmp.ne.s32.totalorder %s34, %s37
      %p46 = scmp.eq.s32.totalorder %s29, 1
      %p47 = por %p45, %p46
      %p48 = scmp.ne.s32.totalorder %s37, %s38
      %p49 = scmp.eq.s32.totalorder %s29, 0
      %p50 = por %p48, %p49
      %p51 = scmp.ne.s32.totalorder %s37, %s38
      %p52 = scmp.eq.s32.totalorder %s30, 1
      %p53 = por %p51, %p52
      %p55 = scmp.ne.s32.totalorder %s38, %s54
      %p56 = scmp.eq.s32.totalorder %s30, 0
      %p57 = por %p55, %p56
      %s58 = ssub.s32 %s24, %s31
      %p59 = scmp.eq.s32.totalorder %s58, 0
      %s61 = sadd.s32 %s60, 1
      %s62 = scalar_select %p59, %s60, %s61
      %p65 = pneg %p59
      %p66 = scmp.eq.s32.totalorder %s24, 1
      %p67 = por %p65, %p66
      %p68 = scmp.ne.s32.totalorder %s60, %s63
      %p69 = scmp.eq.s32.totalorder %s24, 0
      %p70 = por %p68, %p69
      %p71 = scmp.ne.s32.totalorder %s60, %s63
      %p72 = scmp.eq.s32.totalorder %s29, 1
      %p73 = por %p71, %p72
      %p74 = scmp.ne.s32.totalorder %s63, %s64
      %p75 = scmp.eq.s32.totalorder %s29, 0
      %p76 = por %p74, %p75
      %p77 = scmp.ne.s32.totalorder %s63, %s64
      %p78 = scmp.eq.s32.totalorder %s30, 1
      %p79 = por %p77, %p78
      %p81 = scmp.ne.s32.totalorder %s64, %s80
      %p82 = scmp.eq.s32.totalorder %s30, 0
      %p83 = por %p81, %p82
      %s85 = sadd.s32 %s84, 1
      %p88 = scmp.eq.s32.totalorder %s24, 1
      %p89 = scmp.ne.s32.totalorder %s84, %s86
      %p90 = scmp.eq.s32.totalorder %s24, 0
      %p91 = por %p89, %p90
      %p92 = scmp.ne.s32.totalorder %s84, %s86
      %p93 = scmp.eq.s32.totalorder %s29, 1
      %p94 = por %p92, %p93
      %p95 = scmp.ne.s32.totalorder %s86, %s87
      %p96 = scmp.eq.s32.totalorder %s29, 0
      %p97 = por %p95, %p96
      %p98 = scmp.ne.s32.totalorder %s86, %s87
      %p99 = scmp.eq.s32.totalorder %s30, 1
      %p100 = por %p98, %p99
      %p102 = scmp.ne.s32.totalorder %s87, %s101
      %p103 = scmp.eq.s32.totalorder %s30, 0
      %p104 = por %p102, %p103
      %s106 = sadd.s32 %s105, 1
      %p109 = scmp.eq.s32.totalorder %s24, 1
      %p110 = scmp.ne.s32.totalorder %s105, %s107
      %p111 = scmp.eq.s32.totalorder %s24, 0
      %p112 = por %p110, %p111
      %p113 = scmp.ne.s32.totalorder %s105, %s107
      %p114 = scmp.eq.s32.totalorder %s29, 1
      %p115 = por %p113, %p114
      %p116 = scmp.ne.s32.totalorder %s107, %s108
      %p117 = scmp.eq.s32.totalorder %s29, 0
      %p118 = por %p116, %p117
      %p119 = scmp.ne.s32.totalorder %s107, %s108
      %p120 = scmp.eq.s32.totalorder %s30, 1
      %p121 = por %p119, %p120
      %p123 = scmp.ne.s32.totalorder %s108, %s122
      %p124 = scmp.eq.s32.totalorder %s30, 0
      %p125 = por %p123, %p124
      %s127 = sadd.s32 %s126, 1
      %p130 = scmp.eq.s32.totalorder %s24, 1
      %p131 = scmp.ne.s32.totalorder %s126, %s128
      %p132 = scmp.eq.s32.totalorder %s24, 0
      %p133 = por %p131, %p132
      %p134 = scmp.ne.s32.totalorder %s126, %s128
      %p135 = scmp.eq.s32.totalorder %s29, 1
      %p136 = por %p134, %p135
      %p137 = scmp.ne.s32.totalorder %s128, %s129
      %p138 = scmp.eq.s32.totalorder %s29, 0
      %p139 = por %p137, %p138
      %p140 = scmp.ne.s32.totalorder %s128, %s129
      %p141 = scmp.eq.s32.totalorder %s30, 1
      %p142 = por %p140, %p141
      %p144 = scmp.ne.s32.totalorder %s129, %s143
      %p145 = scmp.eq.s32.totalorder %s30, 0
      %p146 = por %p144, %p145
      %s148 = sadd.s32 %s147, 1
      %p151 = scmp.eq.s32.totalorder %s24, 1
      %p152 = scmp.ne.s32.totalorder %s147, %s149
      %p153 = scmp.eq.s32.totalorder %s24, 0
      %p154 = por %p152, %p153
      %p155 = scmp.ne.s32.totalorder %s147, %s149
      %p156 = scmp.eq.s32.totalorder %s29, 1
      %p157 = por %p155, %p156
      %p158 = scmp.ne.s32.totalorder %s149, %s150
      %p159 = scmp.eq.s32.totalorder %s29, 0
      %p160 = por %p158, %p159
      %p161 = scmp.ne.s32.totalorder %s149, %s150
      %p162 = scmp.eq.s32.totalorder %s30, 1
      %p163 = por %p161, %p162
      %p165 = scmp.ne.s32.totalorder %s150, %s164
      %p166 = scmp.eq.s32.totalorder %s30, 0
      %p167 = por %p165, %p166
      %s169 = sadd.s32 %s168, 1
      %p172 = scmp.eq.s32.totalorder %s24, 1
      %p173 = scmp.ne.s32.totalorder %s168, %s170
      %p174 = scmp.eq.s32.totalorder %s24, 0
      %p175 = por %p173, %p174
      %p176 = scmp.ne.s32.totalorder %s168, %s170
      %p177 = scmp.eq.s32.totalorder %s29, 1
      %p178 = por %p176, %p177
      %p179 = scmp.ne.s32.totalorder %s170, %s171
      %p180 = scmp.eq.s32.totalorder %s29, 0
      %p181 = por %p179, %p180
      %p182 = scmp.ne.s32.totalorder %s170, %s171
      %p183 = scmp.eq.s32.totalorder %s30, 1
      %p184 = por %p182, %p183
      %p186 = scmp.ne.s32.totalorder %s171, %s185
      %p187 = scmp.eq.s32.totalorder %s30, 0
      %p188 = por %p186, %p187
      %s190 = sadd.s32 %s189, 1
      %p193 = scmp.eq.s32.totalorder %s24, 1
      %p194 = scmp.ne.s32.totalorder %s189, %s191
      %p195 = scmp.eq.s32.totalorder %s24, 0
      %p196 = por %p194, %p195
      %p197 = scmp.ne.s32.totalorder %s189, %s191
      %p198 = scmp.eq.s32.totalorder %s29, 1
      %p199 = por %p197, %p198
      %p200 = scmp.ne.s32.totalorder %s191, %s192
      %p201 = scmp.eq.s32.totalorder %s29, 0
      %p202 = por %p200, %p201
      %p203 = scmp.ne.s32.totalorder %s191, %s192
      %p204 = scmp.eq.s32.totalorder %s30, 1
      %p205 = por %p203, %p204
      %p207 = scmp.ne.s32.totalorder %s192, %s206
      %p208 = scmp.eq.s32.totalorder %s30, 0
      %p209 = por %p207, %p208
      %s211 = sadd.s32 %s210, 1
      %p214 = scmp.eq.s32.totalorder %s24, 1
      %p215 = scmp.ne.s32.totalorder %s210, %s212
      %p216 = scmp.eq.s32.totalorder %s24, 0
      %p217 = por %p215, %p216
      %p218 = scmp.ne.s32.totalorder %s210, %s212
      %p219 = scmp.eq.s32.totalorder %s29, 1
      %p220 = por %p218, %p219
      %p221 = scmp.ne.s32.totalorder %s212, %s213
      %p222 = scmp.eq.s32.totalorder %s29, 0
      %p223 = por %p221, %p222
      %p224 = scmp.ne.s32.totalorder %s212, %s213
      %p225 = scmp.eq.s32.totalorder %s30, 1
      %p226 = por %p224, %p225
      %p228 = scmp.ne.s32.totalorder %s213, %s227
      %p229 = scmp.eq.s32.totalorder %s30, 0
      %p230 = por %p228, %p229
      %s232 = sadd.s32 %s231, 1
      %p235 = scmp.eq.s32.totalorder %s24, 1
      %p236 = scmp.ne.s32.totalorder %s231, %s233
      %p237 = scmp.eq.s32.totalorder %s24, 0
      %p238 = por %p236, %p237
      %p239 = scmp.ne.s32.totalorder %s231, %s233
      %p240 = scmp.eq.s32.totalorder %s29, 1
      %p241 = por %p239, %p240
      %p242 = scmp.ne.s32.totalorder %s233, %s234
      %p243 = scmp.eq.s32.totalorder %s29, 0
      %p244 = por %p242, %p243
      %p245 = scmp.ne.s32.totalorder %s233, %s234
      %p246 = scmp.eq.s32.totalorder %s30, 1
      %p247 = por %p245, %p246
      %p249 = scmp.ne.s32.totalorder %s234, %s248
      %p250 = scmp.eq.s32.totalorder %s30, 0
      %p251 = por %p249, %p250
      %s253 = sadd.s32 %s252, 1
      %p256 = scmp.eq.s32.totalorder %s24, 1
      %p257 = scmp.ne.s32.totalorder %s252, %s254
      %p258 = scmp.eq.s32.totalorder %s24, 0
      %p259 = por %p257, %p258
      %p260 = scmp.ne.s32.totalorder %s252, %s254
      %p261 = scmp.eq.s32.totalorder %s29, 1
      %p262 = por %p260, %p261
      %p263 = scmp.ne.s32.totalorder %s254, %s255
      %p264 = scmp.eq.s32.totalorder %s29, 0
      %p265 = por %p263, %p264
      %p266 = scmp.ne.s32.totalorder %s254, %s255
      %p267 = scmp.eq.s32.totalorder %s30, 1
      %p268 = por %p266, %p267
      %p270 = scmp.ne.s32.totalorder %s255, %s269
      %p271 = scmp.eq.s32.totalorder %s30, 0
      %p272 = por %p270, %p271
      %s274 = sadd.s32 %s273, 1
      %p277 = scmp.eq.s32.totalorder %s24, 1
      %p278 = scmp.ne.s32.totalorder %s273, %s275
      %p279 = scmp.eq.s32.totalorder %s24, 0
      %p280 = por %p278, %p279
      %p281 = scmp.ne.s32.totalorder %s273, %s275
      %p282 = scmp.eq.s32.totalorder %s29, 1
      %p283 = por %p281, %p282
      %p284 = scmp.ne.s32.totalorder %s275, %s276
      %p285 = scmp.eq.s32.totalorder %s29, 0
      %p286 = por %p284, %p285
      %p287 = scmp.ne.s32.totalorder %s275, %s276
      %p288 = scmp.eq.s32.totalorder %s30, 1
      %p289 = por %p287, %p288
      %p291 = scmp.ne.s32.totalorder %s276, %s290
      %p292 = scmp.eq.s32.totalorder %s30, 0
      %p293 = por %p291, %p292
      %s295 = sadd.s32 %s294, 1
      %p298 = scmp.eq.s32.totalorder %s24, 1
      %p299 = scmp.ne.s32.totalorder %s294, %s296
      %p300 = scmp.eq.s32.totalorder %s24, 0
      %p301 = por %p299, %p300
      %p302 = scmp.ne.s32.totalorder %s294, %s296
      %p303 = scmp.eq.s32.totalorder %s29, 1
      %p304 = por %p302, %p303
      %p305 = scmp.ne.s32.totalorder %s296, %s297
      %p306 = scmp.eq.s32.totalorder %s29, 0
      %p307 = por %p305, %p306
      %p308 = scmp.ne.s32.totalorder %s296, %s297
      %p309 = scmp.eq.s32.totalorder %s30, 1
      %p310 = por %p308, %p309
      %p312 = scmp.ne.s32.totalorder %s297, %s311
      %p313 = scmp.eq.s32.totalorder %s30, 0
      %p314 = por %p312, %p313
      %s316 = sadd.s32 %s315, 1
      %p319 = scmp.eq.s32.totalorder %s24, 1
      %p320 = scmp.ne.s32.totalorder %s315, %s317
      %p321 = scmp.eq.s32.totalorder %s24, 0
      %p322 = por %p320, %p321
      %p323 = scmp.ne.s32.totalorder %s315, %s317
      %p324 = scmp.eq.s32.totalorder %s29, 1
      %p325 = por %p323, %p324
      %p326 = scmp.ne.s32.totalorder %s317, %s318
      %p327 = scmp.eq.s32.totalorder %s29, 0
      %p328 = por %p326, %p327
      %p329 = scmp.ne.s32.totalorder %s317, %s318
      %p330 = scmp.eq.s32.totalorder %s30, 1
      %p331 = por %p329, %p330
      %p333 = scmp.ne.s32.totalorder %s318, %s332
      %p334 = scmp.eq.s32.totalorder %s30, 0
      %p335 = por %p333, %p334
      %s337 = sadd.s32 %s336, 1
      %p340 = scmp.eq.s32.totalorder %s24, 1
      %p341 = scmp.ne.s32.totalorder %s336, %s338
      %p342 = scmp.eq.s32.totalorder %s24, 0
      %p343 = por %p341, %p342
      %p344 = scmp.ne.s32.totalorder %s336, %s338
      %p345 = scmp.eq.s32.totalorder %s29, 1
      %p346 = por %p344, %p345
      %p347 = scmp.ne.s32.totalorder %s338, %s339
      %p348 = scmp.eq.s32.totalorder %s29, 0
      %p349 = por %p347, %p348
      %p350 = scmp.ne.s32.totalorder %s338, %s339
      %p351 = scmp.eq.s32.totalorder %s30, 1
      %p352 = por %p350, %p351
      %p354 = scmp.ne.s32.totalorder %s339, %s353
      %p355 = scmp.eq.s32.totalorder %s30, 0
      %p356 = por %p354, %p355
      %s357 = ssub.s32 %s24, %s31
      %p358 = scmp.eq.s32.totalorder %s357, 0
      %s360 = sadd.s32 %s359, 1
      %s361 = scalar_select %p358, %s359, %s360
      %p364 = pneg %p358
      %p365 = scmp.eq.s32.totalorder %s24, 1
      %p366 = por %p364, %p365
      %p367 = scmp.ne.s32.totalorder %s359, %s362
      %p368 = scmp.eq.s32.totalorder %s24, 0
      %p369 = por %p367, %p368
      %p370 = scmp.ne.s32.totalorder %s359, %s362
      %p371 = scmp.eq.s32.totalorder %s29, 1
      %p372 = por %p370, %p371
      %p373 = scmp.ne.s32.totalorder %s362, %s363
      %p374 = scmp.eq.s32.totalorder %s29, 0
      %p375 = por %p373, %p374
      %p376 = scmp.ne.s32.totalorder %s362, %s363
      %p377 = scmp.eq.s32.totalorder %s30, 1
      %p378 = por %p376, %p377
      %p380 = scmp.ne.s32.totalorder %s363, %s379
      %p381 = scmp.eq.s32.totalorder %s30, 0
      %p382 = por %p380, %p381
      %p383 = scmp.le.s32.totalorder 1, %s24
      %p384 = scmp.lt.s32.totalorder %s24, 3
      %p385 = pnand %p383, %p384
      %p386 = pneg %p385
      // Predicated region
      $region9: #{transformer_layers_pallas.3} parent=5 // pred_check
        _
      $region10: #{transformer_layers_pallas.3} parent=5 // pred_check_branch
        %388 = sbr.rel (%p385) target = $region12
      $region11: #{transformer_layers_pallas.3} parent=5 // pred_region
        %s389 = ssub.s32 %s24, 1
        // Predicated region
        $region13: #{transformer_layers_pallas.3} parent=11 // pred_check
          %p390 = pneg %p97
        $region14: #{transformer_layers_pallas.3} parent=11 // pred_check_branch
          %392 = sbr.rel (%p390) target = $region16
        $region15: #{transformer_layers_pallas.3} parent=11 // pred_region
          _
        $region16: #{transformer_layers_pallas.3} parent=11 // pred_fallthru
          _
        // Predicated region
        $region17: #{transformer_layers_pallas.3} parent=11 // pred_check
          %p393 = pneg %p118
        $region18: #{transformer_layers_pallas.3} parent=11 // pred_check_branch
          %395 = sbr.rel (%p393) target = $region20
        $region19: #{transformer_layers_pallas.3} parent=11 // pred_region
          _
        $region20: #{transformer_layers_pallas.3} parent=11 // pred_fallthru
          _
        // Predicated region
        $region21: #{transformer_layers_pallas.3} parent=11 // pred_check
          %p396 = pneg %p139
        $region22: #{transformer_layers_pallas.3} parent=11 // pred_check_branch
          %398 = sbr.rel (%p396) target = $region24
        $region23: #{transformer_layers_pallas.3} parent=11 // pred_region
          _
        $region24: #{transformer_layers_pallas.3} parent=11 // pred_fallthru
          _
        // Predicated region
        $region25: #{transformer_layers_pallas.3} parent=11 // pred_check
          %p399 = pneg %p160
        $region26: #{transformer_layers_pallas.3} parent=11 // pred_check_branch
          %401 = sbr.rel (%p399) target = $region28
        $region27: #{transformer_layers_pallas.3} parent=11 // pred_region
          _
        $region28: #{transformer_layers_pallas.3} parent=11 // pred_fallthru
          _
        // Predicated region
        $region29: #{transformer_layers_pallas.3} parent=11 // pred_check
          %p402 = pneg %p181
        $region30: #{transformer_layers_pallas.3} parent=11 // pred_check_branch
          %404 = sbr.rel (%p402) target = $region32
        $region31: #{transformer_layers_pallas.3} parent=11 // pred_region
          _
        $region32: #{transformer_layers_pallas.3} parent=11 // pred_fallthru
          _
        // Predicated region
        $region33: #{transformer_layers_pallas.3} parent=11 // pred_check
          %p405 = pneg %p202
        $region34: #{transformer_layers_pallas.3} parent=11 // pred_check_branch
          %407 = sbr.rel (%p405) target = $region36
        $region35: #{transformer_layers_pallas.3} parent=11 // pred_region
          _
        $region36: #{transformer_layers_pallas.3} parent=11 // pred_fallthru
          _
        // Predicated region
        $region37: #{transformer_layers_pallas.3} parent=11 // pred_check
          %p408 = pneg %p223
        $region38: #{transformer_layers_pallas.3} parent=11 // pred_check_branch
          %410 = sbr.rel (%p408) target = $region40
        $region39: #{transformer_layers_pallas.3} parent=11 // pred_region
          _
        $region40: #{transformer_layers_pallas.3} parent=11 // pred_fallthru
          _
        // Predicated region
        $region41: #{transformer_layers_pallas.3} parent=11 // pred_check
          %p411 = pneg %p244
        $region42: #{transformer_layers_pallas.3} parent=11 // pred_check_branch
          %413 = sbr.rel (%p411) target = $region44
        $region43: #{transformer_layers_pallas.3} parent=11 // pred_region
          _
        $region44: #{transformer_layers_pallas.3} parent=11 // pred_fallthru
          _
        // Predicated region
        $region45: #{transformer_layers_pallas.3} parent=11 // pred_check
          %p414 = pneg %p265
        $region46: #{transformer_layers_pallas.3} parent=11 // pred_check_branch
          %416 = sbr.rel (%p414) target = $region48
        $region47: #{transformer_layers_pallas.3} parent=11 // pred_region
          _
        $region48: #{transformer_layers_pallas.3} parent=11 // pred_fallthru
          _
        // Predicated region
        $region49: #{transformer_layers_pallas.3} parent=11 // pred_check
          %p417 = pneg %p286
        $region50: #{transformer_layers_pallas.3} parent=11 // pred_check_branch
          %419 = sbr.rel (%p417) target = $region52
        $region51: #{transformer_layers_pallas.3} parent=11 // pred_region
          _
        $region52: #{transformer_layers_pallas.3} parent=11 // pred_fallthru
          _
        // Predicated region
        $region53: #{transformer_layers_pallas.3} parent=11 // pred_check
          %p420 = pneg %p307
        $region54: #{transformer_layers_pallas.3} parent=11 // pred_check_branch
          %422 = sbr.rel (%p420) target = $region56
        $region55: #{transformer_layers_pallas.3} parent=11 // pred_region
          _
        $region56: #{transformer_layers_pallas.3} parent=11 // pred_fallthru
          _
        // Predicated region
        $region57: #{transformer_layers_pallas.3} parent=11 // pred_check
          %p423 = pneg %p328
        $region58: #{transformer_layers_pallas.3} parent=11 // pred_check_branch
          %425 = sbr.rel (%p423) target = $region60
        $region59: #{transformer_layers_pallas.3} parent=11 // pred_region
          _
        $region60: #{transformer_layers_pallas.3} parent=11 // pred_fallthru
          _
        // Predicated region
        $region61: #{transformer_layers_pallas.3} parent=11 // pred_check
          %p426 = pneg %p349
        $region62: #{transformer_layers_pallas.3} parent=11 // pred_check_branch
          %428 = sbr.rel (%p426) target = $region64
        $region63: #{transformer_layers_pallas.3} parent=11 // pred_region
          _
        $region64: #{transformer_layers_pallas.3} parent=11 // pred_fallthru
          _
      $region12: #{transformer_layers_pallas.3} parent=5 // pred_fallthru
        _
      %p429 = scmp.lt.s32.totalorder %s24, 2
      // Predicated region
      $region65: #{transformer_layers_pallas.3} parent=5 // pred_check
        %p430 = pneg %p429
      $region66: #{transformer_layers_pallas.3} parent=5 // pred_check_branch
        %432 = sbr.rel (%p430) target = $region68
      $region67: #{transformer_layers_pallas.3} parent=5 // pred_region
        // Predicated region
        $region69: #{transformer_layers_pallas.3} parent=67 // pred_check
          %p433 = pneg %p44
        $region70: #{transformer_layers_pallas.3} parent=67 // pred_check_branch
          %435 = sbr.rel (%p433) target = $region72
        $region71: #{transformer_layers_pallas.3} parent=67 // pred_region
          %p436 = scmp.lt.s32.totalorder %s24, 1
          %s437 = scalar_select %p436, %s24, 1
          %s438 = smul.addr %s437, 4
          %s439 = scalar_lea.vmem %s0, %s438
        $region72: #{transformer_layers_pallas.3} parent=67 // pred_fallthru
          _
        // Predicated region
        $region73: #{transformer_layers_pallas.3} parent=67 // pred_check
          %p440 = pneg %p70
        $region74: #{transformer_layers_pallas.3} parent=67 // pred_check_branch
          %442 = sbr.rel (%p440) target = $region76
        $region75: #{transformer_layers_pallas.3} parent=67 // pred_region
          %p443 = scmp.lt.s32.totalorder %s24, 1
          %s444 = scalar_select %p443, %s24, 1
          %s445 = scalar_lea.vmem %s1, %s444
        $region76: #{transformer_layers_pallas.3} parent=67 // pred_fallthru
          _
      $region68: #{transformer_layers_pallas.3} parent=5 // pred_fallthru
        _
      %p446 = scmp.le.s32.totalorder 1, %s24
      %p447 = scmp.lt.s32.totalorder %s24, 3
      %p448 = pnand %p446, %p447
      %p449 = pneg %p448
      // Predicated region
      $region77: #{transformer_layers_pallas.3} parent=5 // pred_check
        _
      $region78: #{transformer_layers_pallas.3} parent=5 // pred_check_branch
        %451 = sbr.rel (%p448) target = $region80
      $region79: #{transformer_layers_pallas.3} parent=5 // pred_region
        %s452 = ssub.s32 %s24, 1
        %p453 = scmp.lt.s32.totalorder %s29, 1
        %s454 = scalar_select %p453, %s29, 1
        %s455 = smul.addr %s454, 4
        %s456 = scalar_lea.vmem %s0, %s455
        %p457 = pneg %p50
        %p458 = pneg %p47
        %p459 = scmp.lt.s32.totalorder %s29, 1
        %s460 = scalar_select %p459, %s29, 1
        %s461 = scalar_lea.vmem %s1, %s460
        %p462 = pneg %p76
        %p463 = pneg %p73
        %p464 = pneg %p97
        %p465 = pneg %p94
        %p466 = pneg %p118
        %p467 = pneg %p115
        %p468 = pneg %p139
        %p469 = pneg %p136
        %p470 = pneg %p160
        %p471 = pneg %p157
        %p472 = pneg %p181
        %p473 = pneg %p178
        %p474 = pneg %p202
        %p475 = pneg %p199
        %p476 = pneg %p223
        %p477 = pneg %p220
        %p478 = pneg %p244
        %p479 = pneg %p241
        %p480 = pneg %p265
        %p481 = pneg %p262
        %p482 = pneg %p286
        %p483 = pneg %p283
        %p484 = pneg %p307
        %p485 = pneg %p304
        %p486 = pneg %p328
        %p487 = pneg %p325
        %p488 = pneg %p349
        %p489 = pneg %p346
        %p490 = pneg %p375
        %p491 = pneg %p372
        %s492 = sand.u32 %s362, 1
        %s493 = scalar_lea.sflag [#allocation3], %s492
        %s494 = sand.u32 %s362, 1
        %s495 = smul.addr %s494, 8
        %s496 = scalar_lea.vmem [#allocation2], %s495
        %p497 = scmp.lt.s32.totalorder %s29, 1
        %s498 = scalar_select %p497, %s29, 1
        %s499 = smul.addr %s498, 4
        %s500 = scalar_lea.vmem %s0, %s499
        %p501 = scmp.lt.s32.totalorder %s29, 1
        %s502 = scalar_select %p501, %s29, 1
        %s503 = scalar_lea.vmem %s1, %s502
        %v505 = vld [vmem:[%s500] sm:$0xf]
        %v506 = vunpack.c.l.bf16 %v505
        %v507 = vld [vmem:[%s2] sm:$0xf]
        %v508 = vld [vmem:[%s2 + $0x4] sm:$0xf]
        %v509 = vld [vmem:[%s2 + $0x8] sm:$0xf]
        %v510 = vld [vmem:[%s2 + $0xc] sm:$0xf]
        %v511 = vld [vmem:[%s2 + $0x10] sm:$0xf]
        %v512 = vld [vmem:[%s2 + $0x14] sm:$0xf]
        %v513 = vld [vmem:[%s2 + $0x18] sm:$0xf]
        %v514 = vld [vmem:[%s2 + $0x1c] sm:$0xf]
        %v515 = vld [vmem:[%s2 + $0x20] sm:$0xf]
        %v516 = vld [vmem:[%s2 + $0x24] sm:$0xf]
        %v517 = vld [vmem:[%s2 + $0x28] sm:$0xf]
        %v518 = vld [vmem:[%s2 + $0x2c] sm:$0xf]
        %v519 = vld [vmem:[%s2 + $0x30] sm:$0xf]
        %v520 = vld [vmem:[%s2 + $0x34] sm:$0xf]
        %v521 = vld [vmem:[%s2 + $0x38] sm:$0xf]
        %v522 = vld [vmem:[%s2 + $0x3c] sm:$0xf]
        %v527 = vunpack.c.l.b16 %v507
        %v528 = vunpack.c.l.b16 %v508
        %v529 = vunpack.c.l.b16 %v509
        %v530 = vunpack.c.l.b16 %v510
        %v531 = vpack.c.b16 %v528, %v527
        %v532 = vpack.c.b16 %v530, %v529
        %vm535 = vcmask 261120
        %v537 = vsel %vm535, %v505, 0
        %539 = vmatprep.subr.bf16.mxu0 0
        %540 = vmatpush1.bf16.msra.mxu0 %v531
        %541 = vmatprep.subr.bf16.mxu0 0
        %542 = vmatpush1.bf16.msra.mxu0 %v532
        %543 = vmatprep.subr.bf16.mxu0 0
        %544 = vmatpush1.bf16.msra.mxu0 0
        %545 = vmatprep.subr.bf16.mxu0 0
        %546 = vmatpush1.bf16.msra.mxu0 0
        %547 = vmatprep.subr.bf16.mxu0 0
        %548 = vmatpush1.bf16.msra.mxu0 0
        %549 = vmatprep.subr.bf16.mxu0 0
        %550 = vmatpush1.bf16.msra.mxu0 0
        %551 = vmatprep.subr.bf16.mxu0 0
        %552 = vmatpush1.bf16.msra.mxu0 0
        %553 = vmatprep.subr.bf16.mxu0 0
        %554 = vmatpush1.bf16.msra.mxu0 0
        %555 = vmatprep.subr.bf16.mxu0 0
        %556 = vmatpush1.bf16.msra.mxu0 0
        %557 = vmatprep.subr.bf16.mxu0 0
        %558 = vmatpush1.bf16.msra.mxu0 0
        %559 = vmatprep.subr.bf16.mxu0 0
        %560 = vmatpush1.bf16.msra.mxu0 0
        %561 = vmatprep.subr.bf16.mxu0 0
        %562 = vmatpush1.bf16.msra.mxu0 0
        %563 = vmatprep.subr.bf16.mxu0 0
        %564 = vmatpush1.bf16.msra.mxu0 0
        %565 = vmatprep.subr.bf16.mxu0 0
        %566 = vmatpush1.bf16.msra.mxu0 0
        %567 = vmatprep.subr.bf16.mxu0 0
        %568 = vmatpush1.bf16.msra.mxu0 0
        %569 = vmatprep.subr.bf16.mxu0 0
        %570 = vmatpush1.bf16.msra.mxu0 0
        %571 = vmatprep.mubr.bf16.mxu0 0
        %572 = vmatmul.mubr.bf16.gmra.mrb[0].mxu0 %v537
        %v573 = vpop.f32.mrb[0].mxu0
        %v574 = vadd.f32 0.0, %v573
        %v575 = vpop.f32.mrb[0].mxu0
        %v576 = vpop.f32.mrb[0].mxu0
        %v577 = vpop.f32.mrb[0].mxu0
        %578 = vdwg.mxu0
        %v583 = vunpack.c.l.b16 %v511
        %v584 = vunpack.c.l.b16 %v512
        %v585 = vunpack.c.l.b16 %v513
        %v586 = vunpack.c.l.b16 %v514
        %v587 = vpack.c.b16 %v584, %v583
        %v588 = vpack.c.b16 %v586, %v585
        %591 = vmatprep.subr.bf16.mxu0 0
        %592 = vmatpush1.bf16.msra.mxu0 %v587
        %593 = vmatprep.subr.bf16.mxu0 0
        %594 = vmatpush1.bf16.msra.mxu0 %v588
        %595 = vmatprep.subr.bf16.mxu0 0
        %596 = vmatpush1.bf16.msra.mxu0 0
        %597 = vmatprep.subr.bf16.mxu0 0
        %598 = vmatpush1.bf16.msra.mxu0 0
        %599 = vmatprep.subr.bf16.mxu0 0
        %600 = vmatpush1.bf16.msra.mxu0 0
        %601 = vmatprep.subr.bf16.mxu0 0
        %602 = vmatpush1.bf16.msra.mxu0 0
        %603 = vmatprep.subr.bf16.mxu0 0
        %604 = vmatpush1.bf16.msra.mxu0 0
        %605 = vmatprep.subr.bf16.mxu0 0
        %606 = vmatpush1.bf16.msra.mxu0 0
        %607 = vmatprep.subr.bf16.mxu0 0
        %608 = vmatpush1.bf16.msra.mxu0 0
        %609 = vmatprep.subr.bf16.mxu0 0
        %610 = vmatpush1.bf16.msra.mxu0 0
        %611 = vmatprep.subr.bf16.mxu0 0
        %612 = vmatpush1.bf16.msra.mxu0 0
        %613 = vmatprep.subr.bf16.mxu0 0
        %614 = vmatpush1.bf16.msra.mxu0 0
        %615 = vmatprep.subr.bf16.mxu0 0
        %616 = vmatpush1.bf16.msra.mxu0 0
        %617 = vmatprep.subr.bf16.mxu0 0
        %618 = vmatpush1.bf16.msra.mxu0 0
        %619 = vmatprep.subr.bf16.mxu0 0
        %620 = vmatpush1.bf16.msra.mxu0 0
        %621 = vmatprep.subr.bf16.mxu0 0
        %622 = vmatpush1.bf16.msra.mxu0 0
        %623 = vmatprep.mubr.bf16.mxu0 0
        %624 = vmatmul.mubr.bf16.gmra.mrb[0].mxu0 %v537
        %v625 = vpop.f32.mrb[0].mxu0
        %v626 = vadd.f32 0.0, %v625
        %v627 = vpop.f32.mrb[0].mxu0
        %v628 = vpop.f32.mrb[0].mxu0
        %v629 = vpop.f32.mrb[0].mxu0
        %630 = vdwg.mxu0
        %v635 = vunpack.c.l.b16 %v515
        %v636 = vunpack.c.l.b16 %v516
        %v637 = vunpack.c.l.b16 %v517
        %v638 = vunpack.c.l.b16 %v518
        %v639 = vpack.c.b16 %v636, %v635
        %v640 = vpack.c.b16 %v638, %v637
        %643 = vmatprep.subr.bf16.mxu0 0
        %644 = vmatpush1.bf16.msra.mxu0 %v639
        %645 = vmatprep.subr.bf16.mxu0 0
        %646 = vmatpush1.bf16.msra.mxu0 %v640
        %647 = vmatprep.subr.bf16.mxu0 0
        %648 = vmatpush1.bf16.msra.mxu0 0
        %649 = vmatprep.subr.bf16.mxu0 0
        %650 = vmatpush1.bf16.msra.mxu0 0
        %651 = vmatprep.subr.bf16.mxu0 0
        %652 = vmatpush1.bf16.msra.mxu0 0
        %653 = vmatprep.subr.bf16.mxu0 0
        %654 = vmatpush1.bf16.msra.mxu0 0
        %655 = vmatprep.subr.bf16.mxu0 0
        %656 = vmatpush1.bf16.msra.mxu0 0
        %657 = vmatprep.subr.bf16.mxu0 0
        %658 = vmatpush1.bf16.msra.mxu0 0
        %659 = vmatprep.subr.bf16.mxu0 0
        %660 = vmatpush1.bf16.msra.mxu0 0
        %661 = vmatprep.subr.bf16.mxu0 0
        %662 = vmatpush1.bf16.msra.mxu0 0
        %663 = vmatprep.subr.bf16.mxu0 0
        %664 = vmatpush1.bf16.msra.mxu0 0
        %665 = vmatprep.subr.bf16.mxu0 0
        %666 = vmatpush1.bf16.msra.mxu0 0
        %667 = vmatprep.subr.bf16.mxu0 0
        %668 = vmatpush1.bf16.msra.mxu0 0
        %669 = vmatprep.subr.bf16.mxu0 0
        %670 = vmatpush1.bf16.msra.mxu0 0
        %671 = vmatprep.subr.bf16.mxu0 0
        %672 = vmatpush1.bf16.msra.mxu0 0
        %673 = vmatprep.subr.bf16.mxu0 0
        %674 = vmatpush1.bf16.msra.mxu0 0
        %675 = vmatprep.mubr.bf16.mxu0 0
        %676 = vmatmul.mubr.bf16.gmra.mrb[0].mxu0 %v537
        %v677 = vpop.f32.mrb[0].mxu0
        %v678 = vadd.f32 0.0, %v677
        %v679 = vpop.f32.mrb[0].mxu0
        %v680 = vpop.f32.mrb[0].mxu0
        %v681 = vpop.f32.mrb[0].mxu0
        %682 = vdwg.mxu0
        %v687 = vunpack.c.l.b16 %v519
        %v688 = vunpack.c.l.b16 %v520
        %v689 = vunpack.c.l.b16 %v521
        %v690 = vunpack.c.l.b16 %v522
        %v691 = vpack.c.b16 %v688, %v687
        %v692 = vpack.c.b16 %v690, %v689
        %695 = vmatprep.subr.bf16.mxu0 0
        %696 = vmatpush1.bf16.msra.mxu0 %v691
        %697 = vmatprep.subr.bf16.mxu0 0
        %698 = vmatpush1.bf16.msra.mxu0 %v692
        %699 = vmatprep.subr.bf16.mxu0 0
        %700 = vmatpush1.bf16.msra.mxu0 0
        %701 = vmatprep.subr.bf16.mxu0 0
        %702 = vmatpush1.bf16.msra.mxu0 0
        %703 = vmatprep.subr.bf16.mxu0 0
        %704 = vmatpush1.bf16.msra.mxu0 0
        %705 = vmatprep.subr.bf16.mxu0 0
        %706 = vmatpush1.bf16.msra.mxu0 0
        %707 = vmatprep.subr.bf16.mxu0 0
        %708 = vmatpush1.bf16.msra.mxu0 0
        %709 = vmatprep.subr.bf16.mxu0 0
        %710 = vmatpush1.bf16.msra.mxu0 0
        %711 = vmatprep.subr.bf16.mxu0 0
        %712 = vmatpush1.bf16.msra.mxu0 0
        %713 = vmatprep.subr.bf16.mxu0 0
        %714 = vmatpush1.bf16.msra.mxu0 0
        %715 = vmatprep.subr.bf16.mxu0 0
        %716 = vmatpush1.bf16.msra.mxu0 0
        %717 = vmatprep.subr.bf16.mxu0 0
        %718 = vmatpush1.bf16.msra.mxu0 0
        %719 = vmatprep.subr.bf16.mxu0 0
        %720 = vmatpush1.bf16.msra.mxu0 0
        %721 = vmatprep.subr.bf16.mxu0 0
        %722 = vmatpush1.bf16.msra.mxu0 0
        %723 = vmatprep.subr.bf16.mxu0 0
        %724 = vmatpush1.bf16.msra.mxu0 0
        %725 = vmatprep.subr.bf16.mxu0 0
        %726 = vmatpush1.bf16.msra.mxu0 0
        %727 = vmatprep.mubr.bf16.mxu0 0
        %728 = vmatmul.mubr.bf16.gmra.mrb[0].mxu0 %v537
        %v729 = vpop.f32.mrb[0].mxu0
        %v730 = vadd.f32 0.0, %v729
        %v731 = vpop.f32.mrb[0].mxu0
        %v732 = vpop.f32.mrb[0].mxu0
        %v733 = vpop.f32.mrb[0].mxu0
        %734 = vdwg.mxu0
        %v735 = vld [vmem:[%s3] sm:$0xf]
        %v736 = vld [vmem:[%s3 + $0x4] sm:$0xf]
        %v737 = vld [vmem:[%s3 + $0x8] sm:$0xf]
        %v738 = vld [vmem:[%s3 + $0xc] sm:$0xf]
        %v739 = vld [vmem:[%s3 + $0x10] sm:$0xf]
        %v740 = vld [vmem:[%s3 + $0x14] sm:$0xf]
        %v741 = vld [vmem:[%s3 + $0x18] sm:$0xf]
        %v742 = vld [vmem:[%s3 + $0x1c] sm:$0xf]
        %v743 = vld [vmem:[%s3 + $0x20] sm:$0xf]
        %v744 = vld [vmem:[%s3 + $0x24] sm:$0xf]
        %v745 = vld [vmem:[%s3 + $0x28] sm:$0xf]
        %v746 = vld [vmem:[%s3 + $0x2c] sm:$0xf]
        %v747 = vld [vmem:[%s3 + $0x30] sm:$0xf]
        %v748 = vld [vmem:[%s3 + $0x34] sm:$0xf]
        %v749 = vld [vmem:[%s3 + $0x38] sm:$0xf]
        %v750 = vld [vmem:[%s3 + $0x3c] sm:$0xf]
        %v755 = vunpack.c.l.b16 %v735
        %v756 = vunpack.c.l.b16 %v736
        %v757 = vunpack.c.l.b16 %v737
        %v758 = vunpack.c.l.b16 %v738
        %v759 = vpack.c.b16 %v756, %v755
        %v760 = vpack.c.b16 %v758, %v757
        %763 = vmatprep.subr.bf16.mxu0 0
        %764 = vmatpush1.bf16.msra.mxu0 %v759
        %765 = vmatprep.subr.bf16.mxu0 0
        %766 = vmatpush1.bf16.msra.mxu0 %v760
        %767 = vmatprep.subr.bf16.mxu0 0
        %768 = vmatpush1.bf16.msra.mxu0 0
        %769 = vmatprep.subr.bf16.mxu0 0
        %770 = vmatpush1.bf16.msra.mxu0 0
        %771 = vmatprep.subr.bf16.mxu0 0
        %772 = vmatpush1.bf16.msra.mxu0 0
        %773 = vmatprep.subr.bf16.mxu0 0
        %774 = vmatpush1.bf16.msra.mxu0 0
        %775 = vmatprep.subr.bf16.mxu0 0
        %776 = vmatpush1.bf16.msra.mxu0 0
        %777 = vmatprep.subr.bf16.mxu0 0
        %778 = vmatpush1.bf16.msra.mxu0 0
        %779 = vmatprep.subr.bf16.mxu0 0
        %780 = vmatpush1.bf16.msra.mxu0 0
        %781 = vmatprep.subr.bf16.mxu0 0
        %782 = vmatpush1.bf16.msra.mxu0 0
        %783 = vmatprep.subr.bf16.mxu0 0
        %784 = vmatpush1.bf16.msra.mxu0 0
        %785 = vmatprep.subr.bf16.mxu0 0
        %786 = vmatpush1.bf16.msra.mxu0 0
        %787 = vmatprep.subr.bf16.mxu0 0
        %788 = vmatpush1.bf16.msra.mxu0 0
        %789 = vmatprep.subr.bf16.mxu0 0
        %790 = vmatpush1.bf16.msra.mxu0 0
        %791 = vmatprep.subr.bf16.mxu0 0
        %792 = vmatpush1.bf16.msra.mxu0 0
        %793 = vmatprep.subr.bf16.mxu0 0
        %794 = vmatpush1.bf16.msra.mxu0 0
        %795 = vmatprep.mubr.bf16.mxu0 0
        %796 = vmatmul.mubr.bf16.gmra.mrb[0].mxu0 %v537
        %v797 = vpop.f32.mrb[0].mxu0
        %v798 = vadd.f32 0.0, %v797
        %v799 = vpop.f32.mrb[0].mxu0
        %v800 = vpop.f32.mrb[0].mxu0
        %v801 = vpop.f32.mrb[0].mxu0
        %802 = vdwg.mxu0
        %v807 = vunpack.c.l.b16 %v739
        %v808 = vunpack.c.l.b16 %v740
        %v809 = vunpack.c.l.b16 %v741
        %v810 = vunpack.c.l.b16 %v742
        %v811 = vpack.c.b16 %v808, %v807
        %v812 = vpack.c.b16 %v810, %v809
        %815 = vmatprep.subr.bf16.mxu0 0
        %816 = vmatpush1.bf16.msra.mxu0 %v811
        %817 = vmatprep.subr.bf16.mxu0 0
        %818 = vmatpush1.bf16.msra.mxu0 %v812
        %819 = vmatprep.subr.bf16.mxu0 0
        %820 = vmatpush1.bf16.msra.mxu0 0
        %821 = vmatprep.subr.bf16.mxu0 0
        %822 = vmatpush1.bf16.msra.mxu0 0
        %823 = vmatprep.subr.bf16.mxu0 0
        %824 = vmatpush1.bf16.msra.mxu0 0
        %825 = vmatprep.subr.bf16.mxu0 0
        %826 = vmatpush1.bf16.msra.mxu0 0
        %827 = vmatprep.subr.bf16.mxu0 0
        %828 = vmatpush1.bf16.msra.mxu0 0
        %829 = vmatprep.subr.bf16.mxu0 0
        %830 = vmatpush1.bf16.msra.mxu0 0
        %831 = vmatprep.subr.bf16.mxu0 0
        %832 = vmatpush1.bf16.msra.mxu0 0
        %833 = vmatprep.subr.bf16.mxu0 0
        %834 = vmatpush1.bf16.msra.mxu0 0
        %835 = vmatprep.subr.bf16.mxu0 0
        %836 = vmatpush1.bf16.msra.mxu0 0
        %837 = vmatprep.subr.bf16.mxu0 0
        %838 = vmatpush1.bf16.msra.mxu0 0
        %839 = vmatprep.subr.bf16.mxu0 0
        %840 = vmatpush1.bf16.msra.mxu0 0
        %841 = vmatprep.subr.bf16.mxu0 0
        %842 = vmatpush1.bf16.msra.mxu0 0
        %843 = vmatprep.subr.bf16.mxu0 0
        %844 = vmatpush1.bf16.msra.mxu0 0
        %845 = vmatprep.subr.bf16.mxu0 0
        %846 = vmatpush1.bf16.msra.mxu0 0
        %847 = vmatprep.mubr.bf16.mxu0 0
        %848 = vmatmul.mubr.bf16.gmra.mrb[0].mxu0 %v537
        %v849 = vpop.f32.mrb[0].mxu0
        %v850 = vadd.f32 0.0, %v849
        %v851 = vpop.f32.mrb[0].mxu0
        %v852 = vpop.f32.mrb[0].mxu0
        %v853 = vpop.f32.mrb[0].mxu0
        %854 = vdwg.mxu0
        %v859 = vunpack.c.l.b16 %v743
        %v860 = vunpack.c.l.b16 %v744
        %v861 = vunpack.c.l.b16 %v745
        %v862 = vunpack.c.l.b16 %v746
        %v863 = vpack.c.b16 %v860, %v859
        %v864 = vpack.c.b16 %v862, %v861
        %867 = vmatprep.subr.bf16.mxu0 0
        %868 = vmatpush1.bf16.msra.mxu0 %v863
        %869 = vmatprep.subr.bf16.mxu0 0
        %870 = vmatpush1.bf16.msra.mxu0 %v864
        %871 = vmatprep.subr.bf16.mxu0 0
        %872 = vmatpush1.bf16.msra.mxu0 0
        %873 = vmatprep.subr.bf16.mxu0 0
        %874 = vmatpush1.bf16.msra.mxu0 0
        %875 = vmatprep.subr.bf16.mxu0 0
        %876 = vmatpush1.bf16.msra.mxu0 0
        %877 = vmatprep.subr.bf16.mxu0 0
        %878 = vmatpush1.bf16.msra.mxu0 0
        %879 = vmatprep.subr.bf16.mxu0 0
        %880 = vmatpush1.bf16.msra.mxu0 0
        %881 = vmatprep.subr.bf16.mxu0 0
        %882 = vmatpush1.bf16.msra.mxu0 0
        %883 = vmatprep.subr.bf16.mxu0 0
        %884 = vmatpush1.bf16.msra.mxu0 0
        %885 = vmatprep.subr.bf16.mxu0 0
        %886 = vmatpush1.bf16.msra.mxu0 0
        %887 = vmatprep.subr.bf16.mxu0 0
        %888 = vmatpush1.bf16.msra.mxu0 0
        %889 = vmatprep.subr.bf16.mxu0 0
        %890 = vmatpush1.bf16.msra.mxu0 0
        %891 = vmatprep.subr.bf16.mxu0 0
        %892 = vmatpush1.bf16.msra.mxu0 0
        %893 = vmatprep.subr.bf16.mxu0 0
        %894 = vmatpush1.bf16.msra.mxu0 0
        %895 = vmatprep.subr.bf16.mxu0 0
        %896 = vmatpush1.bf16.msra.mxu0 0
        %897 = vmatprep.subr.bf16.mxu0 0
        %898 = vmatpush1.bf16.msra.mxu0 0
        %899 = vmatprep.mubr.bf16.mxu0 0
        %900 = vmatmul.mubr.bf16.gmra.mrb[0].mxu0 %v537
        %v901 = vpop.f32.mrb[0].mxu0
        %v902 = vadd.f32 0.0, %v901
        %v903 = vpop.f32.mrb[0].mxu0
        %v904 = vpop.f32.mrb[0].mxu0
        %v905 = vpop.f32.mrb[0].mxu0
        %906 = vdwg.mxu0
        %v911 = vunpack.c.l.b16 %v747
        %v912 = vunpack.c.l.b16 %v748
        %v913 = vunpack.c.l.b16 %v749
        %v914 = vunpack.c.l.b16 %v750
        %v915 = vpack.c.b16 %v912, %v911
        %v916 = vpack.c.b16 %v914, %v913
        %919 = vmatprep.subr.bf16.mxu0 0
        %920 = vmatpush1.bf16.msra.mxu0 %v915
        %921 = vmatprep.subr.bf16.mxu0 0
        %922 = vmatpush1.bf16.msra.mxu0 %v916
        %923 = vmatprep.subr.bf16.mxu0 0
        %924 = vmatpush1.bf16.msra.mxu0 0
        %925 = vmatprep.subr.bf16.mxu0 0
        %926 = vmatpush1.bf16.msra.mxu0 0
        %927 = vmatprep.subr.bf16.mxu0 0
        %928 = vmatpush1.bf16.msra.mxu0 0
        %929 = vmatprep.subr.bf16.mxu0 0
        %930 = vmatpush1.bf16.msra.mxu0 0
        %931 = vmatprep.subr.bf16.mxu0 0
        %932 = vmatpush1.bf16.msra.mxu0 0
        %933 = vmatprep.subr.bf16.mxu0 0
        %934 = vmatpush1.bf16.msra.mxu0 0
        %935 = vmatprep.subr.bf16.mxu0 0
        %936 = vmatpush1.bf16.msra.mxu0 0
        %937 = vmatprep.subr.bf16.mxu0 0
        %938 = vmatpush1.bf16.msra.mxu0 0
        %939 = vmatprep.subr.bf16.mxu0 0
        %940 = vmatpush1.bf16.msra.mxu0 0
        %941 = vmatprep.subr.bf16.mxu0 0
        %942 = vmatpush1.bf16.msra.mxu0 0
        %943 = vmatprep.subr.bf16.mxu0 0
        %944 = vmatpush1.bf16.msra.mxu0 0
        %945 = vmatprep.subr.bf16.mxu0 0
        %946 = vmatpush1.bf16.msra.mxu0 0
        %947 = vmatprep.subr.bf16.mxu0 0
        %948 = vmatpush1.bf16.msra.mxu0 0
        %949 = vmatprep.subr.bf16.mxu0 0
        %950 = vmatpush1.bf16.msra.mxu0 0
        %951 = vmatprep.mubr.bf16.mxu0 0
        %952 = vmatmul.mubr.bf16.gmra.mrb[0].mxu0 %v537
        %v953 = vpop.f32.mrb[0].mxu0
        %v954 = vadd.f32 0.0, %v953
        %v955 = vpop.f32.mrb[0].mxu0
        %v956 = vpop.f32.mrb[0].mxu0
        %v957 = vpop.f32.mrb[0].mxu0
        %958 = vdwg.mxu0
        %v959 = vld [vmem:[%s4] sm:$0xf]
        %v960 = vld [vmem:[%s4 + $0x4] sm:$0xf]
        %v961 = vld [vmem:[%s4 + $0x8] sm:$0xf]
        %v962 = vld [vmem:[%s4 + $0xc] sm:$0xf]
        %v963 = vld [vmem:[%s4 + $0x10] sm:$0xf]
        %v964 = vld [vmem:[%s4 + $0x14] sm:$0xf]
        %v965 = vld [vmem:[%s4 + $0x18] sm:$0xf]
        %v966 = vld [vmem:[%s4 + $0x1c] sm:$0xf]
        %v967 = vld [vmem:[%s4 + $0x20] sm:$0xf]
        %v968 = vld [vmem:[%s4 + $0x24] sm:$0xf]
        %v969 = vld [vmem:[%s4 + $0x28] sm:$0xf]
        %v970 = vld [vmem:[%s4 + $0x2c] sm:$0xf]
        %v971 = vld [vmem:[%s4 + $0x30] sm:$0xf]
        %v972 = vld [vmem:[%s4 + $0x34] sm:$0xf]
        %v973 = vld [vmem:[%s4 + $0x38] sm:$0xf]
        %v974 = vld [vmem:[%s4 + $0x3c] sm:$0xf]
        %v979 = vunpack.c.l.b16 %v959
        %v980 = vunpack.c.l.b16 %v960
        %v981 = vunpack.c.l.b16 %v961
        %v982 = vunpack.c.l.b16 %v962
        %v983 = vpack.c.b16 %v980, %v979
        %v984 = vpack.c.b16 %v982, %v981
        %987 = vmatprep.subr.bf16.mxu0 0
        %988 = vmatpush1.bf16.msra.mxu0 %v983
        %989 = vmatprep.subr.bf16.mxu0 0
        %990 = vmatpush1.bf16.msra.mxu0 %v984
        %991 = vmatprep.subr.bf16.mxu0 0
        %992 = vmatpush1.bf16.msra.mxu0 0
        %993 = vmatprep.subr.bf16.mxu0 0
        %994 = vmatpush1.bf16.msra.mxu0 0
        %995 = vmatprep.subr.bf16.mxu0 0
        %996 = vmatpush1.bf16.msra.mxu0 0
        %997 = vmatprep.subr.bf16.mxu0 0
        %998 = vmatpush1.bf16.msra.mxu0 0
        %999 = vmatprep.subr.bf16.mxu0 0
        %1000 = vmatpush1.bf16.msra.mxu0 0
        %1001 = vmatprep.subr.bf16.mxu0 0
        %1002 = vmatpush1.bf16.msra.mxu0 0
        %1003 = vmatprep.subr.bf16.mxu0 0
        %1004 = vmatpush1.bf16.msra.mxu0 0
        %1005 = vmatprep.subr.bf16.mxu0 0
        %1006 = vmatpush1.bf16.msra.mxu0 0
        %1007 = vmatprep.subr.bf16.mxu0 0
        %1008 = vmatpush1.bf16.msra.mxu0 0
        %1009 = vmatprep.subr.bf16.mxu0 0
        %1010 = vmatpush1.bf16.msra.mxu0 0
        %1011 = vmatprep.subr.bf16.mxu0 0
        %1012 = vmatpush1.bf16.msra.mxu0 0
        %1013 = vmatprep.subr.bf16.mxu0 0
        %1014 = vmatpush1.bf16.msra.mxu0 0
        %1015 = vmatprep.subr.bf16.mxu0 0
        %1016 = vmatpush1.bf16.msra.mxu0 0
        %1017 = vmatprep.subr.bf16.mxu0 0
        %1018 = vmatpush1.bf16.msra.mxu0 0
        %1019 = vmatprep.mubr.bf16.mxu0 0
        %1020 = vmatmul.mubr.bf16.gmra.mrb[0].mxu0 %v537
        %v1021 = vpop.f32.mrb[0].mxu0
        %v1022 = vadd.f32 0.0, %v1021
        %v1023 = vpop.f32.mrb[0].mxu0
        %v1024 = vpop.f32.mrb[0].mxu0
        %v1025 = vpop.f32.mrb[0].mxu0
        %1026 = vdwg.mxu0
        %v1031 = vunpack.c.l.b16 %v963
        %v1032 = vunpack.c.l.b16 %v964
        %v1033 = vunpack.c.l.b16 %v965
        %v1034 = vunpack.c.l.b16 %v966
        %v1035 = vpack.c.b16 %v1032, %v1031
        %v1036 = vpack.c.b16 %v1034, %v1033
        %1039 = vmatprep.subr.bf16.mxu0 0
        %1040 = vmatpush1.bf16.msra.mxu0 %v1035
        %1041 = vmatprep.subr.bf16.mxu0 0
        %1042 = vmatpush1.bf16.msra.mxu0 %v1036
        %1043 = vmatprep.subr.bf16.mxu0 0
        %1044 = vmatpush1.bf16.msra.mxu0 0
        %1045 = vmatprep.subr.bf16.mxu0 0
        %1046 = vmatpush1.bf16.msra.mxu0 0
        %1047 = vmatprep.subr.bf16.mxu0 0
        %1048 = vmatpush1.bf16.msra.mxu0 0
        %1049 = vmatprep.subr.bf16.mxu0 0
        %1050 = vmatpush1.bf16.msra.mxu0 0
        %1051 = vmatprep.subr.bf16.mxu0 0
        %1052 = vmatpush1.bf16.msra.mxu0 0
        %1053 = vmatprep.subr.bf16.mxu0 0
        %1054 = vmatpush1.bf16.msra.mxu0 0
        %1055 = vmatprep.subr.bf16.mxu0 0
        %1056 = vmatpush1.bf16.msra.mxu0 0
        %1057 = vmatprep.subr.bf16.mxu0 0
        %1058 = vmatpush1.bf16.msra.mxu0 0
        %1059 = vmatprep.subr.bf16.mxu0 0
        %1060 = vmatpush1.bf16.msra.mxu0 0
        %1061 = vmatprep.subr.bf16.mxu0 0
        %1062 = vmatpush1.bf16.msra.mxu0 0
        %1063 = vmatprep.subr.bf16.mxu0 0
        %1064 = vmatpush1.bf16.msra.mxu0 0
        %1065 = vmatprep.subr.bf16.mxu0 0
        %1066 = vmatpush1.bf16.msra.mxu0 0
        %1067 = vmatprep.subr.bf16.mxu0 0
        %1068 = vmatpush1.bf16.msra.mxu0 0
        %1069 = vmatprep.subr.bf16.mxu0 0
        %1070 = vmatpush1.bf16.msra.mxu0 0
        %1071 = vmatprep.mubr.bf16.mxu0 0
        %1072 = vmatmul.mubr.bf16.gmra.mrb[0].mxu0 %v537
        %v1073 = vpop.f32.mrb[0].mxu0
        %v1074 = vadd.f32 0.0, %v1073
        %v1075 = vpop.f32.mrb[0].mxu0
        %v1076 = vpop.f32.mrb[0].mxu0
        %v1077 = vpop.f32.mrb[0].mxu0
        %1078 = vdwg.mxu0
        %v1083 = vunpack.c.l.b16 %v967
        %v1084 = vunpack.c.l.b16 %v968
        %v1085 = vunpack.c.l.b16 %v969
        %v1086 = vunpack.c.l.b16 %v970
        %v1087 = vpack.c.b16 %v1084, %v1083
        %v1088 = vpack.c.b16 %v1086, %v1085
        %1091 = vmatprep.subr.bf16.mxu0 0
        %1092 = vmatpush1.bf16.msra.mxu0 %v1087
        %1093 = vmatprep.subr.bf16.mxu0 0
        %1094 = vmatpush1.bf16.msra.mxu0 %v1088
        %1095 = vmatprep.subr.bf16.mxu0 0
        %1096 = vmatpush1.bf16.msra.mxu0 0
        %1097 = vmatprep.subr.bf16.mxu0 0
        %1098 = vmatpush1.bf16.msra.mxu0 0
        %1099 = vmatprep.subr.bf16.mxu0 0
        %1100 = vmatpush1.bf16.msra.mxu0 0
        %1101 = vmatprep.subr.bf16.mxu0 0
        %1102 = vmatpush1.bf16.msra.mxu0 0
        %1103 = vmatprep.subr.bf16.mxu0 0
        %1104 = vmatpush1.bf16.msra.mxu0 0
        %1105 = vmatprep.subr.bf16.mxu0 0
        %1106 = vmatpush1.bf16.msra.mxu0 0
        %1107 = vmatprep.subr.bf16.mxu0 0
        %1108 = vmatpush1.bf16.msra.mxu0 0
        %1109 = vmatprep.subr.bf16.mxu0 0
        %1110 = vmatpush1.bf16.msra.mxu0 0
        %1111 = vmatprep.subr.bf16.mxu0 0
        %1112 = vmatpush1.bf16.msra.mxu0 0
        %1113 = vmatprep.subr.bf16.mxu0 0
        %1114 = vmatpush1.bf16.msra.mxu0 0
        %1115 = vmatprep.subr.bf16.mxu0 0
        %1116 = vmatpush1.bf16.msra.mxu0 0
        %1117 = vmatprep.subr.bf16.mxu0 0
        %1118 = vmatpush1.bf16.msra.mxu0 0
        %1119 = vmatprep.subr.bf16.mxu0 0
        %1120 = vmatpush1.bf16.msra.mxu0 0
        %1121 = vmatprep.subr.bf16.mxu0 0
        %1122 = vmatpush1.bf16.msra.mxu0 0
        %1123 = vmatprep.mubr.bf16.mxu0 0
        %1124 = vmatmul.mubr.bf16.gmra.mrb[0].mxu0 %v537
        %v1125 = vpop.f32.mrb[0].mxu0
        %v1126 = vadd.f32 0.0, %v1125
        %v1127 = vpop.f32.mrb[0].mxu0
        %v1128 = vpop.f32.mrb[0].mxu0
        %v1129 = vpop.f32.mrb[0].mxu0
        %1130 = vdwg.mxu0
        %v1135 = vunpack.c.l.b16 %v971
        %v1136 = vunpack.c.l.b16 %v972
        %v1137 = vunpack.c.l.b16 %v973
        %v1138 = vunpack.c.l.b16 %v974
        %v1139 = vpack.c.b16 %v1136, %v1135
        %v1140 = vpack.c.b16 %v1138, %v1137
        %1143 = vmatprep.subr.bf16.mxu0 0
        %1144 = vmatpush1.bf16.msra.mxu0 %v1139
        %1145 = vmatprep.subr.bf16.mxu0 0
        %1146 = vmatpush1.bf16.msra.mxu0 %v1140
        %1147 = vmatprep.subr.bf16.mxu0 0
        %1148 = vmatpush1.bf16.msra.mxu0 0
        %1149 = vmatprep.subr.bf16.mxu0 0
        %1150 = vmatpush1.bf16.msra.mxu0 0
        %1151 = vmatprep.subr.bf16.mxu0 0
        %1152 = vmatpush1.bf16.msra.mxu0 0
        %1153 = vmatprep.subr.bf16.mxu0 0
        %1154 = vmatpush1.bf16.msra.mxu0 0
        %1155 = vmatprep.subr.bf16.mxu0 0
        %1156 = vmatpush1.bf16.msra.mxu0 0
        %1157 = vmatprep.subr.bf16.mxu0 0
        %1158 = vmatpush1.bf16.msra.mxu0 0
        %1159 = vmatprep.subr.bf16.mxu0 0
        %1160 = vmatpush1.bf16.msra.mxu0 0
        %1161 = vmatprep.subr.bf16.mxu0 0
        %1162 = vmatpush1.bf16.msra.mxu0 0
        %1163 = vmatprep.subr.bf16.mxu0 0
        %1164 = vmatpush1.bf16.msra.mxu0 0
        %1165 = vmatprep.subr.bf16.mxu0 0
        %1166 = vmatpush1.bf16.msra.mxu0 0
        %1167 = vmatprep.subr.bf16.mxu0 0
        %1168 = vmatpush1.bf16.msra.mxu0 0
        %1169 = vmatprep.subr.bf16.mxu0 0
        %1170 = vmatpush1.bf16.msra.mxu0 0
        %1171 = vmatprep.subr.bf16.mxu0 0
        %1172 = vmatpush1.bf16.msra.mxu0 0
        %1173 = vmatprep.subr.bf16.mxu0 0
        %1174 = vmatpush1.bf16.msra.mxu0 0
        %1175 = vmatprep.mubr.bf16.mxu0 0
        %1176 = vmatmul.mubr.bf16.gmra.mrb[0].mxu0 %v537
        %v1177 = vpop.f32.mrb[0].mxu0
        %v1178 = vadd.f32 0.0, %v1177
        %v1179 = vpop.f32.mrb[0].mxu0
        %v1180 = vpop.f32.mrb[0].mxu0
        %v1181 = vpop.f32.mrb[0].mxu0
        %1182 = vdwg.mxu0
        %v1183 = vpack.c.bf16 %v574, %v574
        %v1184 = vpack.c.bf16 %v626, %v626
        %v1185 = vpack.c.bf16 %v678, %v678
        %v1186 = vpack.c.bf16 %v730, %v730
        %v1187 = vpack.c.bf16 %v798, %v798
        %v1188 = vpack.c.bf16 %v850, %v850
        %v1189 = vpack.c.bf16 %v902, %v902
        %v1190 = vpack.c.bf16 %v954, %v954
        %v1191 = vpack.c.bf16 %v1022, %v1022
        %v1192 = vpack.c.bf16 %v1074, %v1074
        %v1193 = vpack.c.bf16 %v1126, %v1126
        %v1194 = vpack.c.bf16 %v1178, %v1178
        %vm1195 = vcmask 64512
        %v1197 = vsel %vm1195, %v1183, 0
        %v1200 = vsel %vm1195, %v1187, 0
        %1202 = vmatprep.subr.bf16.mxu0 0
        %1203 = vmatpush1.bf16.xpose.msra.mxu0 %v1200
        %1204 = vmatprep.subr.bf16.mxu0 0
        %1205 = vmatpush1.bf16.xpose.msra.mxu0 0
        %1206 = vmatprep.subr.bf16.mxu0 0
        %1207 = vmatpush1.bf16.xpose.msra.mxu0 0
        %1208 = vmatprep.subr.bf16.mxu0 0
        %1209 = vmatpush1.bf16.xpose.msra.mxu0 0
        %1210 = vmatprep.subr.bf16.mxu0 0
        %1211 = vmatpush1.bf16.xpose.msra.mxu0 0
        %1212 = vmatprep.subr.bf16.mxu0 0
        %1213 = vmatpush1.bf16.xpose.msra.mxu0 0
        %1214 = vmatprep.subr.bf16.mxu0 0
        %1215 = vmatpush1.bf16.xpose.msra.mxu0 0
        %1216 = vmatprep.subr.bf16.mxu0 0
        %1217 = vmatpush1.bf16.xpose.msra.mxu0 0
        %1218 = vmatprep.subr.bf16.mxu0 0
        %1219 = vmatpush1.bf16.xpose.msra.mxu0 0
        %1220 = vmatprep.subr.bf16.mxu0 0
        %1221 = vmatpush1.bf16.xpose.msra.mxu0 0
        %1222 = vmatprep.subr.bf16.mxu0 0
        %1223 = vmatpush1.bf16.xpose.msra.mxu0 0
        %1224 = vmatprep.subr.bf16.mxu0 0
        %1225 = vmatpush1.bf16.xpose.msra.mxu0 0
        %1226 = vmatprep.subr.bf16.mxu0 0
        %1227 = vmatpush1.bf16.xpose.msra.mxu0 0
        %1228 = vmatprep.subr.bf16.mxu0 0
        %1229 = vmatpush1.bf16.xpose.msra.mxu0 0
        %1230 = vmatprep.subr.bf16.mxu0 0
        %1231 = vmatpush1.bf16.xpose.msra.mxu0 0
        %1232 = vmatprep.subr.bf16.mxu0 0
        %1233 = vmatpush1.bf16.xpose.msra.mxu0 0
        %1234 = vmatprep.mubr.bf16.mxu0 0
        %1235 = vmatmul.mubr.bf16.gmra.mrb[0].mxu0 %v1197
        %v1236 = vpop.f32.mrb[0].mxu0
        %v1237 = vadd.f32 0.0, %v1236
        %v1238 = vpop.f32.mrb[0].mxu0
        %v1239 = vpop.f32.mrb[0].mxu0
        %v1240 = vpop.f32.mrb[0].mxu0
        %1241 = vdwg.mxu0
        %v1243 = vsel %vm1195, %v1184, 0
        %v1246 = vsel %vm1195, %v1188, 0
        %1248 = vmatprep.subr.bf16.mxu0 0
        %1249 = vmatpush1.bf16.xpose.msra.mxu0 %v1246
        %1250 = vmatprep.subr.bf16.mxu0 0
        %1251 = vmatpush1.bf16.xpose.msra.mxu0 0
        %1252 = vmatprep.subr.bf16.mxu0 0
        %1253 = vmatpush1.bf16.xpose.msra.mxu0 0
        %1254 = vmatprep.subr.bf16.mxu0 0
        %1255 = vmatpush1.bf16.xpose.msra.mxu0 0
        %1256 = vmatprep.subr.bf16.mxu0 0
        %1257 = vmatpush1.bf16.xpose.msra.mxu0 0
        %1258 = vmatprep.subr.bf16.mxu0 0
        %1259 = vmatpush1.bf16.xpose.msra.mxu0 0
        %1260 = vmatprep.subr.bf16.mxu0 0
        %1261 = vmatpush1.bf16.xpose.msra.mxu0 0
        %1262 = vmatprep.subr.bf16.mxu0 0
        %1263 = vmatpush1.bf16.xpose.msra.mxu0 0
        %1264 = vmatprep.subr.bf16.mxu0 0
        %1265 = vmatpush1.bf16.xpose.msra.mxu0 0
        %1266 = vmatprep.subr.bf16.mxu0 0
        %1267 = vmatpush1.bf16.xpose.msra.mxu0 0
        %1268 = vmatprep.subr.bf16.mxu0 0
        %1269 = vmatpush1.bf16.xpose.msra.mxu0 0
        %1270 = vmatprep.subr.bf16.mxu0 0
        %1271 = vmatpush1.bf16.xpose.msra.mxu0 0
        %1272 = vmatprep.subr.bf16.mxu0 0
        %1273 = vmatpush1.bf16.xpose.msra.mxu0 0
        %1274 = vmatprep.subr.bf16.mxu0 0
        %1275 = vmatpush1.bf16.xpose.msra.mxu0 0
        %1276 = vmatprep.subr.bf16.mxu0 0
        %1277 = vmatpush1.bf16.xpose.msra.mxu0 0
        %1278 = vmatprep.subr.bf16.mxu0 0
        %1279 = vmatpush1.bf16.xpose.msra.mxu0 0
        %1280 = vmatprep.mubr.bf16.mxu0 0
        %1281 = vmatmul.mubr.bf16.gmra.mrb[0].mxu0 %v1243
        %v1282 = vpop.f32.mrb[0].mxu0
        %v1283 = vadd.f32 0.0, %v1282
        %v1284 = vpop.f32.mrb[0].mxu0
        %v1285 = vpop.f32.mrb[0].mxu0
        %v1286 = vpop.f32.mrb[0].mxu0
        %1287 = vdwg.mxu0
        %v1289 = vsel %vm1195, %v1185, 0
        %v1292 = vsel %vm1195, %v1189, 0
        %1294 = vmatprep.subr.bf16.mxu0 0
        %1295 = vmatpush1.bf16.xpose.msra.mxu0 %v1292
        %1296 = vmatprep.subr.bf16.mxu0 0
        %1297 = vmatpush1.bf16.xpose.msra.mxu0 0
        %1298 = vmatprep.subr.bf16.mxu0 0
        %1299 = vmatpush1.bf16.xpose.msra.mxu0 0
        %1300 = vmatprep.subr.bf16.mxu0 0
        %1301 = vmatpush1.bf16.xpose.msra.mxu0 0
        %1302 = vmatprep.subr.bf16.mxu0 0
        %1303 = vmatpush1.bf16.xpose.msra.mxu0 0
        %1304 = vmatprep.subr.bf16.mxu0 0
        %1305 = vmatpush1.bf16.xpose.msra.mxu0 0
        %1306 = vmatprep.subr.bf16.mxu0 0
        %1307 = vmatpush1.bf16.xpose.msra.mxu0 0
        %1308 = vmatprep.subr.bf16.mxu0 0
        %1309 = vmatpush1.bf16.xpose.msra.mxu0 0
        %1310 = vmatprep.subr.bf16.mxu0 0
        %1311 = vmatpush1.bf16.xpose.msra.mxu0 0
        %1312 = vmatprep.subr.bf16.mxu0 0
        %1313 = vmatpush1.bf16.xpose.msra.mxu0 0
        %1314 = vmatprep.subr.bf16.mxu0 0
        %1315 = vmatpush1.bf16.xpose.msra.mxu0 0
        %1316 = vmatprep.subr.bf16.mxu0 0
        %1317 = vmatpush1.bf16.xpose.msra.mxu0 0
        %1318 = vmatprep.subr.bf16.mxu0 0
        %1319 = vmatpush1.bf16.xpose.msra.mxu0 0
        %1320 = vmatprep.subr.bf16.mxu0 0
        %1321 = vmatpush1.bf16.xpose.msra.mxu0 0
        %1322 = vmatprep.subr.bf16.mxu0 0
        %1323 = vmatpush1.bf16.xpose.msra.mxu0 0
        %1324 = vmatprep.subr.bf16.mxu0 0
        %1325 = vmatpush1.bf16.xpose.msra.mxu0 0
        %1326 = vmatprep.mubr.bf16.mxu0 0
        %1327 = vmatmul.mubr.bf16.gmra.mrb[0].mxu0 %v1289
        %v1328 = vpop.f32.mrb[0].mxu0
        %v1329 = vadd.f32 0.0, %v1328
        %v1330 = vpop.f32.mrb[0].mxu0
        %v1331 = vpop.f32.mrb[0].mxu0
        %v1332 = vpop.f32.mrb[0].mxu0
        %1333 = vdwg.mxu0
        %v1335 = vsel %vm1195, %v1186, 0
        %v1338 = vsel %vm1195, %v1190, 0
        %1340 = vmatprep.subr.bf16.mxu0 0
        %1341 = vmatpush1.bf16.xpose.msra.mxu0 %v1338
        %1342 = vmatprep.subr.bf16.mxu0 0
        %1343 = vmatpush1.bf16.xpose.msra.mxu0 0
        %1344 = vmatprep.subr.bf16.mxu0 0
        %1345 = vmatpush1.bf16.xpose.msra.mxu0 0
        %1346 = vmatprep.subr.bf16.mxu0 0
        %1347 = vmatpush1.bf16.xpose.msra.mxu0 0
        %1348 = vmatprep.subr.bf16.mxu0 0
        %1349 = vmatpush1.bf16.xpose.msra.mxu0 0
        %1350 = vmatprep.subr.bf16.mxu0 0
        %1351 = vmatpush1.bf16.xpose.msra.mxu0 0
        %1352 = vmatprep.subr.bf16.mxu0 0
        %1353 = vmatpush1.bf16.xpose.msra.mxu0 0
        %1354 = vmatprep.subr.bf16.mxu0 0
        %1355 = vmatpush1.bf16.xpose.msra.mxu0 0
        %1356 = vmatprep.subr.bf16.mxu0 0
        %1357 = vmatpush1.bf16.xpose.msra.mxu0 0
        %1358 = vmatprep.subr.bf16.mxu0 0
        %1359 = vmatpush1.bf16.xpose.msra.mxu0 0
        %1360 = vmatprep.subr.bf16.mxu0 0
        %1361 = vmatpush1.bf16.xpose.msra.mxu0 0
        %1362 = vmatprep.subr.bf16.mxu0 0
        %1363 = vmatpush1.bf16.xpose.msra.mxu0 0
        %1364 = vmatprep.subr.bf16.mxu0 0
        %1365 = vmatpush1.bf16.xpose.msra.mxu0 0
        %1366 = vmatprep.subr.bf16.mxu0 0
        %1367 = vmatpush1.bf16.xpose.msra.mxu0 0
        %1368 = vmatprep.subr.bf16.mxu0 0
        %1369 = vmatpush1.bf16.xpose.msra.mxu0 0
        %1370 = vmatprep.subr.bf16.mxu0 0
        %1371 = vmatpush1.bf16.xpose.msra.mxu0 0
        %1372 = vmatprep.mubr.bf16.mxu0 0
        %1373 = vmatmul.mubr.bf16.gmra.mrb[0].mxu0 %v1335
        %v1374 = vpop.f32.mrb[0].mxu0
        %v1375 = vadd.f32 0.0, %v1374
        %v1376 = vpop.f32.mrb[0].mxu0
        %v1377 = vpop.f32.mrb[0].mxu0
        %v1378 = vpop.f32.mrb[0].mxu0
        %1379 = vdwg.mxu0
        %v1380 = vld [vmem:[%s503] sm:$0x1]
        %vm1381 = vcmp.eq.f32.partialorder %v1380, 0.0
        %v1382 = vsel %vm1381, 1, 0
        %v1383 = vlaneseq
        %v1384 = vshrl.u32 %v1383, 7
        %v1385 = vsub.s32 0, %v1384
        %v1386 = vrot.slane %v1382, %v1385
        %vm1387 = vcmp.eq.s32.totalorder %v1386, 1
        %v1388 = vsel %vm1387, -1e+30, %v1237
        %v1389 = vsel %vm1387, -1e+30, %v1283
        %v1390 = vsel %vm1387, -1e+30, %v1329
        %v1391 = vsel %vm1387, -1e+30, %v1375
        %v1392 = vsel %vm1195, %v1388, -inf
        %1393 = vmax.xlane.f32.xlu0 %v1392
        %v1394 = vpop.xlane.xlu0 %1393
        %v1395 = vsel %vm1195, %v1389, -inf
        %1396 = vmax.xlane.f32.xlu0 %v1395
        %v1397 = vpop.xlane.xlu0 %1396
        %v1398 = vsel %vm1195, %v1390, -inf
        %1399 = vmax.xlane.f32.xlu0 %v1398
        %v1400 = vpop.xlane.xlu0 %1399
        %v1401 = vsel %vm1195, %v1391, -inf
        %1402 = vmax.xlane.f32.xlu0 %v1401
        %v1403 = vpop.xlane.xlu0 %1402
        %v1404 = vsub.f32 %v1388, %v1394
        %v1405 = vsub.f32 %v1389, %v1397
        %v1406 = vsub.f32 %v1390, %v1400
        %v1407 = vsub.f32 %v1391, %v1403
        %v1408 = vmul.f32 %v1404, 1.442695
        %v1409 = vpow.pop %v1408
        %v1410 = vmul.f32 %v1405, 1.442695
        %v1411 = vpow.pop %v1410
        %v1412 = vmul.f32 %v1406, 1.442695
        %v1413 = vpow.pop %v1412
        %v1414 = vmul.f32 %v1407, 1.442695
        %v1415 = vpow.pop %v1414
        %v1416 = vsel %vm1195, %v1409, 0.0
        %1417 = vadd.xlane.f32.xlu0 %v1416
        %v1418 = vpop.xlane.xlu0 %1417
        %v1419 = vsel %vm1195, %v1411, 0.0
        %1420 = vadd.xlane.f32.xlu0 %v1419
        %v1421 = vpop.xlane.xlu0 %1420
        %v1422 = vsel %vm1195, %v1413, 0.0
        %1423 = vadd.xlane.f32.xlu0 %v1422
        %v1424 = vpop.xlane.xlu0 %1423
        %v1425 = vsel %vm1195, %v1415, 0.0
        %1426 = vadd.xlane.f32.xlu0 %v1425
        %v1427 = vpop.xlane.xlu0 %1426
        %v1428 = vrcp.pop %v1418
        %v1429 = vrcp.pop %v1421
        %v1430 = vrcp.pop %v1424
        %v1431 = vrcp.pop %v1427
        %v1432 = vmul.f32 %v1409, %v1428
        %v1433 = vmul.f32 %v1411, %v1429
        %v1434 = vmul.f32 %v1413, %v1430
        %v1435 = vmul.f32 %v1415, %v1431
        %v1436 = vpack.c.bf16 %v1432, %v1432
        %v1437 = vpack.c.bf16 %v1433, %v1433
        %v1438 = vpack.c.bf16 %v1434, %v1434
        %v1439 = vpack.c.bf16 %v1435, %v1435
        %v1441 = vsel %vm1195, %v1436, 0
        %vm1443 = vcmask 1043456
        %v1445 = vsel %vm1443, %v1191, 0
        %1447 = vmatprep.subr.bf16.mxu0 0
        %1448 = vmatpush1.bf16.msra.mxu0 %v1445
        %1449 = vmatprep.subr.bf16.mxu0 0
        %1450 = vmatpush1.bf16.msra.mxu0 0
        %1451 = vmatprep.subr.bf16.mxu0 0
        %1452 = vmatpush1.bf16.msra.mxu0 0
        %1453 = vmatprep.subr.bf16.mxu0 0
        %1454 = vmatpush1.bf16.msra.mxu0 0
        %1455 = vmatprep.subr.bf16.mxu0 0
        %1456 = vmatpush1.bf16.msra.mxu0 0
        %1457 = vmatprep.subr.bf16.mxu0 0
        %1458 = vmatpush1.bf16.msra.mxu0 0
        %1459 = vmatprep.subr.bf16.mxu0 0
        %1460 = vmatpush1.bf16.msra.mxu0 0
        %1461 = vmatprep.subr.bf16.mxu0 0
        %1462 = vmatpush1.bf16.msra.mxu0 0
        %1463 = vmatprep.subr.bf16.mxu0 0
        %1464 = vmatpush1.bf16.msra.mxu0 0
        %1465 = vmatprep.subr.bf16.mxu0 0
        %1466 = vmatpush1.bf16.msra.mxu0 0
        %1467 = vmatprep.subr.bf16.mxu0 0
        %1468 = vmatpush1.bf16.msra.mxu0 0
        %1469 = vmatprep.subr.bf16.mxu0 0
        %1470 = vmatpush1.bf16.msra.mxu0 0
        %1471 = vmatprep.subr.bf16.mxu0 0
        %1472 = vmatpush1.bf16.msra.mxu0 0
        %1473 = vmatprep.subr.bf16.mxu0 0
        %1474 = vmatpush1.bf16.msra.mxu0 0
        %1475 = vmatprep.subr.bf16.mxu0 0
        %1476 = vmatpush1.bf16.msra.mxu0 0
        %1477 = vmatprep.subr.bf16.mxu0 0
        %1478 = vmatpush1.bf16.msra.mxu0 0
        %1479 = vmatprep.mubr.bf16.mxu0 0
        %1480 = vmatmul.mubr.bf16.gmra.mrb[0].mxu0 %v1441
        %v1481 = vpop.f32.mrb[0].mxu0
        %v1482 = vadd.f32 0.0, %v1481
        %v1483 = vpop.f32.mrb[0].mxu0
        %v1484 = vpop.f32.mrb[0].mxu0
        %v1485 = vpop.f32.mrb[0].mxu0
        %1486 = vdwg.mxu0
        %v1488 = vsel %vm1195, %v1437, 0
        %v1491 = vsel %vm1443, %v1192, 0
        %1493 = vmatprep.subr.bf16.mxu0 0
        %1494 = vmatpush1.bf16.msra.mxu0 %v1491
        %1495 = vmatprep.subr.bf16.mxu0 0
        %1496 = vmatpush1.bf16.msra.mxu0 0
        %1497 = vmatprep.subr.bf16.mxu0 0
        %1498 = vmatpush1.bf16.msra.mxu0 0
        %1499 = vmatprep.subr.bf16.mxu0 0
        %1500 = vmatpush1.bf16.msra.mxu0 0
        %1501 = vmatprep.subr.bf16.mxu0 0
        %1502 = vmatpush1.bf16.msra.mxu0 0
        %1503 = vmatprep.subr.bf16.mxu0 0
        %1504 = vmatpush1.bf16.msra.mxu0 0
        %1505 = vmatprep.subr.bf16.mxu0 0
        %1506 = vmatpush1.bf16.msra.mxu0 0
        %1507 = vmatprep.subr.bf16.mxu0 0
        %1508 = vmatpush1.bf16.msra.mxu0 0
        %1509 = vmatprep.subr.bf16.mxu0 0
        %1510 = vmatpush1.bf16.msra.mxu0 0
        %1511 = vmatprep.subr.bf16.mxu0 0
        %1512 = vmatpush1.bf16.msra.mxu0 0
        %1513 = vmatprep.subr.bf16.mxu0 0
        %1514 = vmatpush1.bf16.msra.mxu0 0
        %1515 = vmatprep.subr.bf16.mxu0 0
        %1516 = vmatpush1.bf16.msra.mxu0 0
        %1517 = vmatprep.subr.bf16.mxu0 0
        %1518 = vmatpush1.bf16.msra.mxu0 0
        %1519 = vmatprep.subr.bf16.mxu0 0
        %1520 = vmatpush1.bf16.msra.mxu0 0
        %1521 = vmatprep.subr.bf16.mxu0 0
        %1522 = vmatpush1.bf16.msra.mxu0 0
        %1523 = vmatprep.subr.bf16.mxu0 0
        %1524 = vmatpush1.bf16.msra.mxu0 0
        %1525 = vmatprep.mubr.bf16.mxu0 0
        %1526 = vmatmul.mubr.bf16.gmra.mrb[0].mxu0 %v1488
        %v1527 = vpop.f32.mrb[0].mxu0
        %v1528 = vadd.f32 0.0, %v1527
        %v1529 = vpop.f32.mrb[0].mxu0
        %v1530 = vpop.f32.mrb[0].mxu0
        %v1531 = vpop.f32.mrb[0].mxu0
        %1532 = vdwg.mxu0
        %v1534 = vsel %vm1195, %v1438, 0
        %v1537 = vsel %vm1443, %v1193, 0
        %1539 = vmatprep.subr.bf16.mxu0 0
        %1540 = vmatpush1.bf16.msra.mxu0 %v1537
        %1541 = vmatprep.subr.bf16.mxu0 0
        %1542 = vmatpush1.bf16.msra.mxu0 0
        %1543 = vmatprep.subr.bf16.mxu0 0
        %1544 = vmatpush1.bf16.msra.mxu0 0
        %1545 = vmatprep.subr.bf16.mxu0 0
        %1546 = vmatpush1.bf16.msra.mxu0 0
        %1547 = vmatprep.subr.bf16.mxu0 0
        %1548 = vmatpush1.bf16.msra.mxu0 0
        %1549 = vmatprep.subr.bf16.mxu0 0
        %1550 = vmatpush1.bf16.msra.mxu0 0
        %1551 = vmatprep.subr.bf16.mxu0 0
        %1552 = vmatpush1.bf16.msra.mxu0 0
        %1553 = vmatprep.subr.bf16.mxu0 0
        %1554 = vmatpush1.bf16.msra.mxu0 0
        %1555 = vmatprep.subr.bf16.mxu0 0
        %1556 = vmatpush1.bf16.msra.mxu0 0
        %1557 = vmatprep.subr.bf16.mxu0 0
        %1558 = vmatpush1.bf16.msra.mxu0 0
        %1559 = vmatprep.subr.bf16.mxu0 0
        %1560 = vmatpush1.bf16.msra.mxu0 0
        %1561 = vmatprep.subr.bf16.mxu0 0
        %1562 = vmatpush1.bf16.msra.mxu0 0
        %1563 = vmatprep.subr.bf16.mxu0 0
        %1564 = vmatpush1.bf16.msra.mxu0 0
        %1565 = vmatprep.subr.bf16.mxu0 0
        %1566 = vmatpush1.bf16.msra.mxu0 0
        %1567 = vmatprep.subr.bf16.mxu0 0
        %1568 = vmatpush1.bf16.msra.mxu0 0
        %1569 = vmatprep.subr.bf16.mxu0 0
        %1570 = vmatpush1.bf16.msra.mxu0 0
        %1571 = vmatprep.mubr.bf16.mxu0 0
        %1572 = vmatmul.mubr.bf16.gmra.mrb[0].mxu0 %v1534
        %v1573 = vpop.f32.mrb[0].mxu0
        %v1574 = vadd.f32 0.0, %v1573
        %v1575 = vpop.f32.mrb[0].mxu0
        %v1576 = vpop.f32.mrb[0].mxu0
        %v1577 = vpop.f32.mrb[0].mxu0
        %1578 = vdwg.mxu0
        %v1580 = vsel %vm1195, %v1439, 0
        %v1583 = vsel %vm1443, %v1194, 0
        %1585 = vmatprep.subr.bf16.mxu0 0
        %1586 = vmatpush1.bf16.msra.mxu0 %v1583
        %1587 = vmatprep.subr.bf16.mxu0 0
        %1588 = vmatpush1.bf16.msra.mxu0 0
        %1589 = vmatprep.subr.bf16.mxu0 0
        %1590 = vmatpush1.bf16.msra.mxu0 0
        %1591 = vmatprep.subr.bf16.mxu0 0
        %1592 = vmatpush1.bf16.msra.mxu0 0
        %1593 = vmatprep.subr.bf16.mxu0 0
        %1594 = vmatpush1.bf16.msra.mxu0 0
        %1595 = vmatprep.subr.bf16.mxu0 0
        %1596 = vmatpush1.bf16.msra.mxu0 0
        %1597 = vmatprep.subr.bf16.mxu0 0
        %1598 = vmatpush1.bf16.msra.mxu0 0
        %1599 = vmatprep.subr.bf16.mxu0 0
        %1600 = vmatpush1.bf16.msra.mxu0 0
        %1601 = vmatprep.subr.bf16.mxu0 0
        %1602 = vmatpush1.bf16.msra.mxu0 0
        %1603 = vmatprep.subr.bf16.mxu0 0
        %1604 = vmatpush1.bf16.msra.mxu0 0
        %1605 = vmatprep.subr.bf16.mxu0 0
        %1606 = vmatpush1.bf16.msra.mxu0 0
        %1607 = vmatprep.subr.bf16.mxu0 0
        %1608 = vmatpush1.bf16.msra.mxu0 0
        %1609 = vmatprep.subr.bf16.mxu0 0
        %1610 = vmatpush1.bf16.msra.mxu0 0
        %1611 = vmatprep.subr.bf16.mxu0 0
        %1612 = vmatpush1.bf16.msra.mxu0 0
        %1613 = vmatprep.subr.bf16.mxu0 0
        %1614 = vmatpush1.bf16.msra.mxu0 0
        %1615 = vmatprep.subr.bf16.mxu0 0
        %1616 = vmatpush1.bf16.msra.mxu0 0
        %1617 = vmatprep.mubr.bf16.mxu0 0
        %1618 = vmatmul.mubr.bf16.gmra.mrb[0].mxu0 %v1580
        %v1619 = vpop.f32.mrb[0].mxu0
        %v1620 = vadd.f32 0.0, %v1619
        %v1621 = vpop.f32.mrb[0].mxu0
        %v1622 = vpop.f32.mrb[0].mxu0
        %v1623 = vpop.f32.mrb[0].mxu0
        %1624 = vdwg.mxu0
        %v1625 = vpack.c.bf16 %v1482, %v1482
        %v1626 = vpack.c.bf16 %v1528, %v1528
        %v1627 = vpack.c.bf16 %v1574, %v1574
        %v1628 = vpack.c.bf16 %v1620, %v1620
        %v1629 = vld [vmem:[%s5] sm:$0xf]
        %v1630 = vld [vmem:[%s5 + $0x4] sm:$0xf]
        %v1631 = vld [vmem:[%s5 + $0x8] sm:$0xf]
        %v1632 = vld [vmem:[%s5 + $0xc] sm:$0xf]
        %v1634 = vsel %vm1195, %v1625, 0
        %v1637 = vsel %vm1443, %v1629, 0
        %1639 = vmatprep.subr.bf16.mxu0 0
        %1640 = vmatpush1.bf16.msra.mxu0 %v1637
        %1641 = vmatprep.subr.bf16.mxu0 0
        %1642 = vmatpush1.bf16.msra.mxu0 0
        %1643 = vmatprep.subr.bf16.mxu0 0
        %1644 = vmatpush1.bf16.msra.mxu0 0
        %1645 = vmatprep.subr.bf16.mxu0 0
        %1646 = vmatpush1.bf16.msra.mxu0 0
        %1647 = vmatprep.subr.bf16.mxu0 0
        %1648 = vmatpush1.bf16.msra.mxu0 0
        %1649 = vmatprep.subr.bf16.mxu0 0
        %1650 = vmatpush1.bf16.msra.mxu0 0
        %1651 = vmatprep.subr.bf16.mxu0 0
        %1652 = vmatpush1.bf16.msra.mxu0 0
        %1653 = vmatprep.subr.bf16.mxu0 0
        %1654 = vmatpush1.bf16.msra.mxu0 0
        %1655 = vmatprep.subr.bf16.mxu0 0
        %1656 = vmatpush1.bf16.msra.mxu0 0
        %1657 = vmatprep.subr.bf16.mxu0 0
        %1658 = vmatpush1.bf16.msra.mxu0 0
        %1659 = vmatprep.subr.bf16.mxu0 0
        %1660 = vmatpush1.bf16.msra.mxu0 0
        %1661 = vmatprep.subr.bf16.mxu0 0
        %1662 = vmatpush1.bf16.msra.mxu0 0
        %1663 = vmatprep.subr.bf16.mxu0 0
        %1664 = vmatpush1.bf16.msra.mxu0 0
        %1665 = vmatprep.subr.bf16.mxu0 0
        %1666 = vmatpush1.bf16.msra.mxu0 0
        %1667 = vmatprep.subr.bf16.mxu0 0
        %1668 = vmatpush1.bf16.msra.mxu0 0
        %1669 = vmatprep.subr.bf16.mxu0 0
        %1670 = vmatpush1.bf16.msra.mxu0 0
        %1671 = vmatprep.mubr.bf16.mxu0 0
        %1672 = vmatmul.mubr.bf16.gmra.mrb[0].mxu0 %v1634
        %v1673 = vpop.f32.mrb[0].mxu0
        %v1674 = vadd.f32 0.0, %v1673
        %v1675 = vpop.f32.mrb[0].mxu0
        %v1676 = vpop.f32.mrb[0].mxu0
        %v1677 = vpop.f32.mrb[0].mxu0
        %1678 = vdwg.mxu0
        %v1680 = vsel %vm1195, %v1626, 0
        %v1683 = vsel %vm1443, %v1630, 0
        %1685 = vmatprep.subr.bf16.mxu0 0
        %1686 = vmatpush1.bf16.msra.mxu0 %v1683
        %1687 = vmatprep.subr.bf16.mxu0 0
        %1688 = vmatpush1.bf16.msra.mxu0 0
        %1689 = vmatprep.subr.bf16.mxu0 0
        %1690 = vmatpush1.bf16.msra.mxu0 0
        %1691 = vmatprep.subr.bf16.mxu0 0
        %1692 = vmatpush1.bf16.msra.mxu0 0
        %1693 = vmatprep.subr.bf16.mxu0 0
        %1694 = vmatpush1.bf16.msra.mxu0 0
        %1695 = vmatprep.subr.bf16.mxu0 0
        %1696 = vmatpush1.bf16.msra.mxu0 0
        %1697 = vmatprep.subr.bf16.mxu0 0
        %1698 = vmatpush1.bf16.msra.mxu0 0
        %1699 = vmatprep.subr.bf16.mxu0 0
        %1700 = vmatpush1.bf16.msra.mxu0 0
        %1701 = vmatprep.subr.bf16.mxu0 0
        %1702 = vmatpush1.bf16.msra.mxu0 0
        %1703 = vmatprep.subr.bf16.mxu0 0
        %1704 = vmatpush1.bf16.msra.mxu0 0
        %1705 = vmatprep.subr.bf16.mxu0 0
        %1706 = vmatpush1.bf16.msra.mxu0 0
        %1707 = vmatprep.subr.bf16.mxu0 0
        %1708 = vmatpush1.bf16.msra.mxu0 0
        %1709 = vmatprep.subr.bf16.mxu0 0
        %1710 = vmatpush1.bf16.msra.mxu0 0
        %1711 = vmatprep.subr.bf16.mxu0 0
        %1712 = vmatpush1.bf16.msra.mxu0 0
        %1713 = vmatprep.subr.bf16.mxu0 0
        %1714 = vmatpush1.bf16.msra.mxu0 0
        %1715 = vmatprep.subr.bf16.mxu0 0
        %1716 = vmatpush1.bf16.msra.mxu0 0
        %1717 = vmatprep.mubr.bf16.mxu0 0
        %1718 = vmatmul.mubr.bf16.gmra.mrb[0].mxu0 %v1680
        %v1719 = vpop.f32.mrb[0].mxu0
        %v1720 = vadd.f32 0.0, %v1719
        %v1721 = vpop.f32.mrb[0].mxu0
        %v1722 = vpop.f32.mrb[0].mxu0
        %v1723 = vpop.f32.mrb[0].mxu0
        %1724 = vdwg.mxu0
        %v1726 = vsel %vm1195, %v1627, 0
        %v1729 = vsel %vm1443, %v1631, 0
        %1731 = vmatprep.subr.bf16.mxu0 0
        %1732 = vmatpush1.bf16.msra.mxu0 %v1729
        %1733 = vmatprep.subr.bf16.mxu0 0
        %1734 = vmatpush1.bf16.msra.mxu0 0
        %1735 = vmatprep.subr.bf16.mxu0 0
        %1736 = vmatpush1.bf16.msra.mxu0 0
        %1737 = vmatprep.subr.bf16.mxu0 0
        %1738 = vmatpush1.bf16.msra.mxu0 0
        %1739 = vmatprep.subr.bf16.mxu0 0
        %1740 = vmatpush1.bf16.msra.mxu0 0
        %1741 = vmatprep.subr.bf16.mxu0 0
        %1742 = vmatpush1.bf16.msra.mxu0 0
        %1743 = vmatprep.subr.bf16.mxu0 0
        %1744 = vmatpush1.bf16.msra.mxu0 0
        %1745 = vmatprep.subr.bf16.mxu0 0
        %1746 = vmatpush1.bf16.msra.mxu0 0
        %1747 = vmatprep.subr.bf16.mxu0 0
        %1748 = vmatpush1.bf16.msra.mxu0 0
        %1749 = vmatprep.subr.bf16.mxu0 0
        %1750 = vmatpush1.bf16.msra.mxu0 0
        %1751 = vmatprep.subr.bf16.mxu0 0
        %1752 = vmatpush1.bf16.msra.mxu0 0
        %1753 = vmatprep.subr.bf16.mxu0 0
        %1754 = vmatpush1.bf16.msra.mxu0 0
        %1755 = vmatprep.subr.bf16.mxu0 0
        %1756 = vmatpush1.bf16.msra.mxu0 0
        %1757 = vmatprep.subr.bf16.mxu0 0
        %1758 = vmatpush1.bf16.msra.mxu0 0
        %1759 = vmatprep.subr.bf16.mxu0 0
        %1760 = vmatpush1.bf16.msra.mxu0 0
        %1761 = vmatprep.subr.bf16.mxu0 0
        %1762 = vmatpush1.bf16.msra.mxu0 0
        %1763 = vmatprep.mubr.bf16.mxu0 0
        %1764 = vmatmul.mubr.bf16.gmra.mrb[0].mxu0 %v1726
        %v1765 = vpop.f32.mrb[0].mxu0
        %v1766 = vadd.f32 0.0, %v1765
        %v1767 = vpop.f32.mrb[0].mxu0
        %v1768 = vpop.f32.mrb[0].mxu0
        %v1769 = vpop.f32.mrb[0].mxu0
        %1770 = vdwg.mxu0
        %v1772 = vsel %vm1195, %v1628, 0
        %v1775 = vsel %vm1443, %v1632, 0
        %1777 = vmatprep.subr.bf16.mxu0 0
        %1778 = vmatpush1.bf16.msra.mxu0 %v1775
        %1779 = vmatprep.subr.bf16.mxu0 0
        %1780 = vmatpush1.bf16.msra.mxu0 0
        %1781 = vmatprep.subr.bf16.mxu0 0
        %1782 = vmatpush1.bf16.msra.mxu0 0
        %1783 = vmatprep.subr.bf16.mxu0 0
        %1784 = vmatpush1.bf16.msra.mxu0 0
        %1785 = vmatprep.subr.bf16.mxu0 0
        %1786 = vmatpush1.bf16.msra.mxu0 0
        %1787 = vmatprep.subr.bf16.mxu0 0
        %1788 = vmatpush1.bf16.msra.mxu0 0
        %1789 = vmatprep.subr.bf16.mxu0 0
        %1790 = vmatpush1.bf16.msra.mxu0 0
        %1791 = vmatprep.subr.bf16.mxu0 0
        %1792 = vmatpush1.bf16.msra.mxu0 0
        %1793 = vmatprep.subr.bf16.mxu0 0
        %1794 = vmatpush1.bf16.msra.mxu0 0
        %1795 = vmatprep.subr.bf16.mxu0 0
        %1796 = vmatpush1.bf16.msra.mxu0 0
        %1797 = vmatprep.subr.bf16.mxu0 0
        %1798 = vmatpush1.bf16.msra.mxu0 0
        %1799 = vmatprep.subr.bf16.mxu0 0
        %1800 = vmatpush1.bf16.msra.mxu0 0
        %1801 = vmatprep.subr.bf16.mxu0 0
        %1802 = vmatpush1.bf16.msra.mxu0 0
        %1803 = vmatprep.subr.bf16.mxu0 0
        %1804 = vmatpush1.bf16.msra.mxu0 0
        %1805 = vmatprep.subr.bf16.mxu0 0
        %1806 = vmatpush1.bf16.msra.mxu0 0
        %1807 = vmatprep.subr.bf16.mxu0 0
        %1808 = vmatpush1.bf16.msra.mxu0 0
        %1809 = vmatprep.mubr.bf16.mxu0 0
        %1810 = vmatmul.mubr.bf16.gmra.mrb[0].mxu0 %v1772
        %v1811 = vpop.f32.mrb[0].mxu0
        %v1812 = vadd.f32 0.0, %v1811
        %v1813 = vpop.f32.mrb[0].mxu0
        %v1814 = vpop.f32.mrb[0].mxu0
        %v1815 = vpop.f32.mrb[0].mxu0
        %1816 = vdwg.mxu0
        %v1817 = vsel %vm535, %v1674, 0.0
        %v1818 = vsel %vm535, %v1720, 0.0
        %v1819 = vadd.f32 %v1817, %v1818
        %v1820 = vsel %vm535, %v1766, 0.0
        %v1821 = vadd.f32 %v1819, %v1820
        %v1822 = vsel %vm535, %v1812, 0.0
        %v1823 = vadd.f32 %v1821, %v1822
        %v1824 = vld [vmem:[%s6] sm:$0x1]
        %v1826 = vlaneseq
        %v1827 = vshrl.u32 %v1826, 7
        %v1828 = vsub.s32 0, %v1827
        %v1829 = vrot.slane %v1824, %v1828
        %v1831 = vadd.f32 %v1823, %v1829
        %v1832 = vadd.f32 %v1831, %v506
        %v1833 = vld [vmem:[%s7] sm:$0x1]
        %v1834 = vld [vmem:[%s8] sm:$0x1]
        %v1835 = vsel %vm535, %v1832, 0.0
        %1836 = vadd.xlane.f32.xlu0 %v1835
        %v1837 = vpop.xlane.xlu0 %1836
        %v1838 = vrcp.pop 32.0
        %v1839 = vmul.f32 %v1837, %v1838
        %v1840 = vsub.f32 %v1832, %v1839
        %v1841 = vmul.f32 %v1840, %v1840
        %v1842 = vsel %vm535, %v1841, 0.0
        %1843 = vadd.xlane.f32.xlu0 %v1842
        %v1844 = vpop.xlane.xlu0 %1843
        %v1845 = vmul.f32 %v1844, %v1838
        %v1846 = vadd.f32 %v1845, 1e-12
        %v1847 = vrsqrt.pop %v1846
        %v1848 = vmul.f32 %v1840, %v1847
        %v1850 = vlaneseq
        %v1851 = vshrl.u32 %v1850, 7
        %v1852 = vsub.s32 0, %v1851
        %v1853 = vrot.slane %v1833, %v1852
        %v1855 = vmul.f32 %v1848, %v1853
        %v1857 = vlaneseq
        %v1858 = vshrl.u32 %v1857, 7
        %v1859 = vsub.s32 0, %v1858
        %v1860 = vrot.slane %v1834, %v1859
        %v1862 = vadd.f32 %v1855, %v1860
        %v1863 = vpack.c.bf16 %v1862, %v1862
        %v1864 = vld [vmem:[%s9] sm:$0xf]
        %v1865 = vld [vmem:[%s9 + $0x4] sm:$0xf]
        %v1866 = vld [vmem:[%s9 + $0x8] sm:$0xf]
        %v1867 = vld [vmem:[%s9 + $0xc] sm:$0xf]
        %v1868 = vld [vmem:[%s10] sm:$0x1]
        %v1870 = vlaneseq
        %v1871 = vshrl.u32 %v1870, 7
        %v1872 = vsub.s32 0, %v1871
        %v1873 = vrot.slane %v1868, %v1872
        %v1879 = vunpack.c.l.b16 %v1864
        %v1880 = vunpack.c.l.b16 %v1865
        %v1881 = vunpack.c.l.b16 %v1866
        %v1882 = vunpack.c.l.b16 %v1867
        %v1883 = vpack.c.b16 %v1880, %v1879
        %v1884 = vpack.c.b16 %v1882, %v1881
        %v1888 = vsel %vm535, %v1863, 0
        %1890 = vmatprep.subr.bf16.mxu0 0
        %1891 = vmatpush1.bf16.msra.mxu0 %v1883
        %1892 = vmatprep.subr.bf16.mxu0 0
        %1893 = vmatpush1.bf16.msra.mxu0 %v1884
        %1894 = vmatprep.subr.bf16.mxu0 0
        %1895 = vmatpush1.bf16.msra.mxu0 0
        %1896 = vmatprep.subr.bf16.mxu0 0
        %1897 = vmatpush1.bf16.msra.mxu0 0
        %1898 = vmatprep.subr.bf16.mxu0 0
        %1899 = vmatpush1.bf16.msra.mxu0 0
        %1900 = vmatprep.subr.bf16.mxu0 0
        %1901 = vmatpush1.bf16.msra.mxu0 0
        %1902 = vmatprep.subr.bf16.mxu0 0
        %1903 = vmatpush1.bf16.msra.mxu0 0
        %1904 = vmatprep.subr.bf16.mxu0 0
        %1905 = vmatpush1.bf16.msra.mxu0 0
        %1906 = vmatprep.subr.bf16.mxu0 0
        %1907 = vmatpush1.bf16.msra.mxu0 0
        %1908 = vmatprep.subr.bf16.mxu0 0
        %1909 = vmatpush1.bf16.msra.mxu0 0
        %1910 = vmatprep.subr.bf16.mxu0 0
        %1911 = vmatpush1.bf16.msra.mxu0 0
        %1912 = vmatprep.subr.bf16.mxu0 0
        %1913 = vmatpush1.bf16.msra.mxu0 0
        %1914 = vmatprep.subr.bf16.mxu0 0
        %1915 = vmatpush1.bf16.msra.mxu0 0
        %1916 = vmatprep.subr.bf16.mxu0 0
        %1917 = vmatpush1.bf16.msra.mxu0 0
        %1918 = vmatprep.subr.bf16.mxu0 0
        %1919 = vmatpush1.bf16.msra.mxu0 0
        %1920 = vmatprep.subr.bf16.mxu0 0
        %1921 = vmatpush1.bf16.msra.mxu0 0
        %1922 = vmatprep.mubr.bf16.mxu0 0
        %1923 = vmatmul.mubr.bf16.gmra.mrb[0].mxu0 %v1888
        %v1924 = vpop.f32.mrb[0].mxu0
        %v1925 = vadd.f32 %v1873, %v1924
        %v1926 = vpop.f32.mrb[0].mxu0
        %v1927 = vpop.f32.mrb[0].mxu0
        %v1928 = vpop.f32.mrb[0].mxu0
        %1929 = vdwg.mxu0
        %v1930 = vmul.f32 %v1925, 0.5
        %v1931 = vmul.f32 %v1925, 0.044715
        %v1932 = vmul.f32 %v1931, %v1925
        %v1933 = vmul.f32 %v1932, %v1925
        %v1934 = vadd.f32 %v1925, %v1933
        %v1935 = vmul.f32 %v1934, 0.7978846
        %v1936 = vtanh.pop %v1935
        %v1937 = vadd.f32 %v1936, 1.0
        %v1938 = vmul.f32 %v1930, %v1937
        %v1939 = vpack.c.bf16 %v1938, %v1938
        %v1940 = vld [vmem:[%s11] sm:$0xf]
        %v1941 = vld [vmem:[%s11 + $0x4] sm:$0xf]
        %v1942 = vld [vmem:[%s11 + $0x8] sm:$0xf]
        %v1943 = vld [vmem:[%s11 + $0xc] sm:$0xf]
        %v1944 = vld [vmem:[%s11 + $0x10] sm:$0xf]
        %v1945 = vld [vmem:[%s11 + $0x14] sm:$0xf]
        %v1946 = vld [vmem:[%s11 + $0x18] sm:$0xf]
        %v1947 = vld [vmem:[%s11 + $0x1c] sm:$0xf]
        %v1948 = vld [vmem:[%s12] sm:$0x1]
        %v1950 = vlaneseq
        %v1951 = vshrl.u32 %v1950, 7
        %v1952 = vsub.s32 0, %v1951
        %v1953 = vrot.slane %v1948, %v1952
        %v1963 = vunpack.c.l.b16 %v1940
        %v1964 = vunpack.c.l.b16 %v1941
        %v1965 = vunpack.c.l.b16 %v1942
        %v1966 = vunpack.c.l.b16 %v1943
        %v1967 = vunpack.c.l.b16 %v1944
        %v1968 = vunpack.c.l.b16 %v1945
        %v1969 = vunpack.c.l.b16 %v1946
        %v1970 = vunpack.c.l.b16 %v1947
        %v1971 = vpack.c.b16 %v1964, %v1963
        %v1972 = vpack.c.b16 %v1966, %v1965
        %v1973 = vpack.c.b16 %v1968, %v1967
        %v1974 = vpack.c.b16 %v1970, %v1969
        %vm1979 = vcmask 523264
        %v1981 = vsel %vm1979, %v1939, 0
        %1983 = vmatprep.subr.bf16.mxu0 0
        %1984 = vmatpush1.bf16.msra.mxu0 %v1971
        %1985 = vmatprep.subr.bf16.mxu0 0
        %1986 = vmatpush1.bf16.msra.mxu0 %v1972
        %1987 = vmatprep.subr.bf16.mxu0 0
        %1988 = vmatpush1.bf16.msra.mxu0 %v1973
        %1989 = vmatprep.subr.bf16.mxu0 0
        %1990 = vmatpush1.bf16.msra.mxu0 %v1974
        %1991 = vmatprep.subr.bf16.mxu0 0
        %1992 = vmatpush1.bf16.msra.mxu0 0
        %1993 = vmatprep.subr.bf16.mxu0 0
        %1994 = vmatpush1.bf16.msra.mxu0 0
        %1995 = vmatprep.subr.bf16.mxu0 0
        %1996 = vmatpush1.bf16.msra.mxu0 0
        %1997 = vmatprep.subr.bf16.mxu0 0
        %1998 = vmatpush1.bf16.msra.mxu0 0
        %1999 = vmatprep.subr.bf16.mxu0 0
        %2000 = vmatpush1.bf16.msra.mxu0 0
        %2001 = vmatprep.subr.bf16.mxu0 0
        %2002 = vmatpush1.bf16.msra.mxu0 0
        %2003 = vmatprep.subr.bf16.mxu0 0
        %2004 = vmatpush1.bf16.msra.mxu0 0
        %2005 = vmatprep.subr.bf16.mxu0 0
        %2006 = vmatpush1.bf16.msra.mxu0 0
        %2007 = vmatprep.subr.bf16.mxu0 0
        %2008 = vmatpush1.bf16.msra.mxu0 0
        %2009 = vmatprep.subr.bf16.mxu0 0
        %2010 = vmatpush1.bf16.msra.mxu0 0
        %2011 = vmatprep.subr.bf16.mxu0 0
        %2012 = vmatpush1.bf16.msra.mxu0 0
        %2013 = vmatprep.subr.bf16.mxu0 0
        %2014 = vmatpush1.bf16.msra.mxu0 0
        %2015 = vmatprep.mubr.bf16.mxu0 0
        %2016 = vmatmul.mubr.bf16.gmra.mrb[0].mxu0 %v1981
        %v2017 = vpop.f32.mrb[0].mxu0
        %v2018 = vadd.f32 %v1953, %v2017
        %v2019 = vpop.f32.mrb[0].mxu0
        %v2020 = vpop.f32.mrb[0].mxu0
        %v2021 = vpop.f32.mrb[0].mxu0
        %2022 = vdwg.mxu0
        %v2023 = vadd.f32 %v1862, %v2018
        %v2024 = vld [vmem:[%s13] sm:$0x1]
        %v2025 = vld [vmem:[%s14] sm:$0x1]
        %v2026 = vsel %vm535, %v2023, 0.0
        %2027 = vadd.xlane.f32.xlu0 %v2026
        %v2028 = vpop.xlane.xlu0 %2027
        %v2029 = vmul.f32 %v2028, %v1838
        %v2030 = vsub.f32 %v2023, %v2029
        %v2031 = vmul.f32 %v2030, %v2030
        %v2032 = vsel %vm535, %v2031, 0.0
        %2033 = vadd.xlane.f32.xlu0 %v2032
        %v2034 = vpop.xlane.xlu0 %2033
        %v2035 = vmul.f32 %v2034, %v1838
        %v2036 = vadd.f32 %v2035, 1e-12
        %v2037 = vrsqrt.pop %v2036
        %v2038 = vmul.f32 %v2030, %v2037
        %v2040 = vlaneseq
        %v2041 = vshrl.u32 %v2040, 7
        %v2042 = vsub.s32 0, %v2041
        %v2043 = vrot.slane %v2024, %v2042
        %v2045 = vmul.f32 %v2038, %v2043
        %v2047 = vlaneseq
        %v2048 = vshrl.u32 %v2047, 7
        %v2049 = vsub.s32 0, %v2048
        %v2050 = vrot.slane %v2025, %v2049
        %v2052 = vadd.f32 %v2045, %v2050
        %2053 = vst.msk [vmem:[%s496] sm:$0xff] %vm535, %v2052
        %s2054 = sand.u32 %s362, 1
        %s2055 = scalar_lea.sflag [#allocation3], %s2054
        %s2056 = sand.u32 %s362, 1
        %s2057 = smul.addr %s2056, 8
        %s2058 = scalar_lea.vmem [#allocation2], %s2057
        // Predicated region
        $region81: #{transformer_layers_pallas.3} parent=79 // pred_check
          %p2059 = pneg %p372
        $region82: #{transformer_layers_pallas.3} parent=79 // pred_check_branch
          %2061 = sbr.rel (%p2059) target = $region84
        $region83: #{transformer_layers_pallas.3} parent=79 // pred_region
          %s2063 = ssub.s32 128, 128
          %2064 = vsyncadd %s2055, %s2063
          %s2065 = smul.addr %s29, 128
          %s2066 = scalar_lea.hbm %s15, %s2065
          %s2068 = sshll.u32 %s2058, 4
          %s2069 = int_to_ptr.vmem [resolvable:$true] %s2068
          %2071 = dma.vmem_to_hbm [thread:$0]  %s2069, 128, %s2066, %s2055
        $region84: #{transformer_layers_pallas.3} parent=79 // pred_fallthru
          _
      $region80: #{transformer_layers_pallas.3} parent=5 // pred_fallthru
        _
      %p2072 = scmp.le.s32.totalorder 2, %s24
      // Predicated region
      $region85: #{transformer_layers_pallas.3} parent=5 // pred_check
        %p2073 = pneg %p2072
      $region86: #{transformer_layers_pallas.3} parent=5 // pred_check_branch
        %2075 = sbr.rel (%p2073) target = $region88
      $region87: #{transformer_layers_pallas.3} parent=5 // pred_region
        %s2076 = ssub.s32 %s24, 2
        // Predicated region
        $region89: #{transformer_layers_pallas.3} parent=87 // pred_check
          %p2077 = pneg %p378
        $region90: #{transformer_layers_pallas.3} parent=87 // pred_check_branch
          %2079 = sbr.rel (%p2077) target = $region92
        $region91: #{transformer_layers_pallas.3} parent=87 // pred_region
          %s2080 = sand.u32 %s363, 1
          %s2081 = scalar_lea.sflag [#allocation3], %s2080
          %s2082 = sand.u32 %s363, 1
          %s2083 = smul.addr %s2082, 8
          %s2084 = scalar_lea.vmem [#allocation2], %s2083
          %2085 = dma.done %s2081, 128
        $region92: #{transformer_layers_pallas.3} parent=87 // pred_fallthru
          _
      $region88: #{transformer_layers_pallas.3} parent=5 // pred_fallthru
        _
    $region6: #{transformer_layers_pallas.3} parent=1 // loop_footer
      %s28 = sadd.s32 1, %s24
    $region7: #{transformer_layers_pallas.3} parent=1 // loop_footer_branch
      %23 = sbr.rel target = $region3
    $region8: #{transformer_layers_pallas.3} parent=1 // loop_exit
      _
    %2086 = vsyncpa [#allocation3], 1
    %s2087 = scalar_lea.sflag [#allocation3], 1
    %2088 = vsyncpa %s2087, 1

// kernel: transformer_layers_pallas.2
$region0: #{transformer_layers_pallas.2}
  #allocation0 [shape = 'u32[]', space=smem, size = 0x4, offset = 0x4, fixed_abs, tag = 'smem constant byte address 0x4 - core index']
  #allocation1 [shape = 'u32[144,128]{1,0:T(1,128)}', space=vmem, size = 0x12000, scoped, tag = 'internal scratch']
  %s0 = inlined_call_operand.vmem [shape: bf16[2,8,32], index: 0, kind: input, shape index: {}]
  %s1 = inlined_call_operand.vmem [shape: f32[2,1,8], index: 1, kind: input, shape index: {}]
  %s2 = inlined_call_operand.vmem [shape: bf16[4,32,8], index: 2, kind: input, shape index: {}]
  %s3 = inlined_call_operand.vmem [shape: bf16[4,32,8], index: 3, kind: input, shape index: {}]
  %s4 = inlined_call_operand.vmem [shape: bf16[4,32,8], index: 4, kind: input, shape index: {}]
  %s5 = inlined_call_operand.vmem [shape: bf16[4,8,32], index: 5, kind: input, shape index: {}]
  %s6 = inlined_call_operand.vmem [shape: f32[1,32], index: 6, kind: input, shape index: {}]
  %s7 = inlined_call_operand.vmem [shape: f32[1,32], index: 7, kind: input, shape index: {}]
  %s8 = inlined_call_operand.vmem [shape: f32[1,32], index: 8, kind: input, shape index: {}]
  %s9 = inlined_call_operand.vmem [shape: bf16[32,64], index: 9, kind: input, shape index: {}]
  %s10 = inlined_call_operand.vmem [shape: f32[1,64], index: 10, kind: input, shape index: {}]
  %s11 = inlined_call_operand.vmem [shape: bf16[64,32], index: 11, kind: input, shape index: {}]
  %s12 = inlined_call_operand.vmem [shape: f32[1,32], index: 12, kind: input, shape index: {}]
  %s13 = inlined_call_operand.vmem [shape: f32[1,32], index: 13, kind: input, shape index: {}]
  %s14 = inlined_call_operand.vmem [shape: f32[1,32], index: 14, kind: input, shape index: {}]
  %s15 = inlined_call_operand.vmem [shape: bf16[2,8,32], index: 15, kind: output, shape index: {}]
  %s16 = sld [smem:[#allocation0]]
  $region93: #{transformer_layers_pallas.2} parent=0
    _
  %s18 = ssub.s32 1, %s16
  %s19 = scalar_select 0, %s18, %s16
  loop: start=0, step=1, limit=4
  $region2: #{transformer_layers_pallas.2} parent=0 // loop_pre_header
    _
  $region3: #{transformer_layers_pallas.2} parent=0 // loop_header
    %s21 = sphi 0, %s25
    %p22 = scmp.ge.s32.totalorder %s21, 4
    %s31 = sphi 0, %s33
    %s34 = sphi 0, %s31
    %s35 = sphi 0, %s34
    %s51 = sphi 0, %s35
    %s57 = sphi 0, %s59
    %s60 = sphi 0, %s57
    %s61 = sphi 0, %s60
    %s77 = sphi 0, %s61
    %s81 = sphi 0, %s81
    %s83 = sphi 0, %s81
    %s84 = sphi 0, %s83
    %s98 = sphi 0, %s84
    %s102 = sphi 0, %s102
    %s104 = sphi 0, %s102
    %s105 = sphi 0, %s104
    %s119 = sphi 0, %s105
    %s123 = sphi 0, %s123
    %s125 = sphi 0, %s123
    %s126 = sphi 0, %s125
    %s140 = sphi 0, %s126
    %s144 = sphi 0, %s144
    %s146 = sphi 0, %s144
    %s147 = sphi 0, %s146
    %s161 = sphi 0, %s147
    %s165 = sphi 0, %s165
    %s167 = sphi 0, %s165
    %s168 = sphi 0, %s167
    %s182 = sphi 0, %s168
    %s186 = sphi 0, %s186
    %s188 = sphi 0, %s186
    %s189 = sphi 0, %s188
    %s203 = sphi 0, %s189
    %s207 = sphi 0, %s207
    %s209 = sphi 0, %s207
    %s210 = sphi 0, %s209
    %s224 = sphi 0, %s210
    %s228 = sphi 0, %s228
    %s230 = sphi 0, %s228
    %s231 = sphi 0, %s230
    %s245 = sphi 0, %s231
    %s249 = sphi 0, %s249
    %s251 = sphi 0, %s249
    %s252 = sphi 0, %s251
    %s266 = sphi 0, %s252
    %s270 = sphi 0, %s270
    %s272 = sphi 0, %s270
    %s273 = sphi 0, %s272
    %s287 = sphi 0, %s273
    %s291 = sphi 0, %s291
    %s293 = sphi 0, %s291
    %s294 = sphi 0, %s293
    %s308 = sphi 0, %s294
    %s312 = sphi 0, %s312
    %s314 = sphi 0, %s312
    %s315 = sphi 0, %s314
    %s329 = sphi 0, %s315
    %s333 = sphi 0, %s333
    %s335 = sphi 0, %s333
    %s336 = sphi 0, %s335
    %s350 = sphi 0, %s336
    %s356 = sphi 0, %s358
    %s359 = sphi 0, %s356
    %s360 = sphi 0, %s359
    %s376 = sphi 0, %s360
  $region4: #{transformer_layers_pallas.2} parent=0 // loop_header_branch
    %24 = sbr.rel (%p22) target = $region8
  $region5: #{transformer_layers_pallas.2} parent=0 // loop_body
    %s26 = ssub.s32 %s21, 1
    %s27 = ssub.s32 %s21, 2
    %s28 = sadd.s32 %s21, 1
    %s29 = ssub.s32 %s21, %s28
    %p30 = scmp.eq.s32.totalorder %s29, 0
    %s32 = sadd.s32 %s31, 1
    %s33 = scalar_select %p30, %s31, %s32
    %p36 = pneg %p30
    %p37 = scmp.eq.s32.totalorder %s21, 1
    %p38 = por %p36, %p37
    %p39 = scmp.ne.s32.totalorder %s31, %s34
    %p40 = scmp.eq.s32.totalorder %s21, 0
    %p41 = por %p39, %p40
    %p42 = scmp.ne.s32.totalorder %s31, %s34
    %p43 = scmp.eq.s32.totalorder %s26, 1
    %p44 = por %p42, %p43
    %p45 = scmp.ne.s32.totalorder %s34, %s35
    %p46 = scmp.eq.s32.totalorder %s26, 0
    %p47 = por %p45, %p46
    %p48 = scmp.ne.s32.totalorder %s34, %s35
    %p49 = scmp.eq.s32.totalorder %s27, 1
    %p50 = por %p48, %p49
    %p52 = scmp.ne.s32.totalorder %s35, %s51
    %p53 = scmp.eq.s32.totalorder %s27, 0
    %p54 = por %p52, %p53
    %s55 = ssub.s32 %s21, %s28
    %p56 = scmp.eq.s32.totalorder %s55, 0
    %s58 = sadd.s32 %s57, 1
    %s59 = scalar_select %p56, %s57, %s58
    %p62 = pneg %p56
    %p63 = scmp.eq.s32.totalorder %s21, 1
    %p64 = por %p62, %p63
    %p65 = scmp.ne.s32.totalorder %s57, %s60
    %p66 = scmp.eq.s32.totalorder %s21, 0
    %p67 = por %p65, %p66
    %p68 = scmp.ne.s32.totalorder %s57, %s60
    %p69 = scmp.eq.s32.totalorder %s26, 1
    %p70 = por %p68, %p69
    %p71 = scmp.ne.s32.totalorder %s60, %s61
    %p72 = scmp.eq.s32.totalorder %s26, 0
    %p73 = por %p71, %p72
    %p74 = scmp.ne.s32.totalorder %s60, %s61
    %p75 = scmp.eq.s32.totalorder %s27, 1
    %p76 = por %p74, %p75
    %p78 = scmp.ne.s32.totalorder %s61, %s77
    %p79 = scmp.eq.s32.totalorder %s27, 0
    %p80 = por %p78, %p79
    %s82 = sadd.s32 %s81, 1
    %p85 = scmp.eq.s32.totalorder %s21, 1
    %p86 = scmp.ne.s32.totalorder %s81, %s83
    %p87 = scmp.eq.s32.totalorder %s21, 0
    %p88 = por %p86, %p87
    %p89 = scmp.ne.s32.totalorder %s81, %s83
    %p90 = scmp.eq.s32.totalorder %s26, 1
    %p91 = por %p89, %p90
    %p92 = scmp.ne.s32.totalorder %s83, %s84
    %p93 = scmp.eq.s32.totalorder %s26, 0
    %p94 = por %p92, %p93
    %p95 = scmp.ne.s32.totalorder %s83, %s84
    %p96 = scmp.eq.s32.totalorder %s27, 1
    %p97 = por %p95, %p96
    %p99 = scmp.ne.s32.totalorder %s84, %s98
    %p100 = scmp.eq.s32.totalorder %s27, 0
    %p101 = por %p99, %p100
    %s103 = sadd.s32 %s102, 1
    %p106 = scmp.eq.s32.totalorder %s21, 1
    %p107 = scmp.ne.s32.totalorder %s102, %s104
    %p108 = scmp.eq.s32.totalorder %s21, 0
    %p109 = por %p107, %p108
    %p110 = scmp.ne.s32.totalorder %s102, %s104
    %p111 = scmp.eq.s32.totalorder %s26, 1
    %p112 = por %p110, %p111
    %p113 = scmp.ne.s32.totalorder %s104, %s105
    %p114 = scmp.eq.s32.totalorder %s26, 0
    %p115 = por %p113, %p114
    %p116 = scmp.ne.s32.totalorder %s104, %s105
    %p117 = scmp.eq.s32.totalorder %s27, 1
    %p118 = por %p116, %p117
    %p120 = scmp.ne.s32.totalorder %s105, %s119
    %p121 = scmp.eq.s32.totalorder %s27, 0
    %p122 = por %p120, %p121
    %s124 = sadd.s32 %s123, 1
    %p127 = scmp.eq.s32.totalorder %s21, 1
    %p128 = scmp.ne.s32.totalorder %s123, %s125
    %p129 = scmp.eq.s32.totalorder %s21, 0
    %p130 = por %p128, %p129
    %p131 = scmp.ne.s32.totalorder %s123, %s125
    %p132 = scmp.eq.s32.totalorder %s26, 1
    %p133 = por %p131, %p132
    %p134 = scmp.ne.s32.totalorder %s125, %s126
    %p135 = scmp.eq.s32.totalorder %s26, 0
    %p136 = por %p134, %p135
    %p137 = scmp.ne.s32.totalorder %s125, %s126
    %p138 = scmp.eq.s32.totalorder %s27, 1
    %p139 = por %p137, %p138
    %p141 = scmp.ne.s32.totalorder %s126, %s140
    %p142 = scmp.eq.s32.totalorder %s27, 0
    %p143 = por %p141, %p142
    %s145 = sadd.s32 %s144, 1
    %p148 = scmp.eq.s32.totalorder %s21, 1
    %p149 = scmp.ne.s32.totalorder %s144, %s146
    %p150 = scmp.eq.s32.totalorder %s21, 0
    %p151 = por %p149, %p150
    %p152 = scmp.ne.s32.totalorder %s144, %s146
    %p153 = scmp.eq.s32.totalorder %s26, 1
    %p154 = por %p152, %p153
    %p155 = scmp.ne.s32.totalorder %s146, %s147
    %p156 = scmp.eq.s32.totalorder %s26, 0
    %p157 = por %p155, %p156
    %p158 = scmp.ne.s32.totalorder %s146, %s147
    %p159 = scmp.eq.s32.totalorder %s27, 1
    %p160 = por %p158, %p159
    %p162 = scmp.ne.s32.totalorder %s147, %s161
    %p163 = scmp.eq.s32.totalorder %s27, 0
    %p164 = por %p162, %p163
    %s166 = sadd.s32 %s165, 1
    %p169 = scmp.eq.s32.totalorder %s21, 1
    %p170 = scmp.ne.s32.totalorder %s165, %s167
    %p171 = scmp.eq.s32.totalorder %s21, 0
    %p172 = por %p170, %p171
    %p173 = scmp.ne.s32.totalorder %s165, %s167
    %p174 = scmp.eq.s32.totalorder %s26, 1
    %p175 = por %p173, %p174
    %p176 = scmp.ne.s32.totalorder %s167, %s168
    %p177 = scmp.eq.s32.totalorder %s26, 0
    %p178 = por %p176, %p177
    %p179 = scmp.ne.s32.totalorder %s167, %s168
    %p180 = scmp.eq.s32.totalorder %s27, 1
    %p181 = por %p179, %p180
    %p183 = scmp.ne.s32.totalorder %s168, %s182
    %p184 = scmp.eq.s32.totalorder %s27, 0
    %p185 = por %p183, %p184
    %s187 = sadd.s32 %s186, 1
    %p190 = scmp.eq.s32.totalorder %s21, 1
    %p191 = scmp.ne.s32.totalorder %s186, %s188
    %p192 = scmp.eq.s32.totalorder %s21, 0
    %p193 = por %p191, %p192
    %p194 = scmp.ne.s32.totalorder %s186, %s188
    %p195 = scmp.eq.s32.totalorder %s26, 1
    %p196 = por %p194, %p195
    %p197 = scmp.ne.s32.totalorder %s188, %s189
    %p198 = scmp.eq.s32.totalorder %s26, 0
    %p199 = por %p197, %p198
    %p200 = scmp.ne.s32.totalorder %s188, %s189
    %p201 = scmp.eq.s32.totalorder %s27, 1
    %p202 = por %p200, %p201
    %p204 = scmp.ne.s32.totalorder %s189, %s203
    %p205 = scmp.eq.s32.totalorder %s27, 0
    %p206 = por %p204, %p205
    %s208 = sadd.s32 %s207, 1
    %p211 = scmp.eq.s32.totalorder %s21, 1
    %p212 = scmp.ne.s32.totalorder %s207, %s209
    %p213 = scmp.eq.s32.totalorder %s21, 0
    %p214 = por %p212, %p213
    %p215 = scmp.ne.s32.totalorder %s207, %s209
    %p216 = scmp.eq.s32.totalorder %s26, 1
    %p217 = por %p215, %p216
    %p218 = scmp.ne.s32.totalorder %s209, %s210
    %p219 = scmp.eq.s32.totalorder %s26, 0
    %p220 = por %p218, %p219
    %p221 = scmp.ne.s32.totalorder %s209, %s210
    %p222 = scmp.eq.s32.totalorder %s27, 1
    %p223 = por %p221, %p222
    %p225 = scmp.ne.s32.totalorder %s210, %s224
    %p226 = scmp.eq.s32.totalorder %s27, 0
    %p227 = por %p225, %p226
    %s229 = sadd.s32 %s228, 1
    %p232 = scmp.eq.s32.totalorder %s21, 1
    %p233 = scmp.ne.s32.totalorder %s228, %s230
    %p234 = scmp.eq.s32.totalorder %s21, 0
    %p235 = por %p233, %p234
    %p236 = scmp.ne.s32.totalorder %s228, %s230
    %p237 = scmp.eq.s32.totalorder %s26, 1
    %p238 = por %p236, %p237
    %p239 = scmp.ne.s32.totalorder %s230, %s231
    %p240 = scmp.eq.s32.totalorder %s26, 0
    %p241 = por %p239, %p240
    %p242 = scmp.ne.s32.totalorder %s230, %s231
    %p243 = scmp.eq.s32.totalorder %s27, 1
    %p244 = por %p242, %p243
    %p246 = scmp.ne.s32.totalorder %s231, %s245
    %p247 = scmp.eq.s32.totalorder %s27, 0
    %p248 = por %p246, %p247
    %s250 = sadd.s32 %s249, 1
    %p253 = scmp.eq.s32.totalorder %s21, 1
    %p254 = scmp.ne.s32.totalorder %s249, %s251
    %p255 = scmp.eq.s32.totalorder %s21, 0
    %p256 = por %p254, %p255
    %p257 = scmp.ne.s32.totalorder %s249, %s251
    %p258 = scmp.eq.s32.totalorder %s26, 1
    %p259 = por %p257, %p258
    %p260 = scmp.ne.s32.totalorder %s251, %s252
    %p261 = scmp.eq.s32.totalorder %s26, 0
    %p262 = por %p260, %p261
    %p263 = scmp.ne.s32.totalorder %s251, %s252
    %p264 = scmp.eq.s32.totalorder %s27, 1
    %p265 = por %p263, %p264
    %p267 = scmp.ne.s32.totalorder %s252, %s266
    %p268 = scmp.eq.s32.totalorder %s27, 0
    %p269 = por %p267, %p268
    %s271 = sadd.s32 %s270, 1
    %p274 = scmp.eq.s32.totalorder %s21, 1
    %p275 = scmp.ne.s32.totalorder %s270, %s272
    %p276 = scmp.eq.s32.totalorder %s21, 0
    %p277 = por %p275, %p276
    %p278 = scmp.ne.s32.totalorder %s270, %s272
    %p279 = scmp.eq.s32.totalorder %s26, 1
    %p280 = por %p278, %p279
    %p281 = scmp.ne.s32.totalorder %s272, %s273
    %p282 = scmp.eq.s32.totalorder %s26, 0
    %p283 = por %p281, %p282
    %p284 = scmp.ne.s32.totalorder %s272, %s273
    %p285 = scmp.eq.s32.totalorder %s27, 1
    %p286 = por %p284, %p285
    %p288 = scmp.ne.s32.totalorder %s273, %s287
    %p289 = scmp.eq.s32.totalorder %s27, 0
    %p290 = por %p288, %p289
    %s292 = sadd.s32 %s291, 1
    %p295 = scmp.eq.s32.totalorder %s21, 1
    %p296 = scmp.ne.s32.totalorder %s291, %s293
    %p297 = scmp.eq.s32.totalorder %s21, 0
    %p298 = por %p296, %p297
    %p299 = scmp.ne.s32.totalorder %s291, %s293
    %p300 = scmp.eq.s32.totalorder %s26, 1
    %p301 = por %p299, %p300
    %p302 = scmp.ne.s32.totalorder %s293, %s294
    %p303 = scmp.eq.s32.totalorder %s26, 0
    %p304 = por %p302, %p303
    %p305 = scmp.ne.s32.totalorder %s293, %s294
    %p306 = scmp.eq.s32.totalorder %s27, 1
    %p307 = por %p305, %p306
    %p309 = scmp.ne.s32.totalorder %s294, %s308
    %p310 = scmp.eq.s32.totalorder %s27, 0
    %p311 = por %p309, %p310
    %s313 = sadd.s32 %s312, 1
    %p316 = scmp.eq.s32.totalorder %s21, 1
    %p317 = scmp.ne.s32.totalorder %s312, %s314
    %p318 = scmp.eq.s32.totalorder %s21, 0
    %p319 = por %p317, %p318
    %p320 = scmp.ne.s32.totalorder %s312, %s314
    %p321 = scmp.eq.s32.totalorder %s26, 1
    %p322 = por %p320, %p321
    %p323 = scmp.ne.s32.totalorder %s314, %s315
    %p324 = scmp.eq.s32.totalorder %s26, 0
    %p325 = por %p323, %p324
    %p326 = scmp.ne.s32.totalorder %s314, %s315
    %p327 = scmp.eq.s32.totalorder %s27, 1
    %p328 = por %p326, %p327
    %p330 = scmp.ne.s32.totalorder %s315, %s329
    %p331 = scmp.eq.s32.totalorder %s27, 0
    %p332 = por %p330, %p331
    %s334 = sadd.s32 %s333, 1
    %p337 = scmp.eq.s32.totalorder %s21, 1
    %p338 = scmp.ne.s32.totalorder %s333, %s335
    %p339 = scmp.eq.s32.totalorder %s21, 0
    %p340 = por %p338, %p339
    %p341 = scmp.ne.s32.totalorder %s333, %s335
    %p342 = scmp.eq.s32.totalorder %s26, 1
    %p343 = por %p341, %p342
    %p344 = scmp.ne.s32.totalorder %s335, %s336
    %p345 = scmp.eq.s32.totalorder %s26, 0
    %p346 = por %p344, %p345
    %p347 = scmp.ne.s32.totalorder %s335, %s336
    %p348 = scmp.eq.s32.totalorder %s27, 1
    %p349 = por %p347, %p348
    %p351 = scmp.ne.s32.totalorder %s336, %s350
    %p352 = scmp.eq.s32.totalorder %s27, 0
    %p353 = por %p351, %p352
    %s354 = ssub.s32 %s21, %s28
    %p355 = scmp.eq.s32.totalorder %s354, 0
    %s357 = sadd.s32 %s356, 1
    %s358 = scalar_select %p355, %s356, %s357
    %p361 = pneg %p355
    %p362 = scmp.eq.s32.totalorder %s21, 1
    %p363 = por %p361, %p362
    %p364 = scmp.ne.s32.totalorder %s356, %s359
    %p365 = scmp.eq.s32.totalorder %s21, 0
    %p366 = por %p364, %p365
    %p367 = scmp.ne.s32.totalorder %s356, %s359
    %p368 = scmp.eq.s32.totalorder %s26, 1
    %p369 = por %p367, %p368
    %p370 = scmp.ne.s32.totalorder %s359, %s360
    %p371 = scmp.eq.s32.totalorder %s26, 0
    %p372 = por %p370, %p371
    %p373 = scmp.ne.s32.totalorder %s359, %s360
    %p374 = scmp.eq.s32.totalorder %s27, 1
    %p375 = por %p373, %p374
    %p377 = scmp.ne.s32.totalorder %s360, %s376
    %p378 = scmp.eq.s32.totalorder %s27, 0
    %p379 = por %p377, %p378
    %p380 = scmp.le.s32.totalorder 1, %s21
    %p381 = scmp.lt.s32.totalorder %s21, 3
    %p382 = pnand %p380, %p381
    %p383 = pneg %p382
    // Predicated region
    $region9: #{transformer_layers_pallas.2} parent=5 // pred_check
      _
    $region10: #{transformer_layers_pallas.2} parent=5 // pred_check_branch
      %385 = sbr.rel (%p382) target = $region12
    $region11: #{transformer_layers_pallas.2} parent=5 // pred_region
      %s386 = ssub.s32 %s21, 1
      // Predicated region
      $region13: #{transformer_layers_pallas.2} parent=11 // pred_check
        %p387 = pneg %p94
      $region14: #{transformer_layers_pallas.2} parent=11 // pred_check_branch
        %389 = sbr.rel (%p387) target = $region16
      $region15: #{transformer_layers_pallas.2} parent=11 // pred_region
        _
      $region16: #{transformer_layers_pallas.2} parent=11 // pred_fallthru
        _
      // Predicated region
      $region17: #{transformer_layers_pallas.2} parent=11 // pred_check
        %p390 = pneg %p115
      $region18: #{transformer_layers_pallas.2} parent=11 // pred_check_branch
        %392 = sbr.rel (%p390) target = $region20
      $region19: #{transformer_layers_pallas.2} parent=11 // pred_region
        _
      $region20: #{transformer_layers_pallas.2} parent=11 // pred_fallthru
        _
      // Predicated region
      $region21: #{transformer_layers_pallas.2} parent=11 // pred_check
        %p393 = pneg %p136
      $region22: #{transformer_layers_pallas.2} parent=11 // pred_check_branch
        %395 = sbr.rel (%p393) target = $region24
      $region23: #{transformer_layers_pallas.2} parent=11 // pred_region
        _
      $region24: #{transformer_layers_pallas.2} parent=11 // pred_fallthru
        _
      // Predicated region
      $region25: #{transformer_layers_pallas.2} parent=11 // pred_check
        %p396 = pneg %p157
      $region26: #{transformer_layers_pallas.2} parent=11 // pred_check_branch
        %398 = sbr.rel (%p396) target = $region28
      $region27: #{transformer_layers_pallas.2} parent=11 // pred_region
        _
      $region28: #{transformer_layers_pallas.2} parent=11 // pred_fallthru
        _
      // Predicated region
      $region29: #{transformer_layers_pallas.2} parent=11 // pred_check
        %p399 = pneg %p178
      $region30: #{transformer_layers_pallas.2} parent=11 // pred_check_branch
        %401 = sbr.rel (%p399) target = $region32
      $region31: #{transformer_layers_pallas.2} parent=11 // pred_region
        _
      $region32: #{transformer_layers_pallas.2} parent=11 // pred_fallthru
        _
      // Predicated region
      $region33: #{transformer_layers_pallas.2} parent=11 // pred_check
        %p402 = pneg %p199
      $region34: #{transformer_layers_pallas.2} parent=11 // pred_check_branch
        %404 = sbr.rel (%p402) target = $region36
      $region35: #{transformer_layers_pallas.2} parent=11 // pred_region
        _
      $region36: #{transformer_layers_pallas.2} parent=11 // pred_fallthru
        _
      // Predicated region
      $region37: #{transformer_layers_pallas.2} parent=11 // pred_check
        %p405 = pneg %p220
      $region38: #{transformer_layers_pallas.2} parent=11 // pred_check_branch
        %407 = sbr.rel (%p405) target = $region40
      $region39: #{transformer_layers_pallas.2} parent=11 // pred_region
        _
      $region40: #{transformer_layers_pallas.2} parent=11 // pred_fallthru
        _
      // Predicated region
      $region41: #{transformer_layers_pallas.2} parent=11 // pred_check
        %p408 = pneg %p241
      $region42: #{transformer_layers_pallas.2} parent=11 // pred_check_branch
        %410 = sbr.rel (%p408) target = $region44
      $region43: #{transformer_layers_pallas.2} parent=11 // pred_region
        _
      $region44: #{transformer_layers_pallas.2} parent=11 // pred_fallthru
        _
      // Predicated region
      $region45: #{transformer_layers_pallas.2} parent=11 // pred_check
        %p411 = pneg %p262
      $region46: #{transformer_layers_pallas.2} parent=11 // pred_check_branch
        %413 = sbr.rel (%p411) target = $region48
      $region47: #{transformer_layers_pallas.2} parent=11 // pred_region
        _
      $region48: #{transformer_layers_pallas.2} parent=11 // pred_fallthru
        _
      // Predicated region
      $region49: #{transformer_layers_pallas.2} parent=11 // pred_check
        %p414 = pneg %p283
      $region50: #{transformer_layers_pallas.2} parent=11 // pred_check_branch
        %416 = sbr.rel (%p414) target = $region52
      $region51: #{transformer_layers_pallas.2} parent=11 // pred_region
        _
      $region52: #{transformer_layers_pallas.2} parent=11 // pred_fallthru
        _
      // Predicated region
      $region53: #{transformer_layers_pallas.2} parent=11 // pred_check
        %p417 = pneg %p304
      $region54: #{transformer_layers_pallas.2} parent=11 // pred_check_branch
        %419 = sbr.rel (%p417) target = $region56
      $region55: #{transformer_layers_pallas.2} parent=11 // pred_region
        _
      $region56: #{transformer_layers_pallas.2} parent=11 // pred_fallthru
        _
      // Predicated region
      $region57: #{transformer_layers_pallas.2} parent=11 // pred_check
        %p420 = pneg %p325
      $region58: #{transformer_layers_pallas.2} parent=11 // pred_check_branch
        %422 = sbr.rel (%p420) target = $region60
      $region59: #{transformer_layers_pallas.2} parent=11 // pred_region
        _
      $region60: #{transformer_layers_pallas.2} parent=11 // pred_fallthru
        _
      // Predicated region
      $region61: #{transformer_layers_pallas.2} parent=11 // pred_check
        %p423 = pneg %p346
      $region62: #{transformer_layers_pallas.2} parent=11 // pred_check_branch
        %425 = sbr.rel (%p423) target = $region64
      $region63: #{transformer_layers_pallas.2} parent=11 // pred_region
        _
      $region64: #{transformer_layers_pallas.2} parent=11 // pred_fallthru
        _
    $region12: #{transformer_layers_pallas.2} parent=5 // pred_fallthru
      _
    %p426 = scmp.lt.s32.totalorder %s21, 2
    // Predicated region
    $region65: #{transformer_layers_pallas.2} parent=5 // pred_check
      %p427 = pneg %p426
    $region66: #{transformer_layers_pallas.2} parent=5 // pred_check_branch
      %429 = sbr.rel (%p427) target = $region68
    $region67: #{transformer_layers_pallas.2} parent=5 // pred_region
      // Predicated region
      $region69: #{transformer_layers_pallas.2} parent=67 // pred_check
        %p430 = pneg %p41
      $region70: #{transformer_layers_pallas.2} parent=67 // pred_check_branch
        %432 = sbr.rel (%p430) target = $region72
      $region71: #{transformer_layers_pallas.2} parent=67 // pred_region
        %p433 = scmp.lt.s32.totalorder %s21, 1
        %s434 = scalar_select %p433, %s21, 1
        %s435 = smul.addr %s434, 4
        %s436 = scalar_lea.vmem %s0, %s435
      $region72: #{transformer_layers_pallas.2} parent=67 // pred_fallthru
        _
      // Predicated region
      $region73: #{transformer_layers_pallas.2} parent=67 // pred_check
        %p437 = pneg %p67
      $region74: #{transformer_layers_pallas.2} parent=67 // pred_check_branch
        %439 = sbr.rel (%p437) target = $region76
      $region75: #{transformer_layers_pallas.2} parent=67 // pred_region
        %p440 = scmp.lt.s32.totalorder %s21, 1
        %s441 = scalar_select %p440, %s21, 1
        %s442 = scalar_lea.vmem %s1, %s441
      $region76: #{transformer_layers_pallas.2} parent=67 // pred_fallthru
        _
    $region68: #{transformer_layers_pallas.2} parent=5 // pred_fallthru
      _
    %p443 = scmp.le.s32.totalorder 1, %s21
    %p444 = scmp.lt.s32.totalorder %s21, 3
    %p445 = pnand %p443, %p444
    %p446 = pneg %p445
    // Predicated region
    $region77: #{transformer_layers_pallas.2} parent=5 // pred_check
      _
    $region78: #{transformer_layers_pallas.2} parent=5 // pred_check_branch
      %448 = sbr.rel (%p445) target = $region80
    $region79: #{transformer_layers_pallas.2} parent=5 // pred_region
      %s449 = ssub.s32 %s21, 1
      %p450 = scmp.lt.s32.totalorder %s26, 1
      %s451 = scalar_select %p450, %s26, 1
      %s452 = smul.addr %s451, 4
      %s453 = scalar_lea.vmem %s0, %s452
      %p454 = pneg %p47
      %p455 = pneg %p44
      %p456 = scmp.lt.s32.totalorder %s26, 1
      %s457 = scalar_select %p456, %s26, 1
      %s458 = scalar_lea.vmem %s1, %s457
      %p459 = pneg %p73
      %p460 = pneg %p70
      %p461 = pneg %p94
      %p462 = pneg %p91
      %p463 = pneg %p115
      %p464 = pneg %p112
      %p465 = pneg %p136
      %p466 = pneg %p133
      %p467 = pneg %p157
      %p468 = pneg %p154
      %p469 = pneg %p178
      %p470 = pneg %p175
      %p471 = pneg %p199
      %p472 = pneg %p196
      %p473 = pneg %p220
      %p474 = pneg %p217
      %p475 = pneg %p241
      %p476 = pneg %p238
      %p477 = pneg %p262
      %p478 = pneg %p259
      %p479 = pneg %p283
      %p480 = pneg %p280
      %p481 = pneg %p304
      %p482 = pneg %p301
      %p483 = pneg %p325
      %p484 = pneg %p322
      %p485 = pneg %p346
      %p486 = pneg %p343
      %p487 = pneg %p372
      %p488 = pneg %p369
      %p489 = scmp.lt.s32.totalorder %s26, 1
      %s490 = scalar_select %p489, %s26, 1
      %s491 = smul.addr %s490, 4
      %s492 = scalar_lea.vmem %s15, %s491
      %p493 = scmp.lt.s32.totalorder %s26, 1
      %s494 = scalar_select %p493, %s26, 1
      %s495 = smul.addr %s494, 4
      %s496 = scalar_lea.vmem %s0, %s495
      %p497 = scmp.lt.s32.totalorder %s26, 1
      %s498 = scalar_select %p497, %s26, 1
      %s499 = scalar_lea.vmem %s1, %s498
      %p500 = scmp.lt.s32.totalorder %s26, 1
      %s501 = scalar_select %p500, %s26, 1
      %s502 = smul.addr %s501, 4
      %s503 = scalar_lea.vmem %s15, %s502
      %v505 = vld [vmem:[%s496] sm:$0xf]
      %v506 = vunpack.c.l.bf16 %v505
      %v507 = vld [vmem:[%s2] sm:$0xf]
      %v508 = vld [vmem:[%s2 + $0x4] sm:$0xf]
      %v509 = vld [vmem:[%s2 + $0x8] sm:$0xf]
      %v510 = vld [vmem:[%s2 + $0xc] sm:$0xf]
      %v511 = vld [vmem:[%s2 + $0x10] sm:$0xf]
      %v512 = vld [vmem:[%s2 + $0x14] sm:$0xf]
      %v513 = vld [vmem:[%s2 + $0x18] sm:$0xf]
      %v514 = vld [vmem:[%s2 + $0x1c] sm:$0xf]
      %v515 = vld [vmem:[%s2 + $0x20] sm:$0xf]
      %v516 = vld [vmem:[%s2 + $0x24] sm:$0xf]
      %v517 = vld [vmem:[%s2 + $0x28] sm:$0xf]
      %v518 = vld [vmem:[%s2 + $0x2c] sm:$0xf]
      %v519 = vld [vmem:[%s2 + $0x30] sm:$0xf]
      %v520 = vld [vmem:[%s2 + $0x34] sm:$0xf]
      %v521 = vld [vmem:[%s2 + $0x38] sm:$0xf]
      %v522 = vld [vmem:[%s2 + $0x3c] sm:$0xf]
      %v527 = vunpack.c.l.b16 %v507
      %v528 = vunpack.c.l.b16 %v508
      %v529 = vunpack.c.l.b16 %v509
      %v530 = vunpack.c.l.b16 %v510
      %v531 = vpack.c.b16 %v528, %v527
      %v532 = vpack.c.b16 %v530, %v529
      %vm535 = vcmask 261120
      %v537 = vsel %vm535, %v505, 0
      %539 = vmatprep.subr.bf16.mxu0 0
      %540 = vmatpush1.bf16.msra.mxu0 %v531
      %541 = vmatprep.subr.bf16.mxu0 0
      %542 = vmatpush1.bf16.msra.mxu0 %v532
      %543 = vmatprep.subr.bf16.mxu0 0
      %544 = vmatpush1.bf16.msra.mxu0 0
      %545 = vmatprep.subr.bf16.mxu0 0
      %546 = vmatpush1.bf16.msra.mxu0 0
      %547 = vmatprep.subr.bf16.mxu0 0
      %548 = vmatpush1.bf16.msra.mxu0 0
      %549 = vmatprep.subr.bf16.mxu0 0
      %550 = vmatpush1.bf16.msra.mxu0 0
      %551 = vmatprep.subr.bf16.mxu0 0
      %552 = vmatpush1.bf16.msra.mxu0 0
      %553 = vmatprep.subr.bf16.mxu0 0
      %554 = vmatpush1.bf16.msra.mxu0 0
      %555 = vmatprep.subr.bf16.mxu0 0
      %556 = vmatpush1.bf16.msra.mxu0 0
      %557 = vmatprep.subr.bf16.mxu0 0
      %558 = vmatpush1.bf16.msra.mxu0 0
      %559 = vmatprep.subr.bf16.mxu0 0
      %560 = vmatpush1.bf16.msra.mxu0 0
      %561 = vmatprep.subr.bf16.mxu0 0
      %562 = vmatpush1.bf16.msra.mxu0 0
      %563 = vmatprep.subr.bf16.mxu0 0
      %564 = vmatpush1.bf16.msra.mxu0 0
      %565 = vmatprep.subr.bf16.mxu0 0
      %566 = vmatpush1.bf16.msra.mxu0 0
      %567 = vmatprep.subr.bf16.mxu0 0
      %568 = vmatpush1.bf16.msra.mxu0 0
      %569 = vmatprep.subr.bf16.mxu0 0
      %570 = vmatpush1.bf16.msra.mxu0 0
      %571 = vmatprep.mubr.bf16.mxu0 0
      %572 = vmatmul.mubr.bf16.gmra.mrb[0].mxu0 %v537
      %v573 = vpop.f32.mrb[0].mxu0
      %v574 = vadd.f32 0.0, %v573
      %v575 = vpop.f32.mrb[0].mxu0
      %v576 = vpop.f32.mrb[0].mxu0
      %v577 = vpop.f32.mrb[0].mxu0
      %578 = vdwg.mxu0
      %v583 = vunpack.c.l.b16 %v511
      %v584 = vunpack.c.l.b16 %v512
      %v585 = vunpack.c.l.b16 %v513
      %v586 = vunpack.c.l.b16 %v514
      %v587 = vpack.c.b16 %v584, %v583
      %v588 = vpack.c.b16 %v586, %v585
      %591 = vmatprep.subr.bf16.mxu0 0
      %592 = vmatpush1.bf16.msra.mxu0 %v587
      %593 = vmatprep.subr.bf16.mxu0 0
      %594 = vmatpush1.bf16.msra.mxu0 %v588
      %595 = vmatprep.subr.bf16.mxu0 0
      %596 = vmatpush1.bf16.msra.mxu0 0
      %597 = vmatprep.subr.bf16.mxu0 0
      %598 = vmatpush1.bf16.msra.mxu0 0
      %599 = vmatprep.subr.bf16.mxu0 0
      %600 = vmatpush1.bf16.msra.mxu0 0
      %601 = vmatprep.subr.bf16.mxu0 0
      %602 = vmatpush1.bf16.msra.mxu0 0
      %603 = vmatprep.subr.bf16.mxu0 0
      %604 = vmatpush1.bf16.msra.mxu0 0
      %605 = vmatprep.subr.bf16.mxu0 0
      %606 = vmatpush1.bf16.msra.mxu0 0
      %607 = vmatprep.subr.bf16.mxu0 0
      %608 = vmatpush1.bf16.msra.mxu0 0
      %609 = vmatprep.subr.bf16.mxu0 0
      %610 = vmatpush1.bf16.msra.mxu0 0
      %611 = vmatprep.subr.bf16.mxu0 0
      %612 = vmatpush1.bf16.msra.mxu0 0
      %613 = vmatprep.subr.bf16.mxu0 0
      %614 = vmatpush1.bf16.msra.mxu0 0
      %615 = vmatprep.subr.bf16.mxu0 0
      %616 = vmatpush1.bf16.msra.mxu0 0
      %617 = vmatprep.subr.bf16.mxu0 0
      %618 = vmatpush1.bf16.msra.mxu0 0
      %619 = vmatprep.subr.bf16.mxu0 0
      %620 = vmatpush1.bf16.msra.mxu0 0
      %621 = vmatprep.subr.bf16.mxu0 0
      %622 = vmatpush1.bf16.msra.mxu0 0
      %623 = vmatprep.mubr.bf16.mxu0 0
      %624 = vmatmul.mubr.bf16.gmra.mrb[0].mxu0 %v537
      %v625 = vpop.f32.mrb[0].mxu0
      %v626 = vadd.f32 0.0, %v625
      %v627 = vpop.f32.mrb[0].mxu0
      %v628 = vpop.f32.mrb[0].mxu0
      %v629 = vpop.f32.mrb[0].mxu0
      %630 = vdwg.mxu0
      %v635 = vunpack.c.l.b16 %v515
      %v636 = vunpack.c.l.b16 %v516
      %v637 = vunpack.c.l.b16 %v517
      %v638 = vunpack.c.l.b16 %v518
      %v639 = vpack.c.b16 %v636, %v635
      %v640 = vpack.c.b16 %v638, %v637
      %643 = vmatprep.subr.bf16.mxu0 0
      %644 = vmatpush1.bf16.msra.mxu0 %v639
      %645 = vmatprep.subr.bf16.mxu0 0
      %646 = vmatpush1.bf16.msra.mxu0 %v640
      %647 = vmatprep.subr.bf16.mxu0 0
      %648 = vmatpush1.bf16.msra.mxu0 0
      %649 = vmatprep.subr.bf16.mxu0 0
      %650 = vmatpush1.bf16.msra.mxu0 0
      %651 = vmatprep.subr.bf16.mxu0 0
      %652 = vmatpush1.bf16.msra.mxu0 0
      %653 = vmatprep.subr.bf16.mxu0 0
      %654 = vmatpush1.bf16.msra.mxu0 0
      %655 = vmatprep.subr.bf16.mxu0 0
      %656 = vmatpush1.bf16.msra.mxu0 0
      %657 = vmatprep.subr.bf16.mxu0 0
      %658 = vmatpush1.bf16.msra.mxu0 0
      %659 = vmatprep.subr.bf16.mxu0 0
      %660 = vmatpush1.bf16.msra.mxu0 0
      %661 = vmatprep.subr.bf16.mxu0 0
      %662 = vmatpush1.bf16.msra.mxu0 0
      %663 = vmatprep.subr.bf16.mxu0 0
      %664 = vmatpush1.bf16.msra.mxu0 0
      %665 = vmatprep.subr.bf16.mxu0 0
      %666 = vmatpush1.bf16.msra.mxu0 0
      %667 = vmatprep.subr.bf16.mxu0 0
      %668 = vmatpush1.bf16.msra.mxu0 0
      %669 = vmatprep.subr.bf16.mxu0 0
      %670 = vmatpush1.bf16.msra.mxu0 0
      %671 = vmatprep.subr.bf16.mxu0 0
      %672 = vmatpush1.bf16.msra.mxu0 0
      %673 = vmatprep.subr.bf16.mxu0 0
      %674 = vmatpush1.bf16.msra.mxu0 0
      %675 = vmatprep.mubr.bf16.mxu0 0
      %676 = vmatmul.mubr.bf16.gmra.mrb[0].mxu0 %v537
      %v677 = vpop.f32.mrb[0].mxu0
      %v678 = vadd.f32 0.0, %v677
      %v679 = vpop.f32.mrb[0].mxu0
      %v680 = vpop.f32.mrb[0].mxu0
      %v681 = vpop.f32.mrb[0].mxu0
      %682 = vdwg.mxu0
      %v687 = vunpack.c.l.b16 %v519
      %v688 = vunpack.c.l.b16 %v520
      %v689 = vunpack.c.l.b16 %v521
      %v690 = vunpack.c.l.b16 %v522
      %v691 = vpack.c.b16 %v688, %v687
      %v692 = vpack.c.b16 %v690, %v689
      %695 = vmatprep.subr.bf16.mxu0 0
      %696 = vmatpush1.bf16.msra.mxu0 %v691
      %697 = vmatprep.subr.bf16.mxu0 0
      %698 = vmatpush1.bf16.msra.mxu0 %v692
      %699 = vmatprep.subr.bf16.mxu0 0
      %700 = vmatpush1.bf16.msra.mxu0 0
      %701 = vmatprep.subr.bf16.mxu0 0
      %702 = vmatpush1.bf16.msra.mxu0 0
      %703 = vmatprep.subr.bf16.mxu0 0
      %704 = vmatpush1.bf16.msra.mxu0 0
      %705 = vmatprep.subr.bf16.mxu0 0
      %706 = vmatpush1.bf16.msra.mxu0 0
      %707 = vmatprep.subr.bf16.mxu0 0
      %708 = vmatpush1.bf16.msra.mxu0 0
      %709 = vmatprep.subr.bf16.mxu0 0
      %710 = vmatpush1.bf16.msra.mxu0 0
      %711 = vmatprep.subr.bf16.mxu0 0
      %712 = vmatpush1.bf16.msra.mxu0 0
      %713 = vmatprep.subr.bf16.mxu0 0
      %714 = vmatpush1.bf16.msra.mxu0 0
      %715 = vmatprep.subr.bf16.mxu0 0
      %716 = vmatpush1.bf16.msra.mxu0 0
      %717 = vmatprep.subr.bf16.mxu0 0
      %718 = vmatpush1.bf16.msra.mxu0 0
      %719 = vmatprep.subr.bf16.mxu0 0
      %720 = vmatpush1.bf16.msra.mxu0 0
      %721 = vmatprep.subr.bf16.mxu0 0
      %722 = vmatpush1.bf16.msra.mxu0 0
      %723 = vmatprep.subr.bf16.mxu0 0
      %724 = vmatpush1.bf16.msra.mxu0 0
      %725 = vmatprep.subr.bf16.mxu0 0
      %726 = vmatpush1.bf16.msra.mxu0 0
      %727 = vmatprep.mubr.bf16.mxu0 0
      %728 = vmatmul.mubr.bf16.gmra.mrb[0].mxu0 %v537
      %v729 = vpop.f32.mrb[0].mxu0
      %v730 = vadd.f32 0.0, %v729
      %v731 = vpop.f32.mrb[0].mxu0
      %v732 = vpop.f32.mrb[0].mxu0
      %v733 = vpop.f32.mrb[0].mxu0
      %734 = vdwg.mxu0
      %v735 = vld [vmem:[%s3] sm:$0xf]
      %v736 = vld [vmem:[%s3 + $0x4] sm:$0xf]
      %v737 = vld [vmem:[%s3 + $0x8] sm:$0xf]
      %v738 = vld [vmem:[%s3 + $0xc] sm:$0xf]
      %v739 = vld [vmem:[%s3 + $0x10] sm:$0xf]
      %v740 = vld [vmem:[%s3 + $0x14] sm:$0xf]
      %v741 = vld [vmem:[%s3 + $0x18] sm:$0xf]
      %v742 = vld [vmem:[%s3 + $0x1c] sm:$0xf]
      %v743 = vld [vmem:[%s3 + $0x20] sm:$0xf]
      %v744 = vld [vmem:[%s3 + $0x24] sm:$0xf]
      %v745 = vld [vmem:[%s3 + $0x28] sm:$0xf]
      %v746 = vld [vmem:[%s3 + $0x2c] sm:$0xf]
      %v747 = vld [vmem:[%s3 + $0x30] sm:$0xf]
      %v748 = vld [vmem:[%s3 + $0x34] sm:$0xf]
      %v749 = vld [vmem:[%s3 + $0x38] sm:$0xf]
      %v750 = vld [vmem:[%s3 + $0x3c] sm:$0xf]
      %v755 = vunpack.c.l.b16 %v735
      %v756 = vunpack.c.l.b16 %v736
      %v757 = vunpack.c.l.b16 %v737
      %v758 = vunpack.c.l.b16 %v738
      %v759 = vpack.c.b16 %v756, %v755
      %v760 = vpack.c.b16 %v758, %v757
      %763 = vmatprep.subr.bf16.mxu0 0
      %764 = vmatpush1.bf16.msra.mxu0 %v759
      %765 = vmatprep.subr.bf16.mxu0 0
      %766 = vmatpush1.bf16.msra.mxu0 %v760
      %767 = vmatprep.subr.bf16.mxu0 0
      %768 = vmatpush1.bf16.msra.mxu0 0
      %769 = vmatprep.subr.bf16.mxu0 0
      %770 = vmatpush1.bf16.msra.mxu0 0
      %771 = vmatprep.subr.bf16.mxu0 0
      %772 = vmatpush1.bf16.msra.mxu0 0
      %773 = vmatprep.subr.bf16.mxu0 0
      %774 = vmatpush1.bf16.msra.mxu0 0
      %775 = vmatprep.subr.bf16.mxu0 0
      %776 = vmatpush1.bf16.msra.mxu0 0
      %777 = vmatprep.subr.bf16.mxu0 0
      %778 = vmatpush1.bf16.msra.mxu0 0
      %779 = vmatprep.subr.bf16.mxu0 0
      %780 = vmatpush1.bf16.msra.mxu0 0
      %781 = vmatprep.subr.bf16.mxu0 0
      %782 = vmatpush1.bf16.msra.mxu0 0
      %783 = vmatprep.subr.bf16.mxu0 0
      %784 = vmatpush1.bf16.msra.mxu0 0
      %785 = vmatprep.subr.bf16.mxu0 0
      %786 = vmatpush1.bf16.msra.mxu0 0
      %787 = vmatprep.subr.bf16.mxu0 0
      %788 = vmatpush1.bf16.msra.mxu0 0
      %789 = vmatprep.subr.bf16.mxu0 0
      %790 = vmatpush1.bf16.msra.mxu0 0
      %791 = vmatprep.subr.bf16.mxu0 0
      %792 = vmatpush1.bf16.msra.mxu0 0
      %793 = vmatprep.subr.bf16.mxu0 0
      %794 = vmatpush1.bf16.msra.mxu0 0
      %795 = vmatprep.mubr.bf16.mxu0 0
      %796 = vmatmul.mubr.bf16.gmra.mrb[0].mxu0 %v537
      %v797 = vpop.f32.mrb[0].mxu0
      %v798 = vadd.f32 0.0, %v797
      %v799 = vpop.f32.mrb[0].mxu0
      %v800 = vpop.f32.mrb[0].mxu0
      %v801 = vpop.f32.mrb[0].mxu0
      %802 = vdwg.mxu0
      %v807 = vunpack.c.l.b16 %v739
      %v808 = vunpack.c.l.b16 %v740
      %v809 = vunpack.c.l.b16 %v741
      %v810 = vunpack.c.l.b16 %v742
      %v811 = vpack.c.b16 %v808, %v807
      %v812 = vpack.c.b16 %v810, %v809
      %815 = vmatprep.subr.bf16.mxu0 0
      %816 = vmatpush1.bf16.msra.mxu0 %v811
      %817 = vmatprep.subr.bf16.mxu0 0
      %818 = vmatpush1.bf16.msra.mxu0 %v812
      %819 = vmatprep.subr.bf16.mxu0 0
      %820 = vmatpush1.bf16.msra.mxu0 0
      %821 = vmatprep.subr.bf16.mxu0 0
      %822 = vmatpush1.bf16.msra.mxu0 0
      %823 = vmatprep.subr.bf16.mxu0 0
      %824 = vmatpush1.bf16.msra.mxu0 0
      %825 = vmatprep.subr.bf16.mxu0 0
      %826 = vmatpush1.bf16.msra.mxu0 0
      %827 = vmatprep.subr.bf16.mxu0 0
      %828 = vmatpush1.bf16.msra.mxu0 0
      %829 = vmatprep.subr.bf16.mxu0 0
      %830 = vmatpush1.bf16.msra.mxu0 0
      %831 = vmatprep.subr.bf16.mxu0 0
      %832 = vmatpush1.bf16.msra.mxu0 0
      %833 = vmatprep.subr.bf16.mxu0 0
      %834 = vmatpush1.bf16.msra.mxu0 0
      %835 = vmatprep.subr.bf16.mxu0 0
      %836 = vmatpush1.bf16.msra.mxu0 0
      %837 = vmatprep.subr.bf16.mxu0 0
      %838 = vmatpush1.bf16.msra.mxu0 0
      %839 = vmatprep.subr.bf16.mxu0 0
      %840 = vmatpush1.bf16.msra.mxu0 0
      %841 = vmatprep.subr.bf16.mxu0 0
      %842 = vmatpush1.bf16.msra.mxu0 0
      %843 = vmatprep.subr.bf16.mxu0 0
      %844 = vmatpush1.bf16.msra.mxu0 0
      %845 = vmatprep.subr.bf16.mxu0 0
      %846 = vmatpush1.bf16.msra.mxu0 0
      %847 = vmatprep.mubr.bf16.mxu0 0
      %848 = vmatmul.mubr.bf16.gmra.mrb[0].mxu0 %v537
      %v849 = vpop.f32.mrb[0].mxu0
      %v850 = vadd.f32 0.0, %v849
      %v851 = vpop.f32.mrb[0].mxu0
      %v852 = vpop.f32.mrb[0].mxu0
      %v853 = vpop.f32.mrb[0].mxu0
      %854 = vdwg.mxu0
      %v859 = vunpack.c.l.b16 %v743
      %v860 = vunpack.c.l.b16 %v744
      %v861 = vunpack.c.l.b16 %v745
      %v862 = vunpack.c.l.b16 %v746
      %v863 = vpack.c.b16 %v860, %v859
      %v864 = vpack.c.b16 %v862, %v861
      %867 = vmatprep.subr.bf16.mxu0 0
      %868 = vmatpush1.bf16.msra.mxu0 %v863
      %869 = vmatprep.subr.bf16.mxu0 0
      %870 = vmatpush1.bf16.msra.mxu0 %v864
      %871 = vmatprep.subr.bf16.mxu0 0
      %872 = vmatpush1.bf16.msra.mxu0 0
      %873 = vmatprep.subr.bf16.mxu0 0
      %874 = vmatpush1.bf16.msra.mxu0 0
      %875 = vmatprep.subr.bf16.mxu0 0
      %876 = vmatpush1.bf16.msra.mxu0 0
      %877 = vmatprep.subr.bf16.mxu0 0
      %878 = vmatpush1.bf16.msra.mxu0 0
      %879 = vmatprep.subr.bf16.mxu0 0
      %880 = vmatpush1.bf16.msra.mxu0 0
      %881 = vmatprep.subr.bf16.mxu0 0
      %882 = vmatpush1.bf16.msra.mxu0 0
      %883 = vmatprep.subr.bf16.mxu0 0
      %884 = vmatpush1.bf16.msra.mxu0 0
      %885 = vmatprep.subr.bf16.mxu0 0
      %886 = vmatpush1.bf16.msra.mxu0 0
      %887 = vmatprep.subr.bf16.mxu0 0
      %888 = vmatpush1.bf16.msra.mxu0 0
      %889 = vmatprep.subr.bf16.mxu0 0
      %890 = vmatpush1.bf16.msra.mxu0 0
      %891 = vmatprep.subr.bf16.mxu0 0
      %892 = vmatpush1.bf16.msra.mxu0 0
      %893 = vmatprep.subr.bf16.mxu0 0
      %894 = vmatpush1.bf16.msra.mxu0 0
      %895 = vmatprep.subr.bf16.mxu0 0
      %896 = vmatpush1.bf16.msra.mxu0 0
      %897 = vmatprep.subr.bf16.mxu0 0
      %898 = vmatpush1.bf16.msra.mxu0 0
      %899 = vmatprep.mubr.bf16.mxu0 0
      %900 = vmatmul.mubr.bf16.gmra.mrb[0].mxu0 %v537
      %v901 = vpop.f32.mrb[0].mxu0
      %v902 = vadd.f32 0.0, %v901
      %v903 = vpop.f32.mrb[0].mxu0
      %v904 = vpop.f32.mrb[0].mxu0
      %v905 = vpop.f32.mrb[0].mxu0
      %906 = vdwg.mxu0
      %v911 = vunpack.c.l.b16 %v747
      %v912 = vunpack.c.l.b16 %v748
      %v913 = vunpack.c.l.b16 %v749
      %v914 = vunpack.c.l.b16 %v750
      %v915 = vpack.c.b16 %v912, %v911
      %v916 = vpack.c.b16 %v914, %v913
      %919 = vmatprep.subr.bf16.mxu0 0
      %920 = vmatpush1.bf16.msra.mxu0 %v915
      %921 = vmatprep.subr.bf16.mxu0 0
      %922 = vmatpush1.bf16.msra.mxu0 %v916
      %923 = vmatprep.subr.bf16.mxu0 0
      %924 = vmatpush1.bf16.msra.mxu0 0
      %925 = vmatprep.subr.bf16.mxu0 0
      %926 = vmatpush1.bf16.msra.mxu0 0
      %927 = vmatprep.subr.bf16.mxu0 0
      %928 = vmatpush1.bf16.msra.mxu0 0
      %929 = vmatprep.subr.bf16.mxu0 0
      %930 = vmatpush1.bf16.msra.mxu0 0
      %931 = vmatprep.subr.bf16.mxu0 0
      %932 = vmatpush1.bf16.msra.mxu0 0
      %933 = vmatprep.subr.bf16.mxu0 0
      %934 = vmatpush1.bf16.msra.mxu0 0
      %935 = vmatprep.subr.bf16.mxu0 0
      %936 = vmatpush1.bf16.msra.mxu0 0
      %937 = vmatprep.subr.bf16.mxu0 0
      %938 = vmatpush1.bf16.msra.mxu0 0
      %939 = vmatprep.subr.bf16.mxu0 0
      %940 = vmatpush1.bf16.msra.mxu0 0
      %941 = vmatprep.subr.bf16.mxu0 0
      %942 = vmatpush1.bf16.msra.mxu0 0
      %943 = vmatprep.subr.bf16.mxu0 0
      %944 = vmatpush1.bf16.msra.mxu0 0
      %945 = vmatprep.subr.bf16.mxu0 0
      %946 = vmatpush1.bf16.msra.mxu0 0
      %947 = vmatprep.subr.bf16.mxu0 0
      %948 = vmatpush1.bf16.msra.mxu0 0
      %949 = vmatprep.subr.bf16.mxu0 0
      %950 = vmatpush1.bf16.msra.mxu0 0
      %951 = vmatprep.mubr.bf16.mxu0 0
      %952 = vmatmul.mubr.bf16.gmra.mrb[0].mxu0 %v537
      %v953 = vpop.f32.mrb[0].mxu0
      %v954 = vadd.f32 0.0, %v953
      %v955 = vpop.f32.mrb[0].mxu0
      %v956 = vpop.f32.mrb[0].mxu0
      %v957 = vpop.f32.mrb[0].mxu0
      %958 = vdwg.mxu0
      %v959 = vld [vmem:[%s4] sm:$0xf]
      %v960 = vld [vmem:[%s4 + $0x4] sm:$0xf]
      %v961 = vld [vmem:[%s4 + $0x8] sm:$0xf]
      %v962 = vld [vmem:[%s4 + $0xc] sm:$0xf]
      %v963 = vld [vmem:[%s4 + $0x10] sm:$0xf]
      %v964 = vld [vmem:[%s4 + $0x14] sm:$0xf]
      %v965 = vld [vmem:[%s4 + $0x18] sm:$0xf]
      %v966 = vld [vmem:[%s4 + $0x1c] sm:$0xf]
      %v967 = vld [vmem:[%s4 + $0x20] sm:$0xf]
      %v968 = vld [vmem:[%s4 + $0x24] sm:$0xf]
      %v969 = vld [vmem:[%s4 + $0x28] sm:$0xf]
      %v970 = vld [vmem:[%s4 + $0x2c] sm:$0xf]
      %v971 = vld [vmem:[%s4 + $0x30] sm:$0xf]
      %v972 = vld [vmem:[%s4 + $0x34] sm:$0xf]
      %v973 = vld [vmem:[%s4 + $0x38] sm:$0xf]
      %v974 = vld [vmem:[%s4 + $0x3c] sm:$0xf]
      %v979 = vunpack.c.l.b16 %v959
      %v980 = vunpack.c.l.b16 %v960
      %v981 = vunpack.c.l.b16 %v961
      %v982 = vunpack.c.l.b16 %v962
      %v983 = vpack.c.b16 %v980, %v979
      %v984 = vpack.c.b16 %v982, %v981
      %987 = vmatprep.subr.bf16.mxu0 0
      %988 = vmatpush1.bf16.msra.mxu0 %v983
      %989 = vmatprep.subr.bf16.mxu0 0
      %990 = vmatpush1.bf16.msra.mxu0 %v984
      %991 = vmatprep.subr.bf16.mxu0 0
      %992 = vmatpush1.bf16.msra.mxu0 0
      %993 = vmatprep.subr.bf16.mxu0 0
      %994 = vmatpush1.bf16.msra.mxu0 0
      %995 = vmatprep.subr.bf16.mxu0 0
      %996 = vmatpush1.bf16.msra.mxu0 0
      %997 = vmatprep.subr.bf16.mxu0 0
      %998 = vmatpush1.bf16.msra.mxu0 0
      %999 = vmatprep.subr.bf16.mxu0 0
      %1000 = vmatpush1.bf16.msra.mxu0 0
      %1001 = vmatprep.subr.bf16.mxu0 0
      %1002 = vmatpush1.bf16.msra.mxu0 0
      %1003 = vmatprep.subr.bf16.mxu0 0
      %1004 = vmatpush1.bf16.msra.mxu0 0
      %1005 = vmatprep.subr.bf16.mxu0 0
      %1006 = vmatpush1.bf16.msra.mxu0 0
      %1007 = vmatprep.subr.bf16.mxu0 0
      %1008 = vmatpush1.bf16.msra.mxu0 0
      %1009 = vmatprep.subr.bf16.mxu0 0
      %1010 = vmatpush1.bf16.msra.mxu0 0
      %1011 = vmatprep.subr.bf16.mxu0 0
      %1012 = vmatpush1.bf16.msra.mxu0 0
      %1013 = vmatprep.subr.bf16.mxu0 0
      %1014 = vmatpush1.bf16.msra.mxu0 0
      %1015 = vmatprep.subr.bf16.mxu0 0
      %1016 = vmatpush1.bf16.msra.mxu0 0
      %1017 = vmatprep.subr.bf16.mxu0 0
      %1018 = vmatpush1.bf16.msra.mxu0 0
      %1019 = vmatprep.mubr.bf16.mxu0 0
      %1020 = vmatmul.mubr.bf16.gmra.mrb[0].mxu0 %v537
      %v1021 = vpop.f32.mrb[0].mxu0
      %v1022 = vadd.f32 0.0, %v1021
      %v1023 = vpop.f32.mrb[0].mxu0
      %v1024 = vpop.f32.mrb[0].mxu0
      %v1025 = vpop.f32.mrb[0].mxu0
      %1026 = vdwg.mxu0
      %v1031 = vunpack.c.l.b16 %v963
      %v1032 = vunpack.c.l.b16 %v964
      %v1033 = vunpack.c.l.b16 %v965
      %v1034 = vunpack.c.l.b16 %v966
      %v1035 = vpack.c.b16 %v1032, %v1031
      %v1036 = vpack.c.b16 %v1034, %v1033
      %1039 = vmatprep.subr.bf16.mxu0 0
      %1040 = vmatpush1.bf16.msra.mxu0 %v1035
      %1041 = vmatprep.subr.bf16.mxu0 0
      %1042 = vmatpush1.bf16.msra.mxu0 %v1036
      %1043 = vmatprep.subr.bf16.mxu0 0
      %1044 = vmatpush1.bf16.msra.mxu0 0
      %1045 = vmatprep.subr.bf16.mxu0 0
      %1046 = vmatpush1.bf16.msra.mxu0 0
      %1047 = vmatprep.subr.bf16.mxu0 0
      %1048 = vmatpush1.bf16.msra.mxu0 0
      %1049 = vmatprep.subr.bf16.mxu0 0
      %1050 = vmatpush1.bf16.msra.mxu0 0
      %1051 = vmatprep.subr.bf16.mxu0 0
      %1052 = vmatpush1.bf16.msra.mxu0 0
      %1053 = vmatprep.subr.bf16.mxu0 0
      %1054 = vmatpush1.bf16.msra.mxu0 0
      %1055 = vmatprep.subr.bf16.mxu0 0
      %1056 = vmatpush1.bf16.msra.mxu0 0
      %1057 = vmatprep.subr.bf16.mxu0 0
      %1058 = vmatpush1.bf16.msra.mxu0 0
      %1059 = vmatprep.subr.bf16.mxu0 0
      %1060 = vmatpush1.bf16.msra.mxu0 0
      %1061 = vmatprep.subr.bf16.mxu0 0
      %1062 = vmatpush1.bf16.msra.mxu0 0
      %1063 = vmatprep.subr.bf16.mxu0 0
      %1064 = vmatpush1.bf16.msra.mxu0 0
      %1065 = vmatprep.subr.bf16.mxu0 0
      %1066 = vmatpush1.bf16.msra.mxu0 0
      %1067 = vmatprep.subr.bf16.mxu0 0
      %1068 = vmatpush1.bf16.msra.mxu0 0
      %1069 = vmatprep.subr.bf16.mxu0 0
      %1070 = vmatpush1.bf16.msra.mxu0 0
      %1071 = vmatprep.mubr.bf16.mxu0 0
      %1072 = vmatmul.mubr.bf16.gmra.mrb[0].mxu0 %v537
      %v1073 = vpop.f32.mrb[0].mxu0
      %v1074 = vadd.f32 0.0, %v1073
      %v1075 = vpop.f32.mrb[0].mxu0
      %v1076 = vpop.f32.mrb[0].mxu0
      %v1077 = vpop.f32.mrb[0].mxu0
      %1078 = vdwg.mxu0
      %v1083 = vunpack.c.l.b16 %v967
      %v1084 = vunpack.c.l.b16 %v968
      %v1085 = vunpack.c.l.b16 %v969
      %v1086 = vunpack.c.l.b16 %v970
      %v1087 = vpack.c.b16 %v1084, %v1083
      %v1088 = vpack.c.b16 %v1086, %v1085
      %1091 = vmatprep.subr.bf16.mxu0 0
      %1092 = vmatpush1.bf16.msra.mxu0 %v1087
      %1093 = vmatprep.subr.bf16.mxu0 0
      %1094 = vmatpush1.bf16.msra.mxu0 %v1088
      %1095 = vmatprep.subr.bf16.mxu0 0
      %1096 = vmatpush1.bf16.msra.mxu0 0
      %1097 = vmatprep.subr.bf16.mxu0 0
      %1098 = vmatpush1.bf16.msra.mxu0 0
      %1099 = vmatprep.subr.bf16.mxu0 0
      %1100 = vmatpush1.bf16.msra.mxu0 0
      %1101 = vmatprep.subr.bf16.mxu0 0
      %1102 = vmatpush1.bf16.msra.mxu0 0
      %1103 = vmatprep.subr.bf16.mxu0 0
      %1104 = vmatpush1.bf16.msra.mxu0 0
      %1105 = vmatprep.subr.bf16.mxu0 0
      %1106 = vmatpush1.bf16.msra.mxu0 0
      %1107 = vmatprep.subr.bf16.mxu0 0
      %1108 = vmatpush1.bf16.msra.mxu0 0
      %1109 = vmatprep.subr.bf16.mxu0 0
      %1110 = vmatpush1.bf16.msra.mxu0 0
      %1111 = vmatprep.subr.bf16.mxu0 0
      %1112 = vmatpush1.bf16.msra.mxu0 0
      %1113 = vmatprep.subr.bf16.mxu0 0
      %1114 = vmatpush1.bf16.msra.mxu0 0
      %1115 = vmatprep.subr.bf16.mxu0 0
      %1116 = vmatpush1.bf16.msra.mxu0 0
      %1117 = vmatprep.subr.bf16.mxu0 0
      %1118 = vmatpush1.bf16.msra.mxu0 0
      %1119 = vmatprep.subr.bf16.mxu0 0
      %1120 = vmatpush1.bf16.msra.mxu0 0
      %1121 = vmatprep.subr.bf16.mxu0 0
      %1122 = vmatpush1.bf16.msra.mxu0 0
      %1123 = vmatprep.mubr.bf16.mxu0 0
      %1124 = vmatmul.mubr.bf16.gmra.mrb[0].mxu0 %v537
      %v1125 = vpop.f32.mrb[0].mxu0
      %v1126 = vadd.f32 0.0, %v1125
      %v1127 = vpop.f32.mrb[0].mxu0
      %v1128 = vpop.f32.mrb[0].mxu0
      %v1129 = vpop.f32.mrb[0].mxu0
      %1130 = vdwg.mxu0
      %v1135 = vunpack.c.l.b16 %v971
      %v1136 = vunpack.c.l.b16 %v972
      %v1137 = vunpack.c.l.b16 %v973
      %v1138 = vunpack.c.l.b16 %v974
      %v1139 = vpack.c.b16 %v1136, %v1135
      %v1140 = vpack.c.b16 %v1138, %v1137
      %1143 = vmatprep.subr.bf16.mxu0 0
      %1144 = vmatpush1.bf16.msra.mxu0 %v1139
      %1145 = vmatprep.subr.bf16.mxu0 0
      %1146 = vmatpush1.bf16.msra.mxu0 %v1140
      %1147 = vmatprep.subr.bf16.mxu0 0
      %1148 = vmatpush1.bf16.msra.mxu0 0
      %1149 = vmatprep.subr.bf16.mxu0 0
      %1150 = vmatpush1.bf16.msra.mxu0 0
      %1151 = vmatprep.subr.bf16.mxu0 0
      %1152 = vmatpush1.bf16.msra.mxu0 0
      %1153 = vmatprep.subr.bf16.mxu0 0
      %1154 = vmatpush1.bf16.msra.mxu0 0
      %1155 = vmatprep.subr.bf16.mxu0 0
      %1156 = vmatpush1.bf16.msra.mxu0 0
      %1157 = vmatprep.subr.bf16.mxu0 0
      %1158 = vmatpush1.bf16.msra.mxu0 0
      %1159 = vmatprep.subr.bf16.mxu0 0
      %1160 = vmatpush1.bf16.msra.mxu0 0
      %1161 = vmatprep.subr.bf16.mxu0 0
      %1162 = vmatpush1.bf16.msra.mxu0 0
      %1163 = vmatprep.subr.bf16.mxu0 0
      %1164 = vmatpush1.bf16.msra.mxu0 0
      %1165 = vmatprep.subr.bf16.mxu0 0
      %1166 = vmatpush1.bf16.msra.mxu0 0
      %1167 = vmatprep.subr.bf16.mxu0 0
      %1168 = vmatpush1.bf16.msra.mxu0 0
      %1169 = vmatprep.subr.bf16.mxu0 0
      %1170 = vmatpush1.bf16.msra.mxu0 0
      %1171 = vmatprep.subr.bf16.mxu0 0
      %1172 = vmatpush1.bf16.msra.mxu0 0
      %1173 = vmatprep.subr.bf16.mxu0 0
      %1174 = vmatpush1.bf16.msra.mxu0 0
      %1175 = vmatprep.mubr.bf16.mxu0 0
      %1176 = vmatmul.mubr.bf16.gmra.mrb[0].mxu0 %v537
      %v1177 = vpop.f32.mrb[0].mxu0
      %v1178 = vadd.f32 0.0, %v1177
      %v1179 = vpop.f32.mrb[0].mxu0
      %v1180 = vpop.f32.mrb[0].mxu0
      %v1181 = vpop.f32.mrb[0].mxu0
      %1182 = vdwg.mxu0
      %v1183 = vpack.c.bf16 %v574, %v574
      %v1184 = vpack.c.bf16 %v626, %v626
      %v1185 = vpack.c.bf16 %v678, %v678
      %v1186 = vpack.c.bf16 %v730, %v730
      %v1187 = vpack.c.bf16 %v798, %v798
      %v1188 = vpack.c.bf16 %v850, %v850
      %v1189 = vpack.c.bf16 %v902, %v902
      %v1190 = vpack.c.bf16 %v954, %v954
      %v1191 = vpack.c.bf16 %v1022, %v1022
      %v1192 = vpack.c.bf16 %v1074, %v1074
      %v1193 = vpack.c.bf16 %v1126, %v1126
      %v1194 = vpack.c.bf16 %v1178, %v1178
      %vm1195 = vcmask 64512
      %v1197 = vsel %vm1195, %v1183, 0
      %v1200 = vsel %vm1195, %v1187, 0
      %1202 = vmatprep.subr.bf16.mxu0 0
      %1203 = vmatpush1.bf16.xpose.msra.mxu0 %v1200
      %1204 = vmatprep.subr.bf16.mxu0 0
      %1205 = vmatpush1.bf16.xpose.msra.mxu0 0
      %1206 = vmatprep.subr.bf16.mxu0 0
      %1207 = vmatpush1.bf16.xpose.msra.mxu0 0
      %1208 = vmatprep.subr.bf16.mxu0 0
      %1209 = vmatpush1.bf16.xpose.msra.mxu0 0
      %1210 = vmatprep.subr.bf16.mxu0 0
      %1211 = vmatpush1.bf16.xpose.msra.mxu0 0
      %1212 = vmatprep.subr.bf16.mxu0 0
      %1213 = vmatpush1.bf16.xpose.msra.mxu0 0
      %1214 = vmatprep.subr.bf16.mxu0 0
      %1215 = vmatpush1.bf16.xpose.msra.mxu0 0
      %1216 = vmatprep.subr.bf16.mxu0 0
      %1217 = vmatpush1.bf16.xpose.msra.mxu0 0
      %1218 = vmatprep.subr.bf16.mxu0 0
      %1219 = vmatpush1.bf16.xpose.msra.mxu0 0
      %1220 = vmatprep.subr.bf16.mxu0 0
      %1221 = vmatpush1.bf16.xpose.msra.mxu0 0
      %1222 = vmatprep.subr.bf16.mxu0 0
      %1223 = vmatpush1.bf16.xpose.msra.mxu0 0
      %1224 = vmatprep.subr.bf16.mxu0 0
      %1225 = vmatpush1.bf16.xpose.msra.mxu0 0
      %1226 = vmatprep.subr.bf16.mxu0 0
      %1227 = vmatpush1.bf16.xpose.msra.mxu0 0
      %1228 = vmatprep.subr.bf16.mxu0 0
      %1229 = vmatpush1.bf16.xpose.msra.mxu0 0
      %1230 = vmatprep.subr.bf16.mxu0 0
      %1231 = vmatpush1.bf16.xpose.msra.mxu0 0
      %1232 = vmatprep.subr.bf16.mxu0 0
      %1233 = vmatpush1.bf16.xpose.msra.mxu0 0
      %1234 = vmatprep.mubr.bf16.mxu0 0
      %1235 = vmatmul.mubr.bf16.gmra.mrb[0].mxu0 %v1197
      %v1236 = vpop.f32.mrb[0].mxu0
      %v1237 = vadd.f32 0.0, %v1236
      %v1238 = vpop.f32.mrb[0].mxu0
      %v1239 = vpop.f32.mrb[0].mxu0
      %v1240 = vpop.f32.mrb[0].mxu0
      %1241 = vdwg.mxu0
      %v1243 = vsel %vm1195, %v1184, 0
      %v1246 = vsel %vm1195, %v1188, 0
      %1248 = vmatprep.subr.bf16.mxu0 0
      %1249 = vmatpush1.bf16.xpose.msra.mxu0 %v1246
      %1250 = vmatprep.subr.bf16.mxu0 0
      %1251 = vmatpush1.bf16.xpose.msra.mxu0 0
      %1252 = vmatprep.subr.bf16.mxu0 0
      %1253 = vmatpush1.bf16.xpose.msra.mxu0 0
      %1254 = vmatprep.subr.bf16.mxu0 0
      %1255 = vmatpush1.bf16.xpose.msra.mxu0 0
      %1256 = vmatprep.subr.bf16.mxu0 0
      %1257 = vmatpush1.bf16.xpose.msra.mxu0 0
      %1258 = vmatprep.subr.bf16.mxu0 0
      %1259 = vmatpush1.bf16.xpose.msra.mxu0 0
      %1260 = vmatprep.subr.bf16.mxu0 0
      %1261 = vmatpush1.bf16.xpose.msra.mxu0 0
      %1262 = vmatprep.subr.bf16.mxu0 0
      %1263 = vmatpush1.bf16.xpose.msra.mxu0 0
      %1264 = vmatprep.subr.bf16.mxu0 0
      %1265 = vmatpush1.bf16.xpose.msra.mxu0 0
      %1266 = vmatprep.subr.bf16.mxu0 0
      %1267 = vmatpush1.bf16.xpose.msra.mxu0 0
      %1268 = vmatprep.subr.bf16.mxu0 0
      %1269 = vmatpush1.bf16.xpose.msra.mxu0 0
      %1270 = vmatprep.subr.bf16.mxu0 0
      %1271 = vmatpush1.bf16.xpose.msra.mxu0 0
      %1272 = vmatprep.subr.bf16.mxu0 0
      %1273 = vmatpush1.bf16.xpose.msra.mxu0 0
      %1274 = vmatprep.subr.bf16.mxu0 0
      %1275 = vmatpush1.bf16.xpose.msra.mxu0 0
      %1276 = vmatprep.subr.bf16.mxu0 0
      %1277 = vmatpush1.bf16.xpose.msra.mxu0 0
      %1278 = vmatprep.subr.bf16.mxu0 0
      %1279 = vmatpush1.bf16.xpose.msra.mxu0 0
      %1280 = vmatprep.mubr.bf16.mxu0 0
      %1281 = vmatmul.mubr.bf16.gmra.mrb[0].mxu0 %v1243
      %v1282 = vpop.f32.mrb[0].mxu0
      %v1283 = vadd.f32 0.0, %v1282
      %v1284 = vpop.f32.mrb[0].mxu0
      %v1285 = vpop.f32.mrb[0].mxu0
      %v1286 = vpop.f32.mrb[0].mxu0
      %1287 = vdwg.mxu0
      %v1289 = vsel %vm1195, %v1185, 0
      %v1292 = vsel %vm1195, %v1189, 0
      %1294 = vmatprep.subr.bf16.mxu0 0
      %1295 = vmatpush1.bf16.xpose.msra.mxu0 %v1292
      %1296 = vmatprep.subr.bf16.mxu0 0
      %1297 = vmatpush1.bf16.xpose.msra.mxu0 0
      %1298 = vmatprep.subr.bf16.mxu0 0
      %1299 = vmatpush1.bf16.xpose.msra.mxu0 0
      %1300 = vmatprep.subr.bf16.mxu0 0
      %1301 = vmatpush1.bf16.xpose.msra.mxu0 0
      %1302 = vmatprep.subr.bf16.mxu0 0
      %1303 = vmatpush1.bf16.xpose.msra.mxu0 0
      %1304 = vmatprep.subr.bf16.mxu0 0
      %1305 = vmatpush1.bf16.xpose.msra.mxu0 0
      %1306 = vmatprep.subr.bf16.mxu0 0
      %1307 = vmatpush1.bf16.xpose.msra.mxu0 0
      %1308 = vmatprep.subr.bf16.mxu0 0
      %1309 = vmatpush1.bf16.xpose.msra.mxu0 0
      %1310 = vmatprep.subr.bf16.mxu0 0
      %1311 = vmatpush1.bf16.xpose.msra.mxu0 0
      %1312 = vmatprep.subr.bf16.mxu0 0
      %1313 = vmatpush1.bf16.xpose.msra.mxu0 0
      %1314 = vmatprep.subr.bf16.mxu0 0
      %1315 = vmatpush1.bf16.xpose.msra.mxu0 0
      %1316 = vmatprep.subr.bf16.mxu0 0
      %1317 = vmatpush1.bf16.xpose.msra.mxu0 0
      %1318 = vmatprep.subr.bf16.mxu0 0
      %1319 = vmatpush1.bf16.xpose.msra.mxu0 0
      %1320 = vmatprep.subr.bf16.mxu0 0
      %1321 = vmatpush1.bf16.xpose.msra.mxu0 0
      %1322 = vmatprep.subr.bf16.mxu0 0
      %1323 = vmatpush1.bf16.xpose.msra.mxu0 0
      %1324 = vmatprep.subr.bf16.mxu0 0
      %1325 = vmatpush1.bf16.xpose.msra.mxu0 0
      %1326 = vmatprep.mubr.bf16.mxu0 0
      %1327 = vmatmul.mubr.bf16.gmra.mrb[0].mxu0 %v1289
      %v1328 = vpop.f32.mrb[0].mxu0
      %v1329 = vadd.f32 0.0, %v1328
      %v1330 = vpop.f32.mrb[0].mxu0
      %v1331 = vpop.f32.mrb[0].mxu0
      %v1332 = vpop.f32.mrb[0].mxu0
      %1333 = vdwg.mxu0
      %v1335 = vsel %vm1195, %v1186, 0
      %v1338 = vsel %vm1195, %v1190, 0
      %1340 = vmatprep.subr.bf16.mxu0 0
      %1341 = vmatpush1.bf16.xpose.msra.mxu0 %v1338
      %1342 = vmatprep.subr.bf16.mxu0 0
      %1343 = vmatpush1.bf16.xpose.msra.mxu0 0
      %1344 = vmatprep.subr.bf16.mxu0 0
      %1345 = vmatpush1.bf16.xpose.msra.mxu0 0
      %1346 = vmatprep.subr.bf16.mxu0 0
      %1347 = vmatpush1.bf16.xpose.msra.mxu0 0
      %1348 = vmatprep.subr.bf16.mxu0 0
      %1349 = vmatpush1.bf16.xpose.msra.mxu0 0
      %1350 = vmatprep.subr.bf16.mxu0 0
      %1351 = vmatpush1.bf16.xpose.msra.mxu0 0
      %1352 = vmatprep.subr.bf16.mxu0 0
      %1353 = vmatpush1.bf16.xpose.msra.mxu0 0
      %1354 = vmatprep.subr.bf16.mxu0 0
      %1355 = vmatpush1.bf16.xpose.msra.mxu0 0
      %1356 = vmatprep.subr.bf16.mxu0 0
      %1357 = vmatpush1.bf16.xpose.msra.mxu0 0
      %1358 = vmatprep.subr.bf16.mxu0 0
      %1359 = vmatpush1.bf16.xpose.msra.mxu0 0
      %1360 = vmatprep.subr.bf16.mxu0 0
      %1361 = vmatpush1.bf16.xpose.msra.mxu0 0
      %1362 = vmatprep.subr.bf16.mxu0 0
      %1363 = vmatpush1.bf16.xpose.msra.mxu0 0
      %1364 = vmatprep.subr.bf16.mxu0 0
      %1365 = vmatpush1.bf16.xpose.msra.mxu0 0
      %1366 = vmatprep.subr.bf16.mxu0 0
      %1367 = vmatpush1.bf16.xpose.msra.mxu0 0
      %1368 = vmatprep.subr.bf16.mxu0 0
      %1369 = vmatpush1.bf16.xpose.msra.mxu0 0
      %1370 = vmatprep.subr.bf16.mxu0 0
      %1371 = vmatpush1.bf16.xpose.msra.mxu0 0
      %1372 = vmatprep.mubr.bf16.mxu0 0
      %1373 = vmatmul.mubr.bf16.gmra.mrb[0].mxu0 %v1335
      %v1374 = vpop.f32.mrb[0].mxu0
      %v1375 = vadd.f32 0.0, %v1374
      %v1376 = vpop.f32.mrb[0].mxu0
      %v1377 = vpop.f32.mrb[0].mxu0
      %v1378 = vpop.f32.mrb[0].mxu0
      %1379 = vdwg.mxu0
      %v1380 = vld [vmem:[%s499] sm:$0x1]
      %vm1381 = vcmp.eq.f32.partialorder %v1380, 0.0
      %v1382 = vsel %vm1381, 1, 0
      %v1383 = vlaneseq
      %v1384 = vshrl.u32 %v1383, 7
      %v1385 = vsub.s32 0, %v1384
      %v1386 = vrot.slane %v1382, %v1385
      %vm1387 = vcmp.eq.s32.totalorder %v1386, 1
      %v1388 = vsel %vm1387, -1e+30, %v1237
      %v1389 = vsel %vm1387, -1e+30, %v1283
      %v1390 = vsel %vm1387, -1e+30, %v1329
      %v1391 = vsel %vm1387, -1e+30, %v1375
      %v1392 = vsel %vm1195, %v1388, -inf
      %1393 = vmax.xlane.f32.xlu0 %v1392
      %v1394 = vpop.xlane.xlu0 %1393
      %v1395 = vsel %vm1195, %v1389, -inf
      %1396 = vmax.xlane.f32.xlu0 %v1395
      %v1397 = vpop.xlane.xlu0 %1396
      %v1398 = vsel %vm1195, %v1390, -inf
      %1399 = vmax.xlane.f32.xlu0 %v1398
      %v1400 = vpop.xlane.xlu0 %1399
      %v1401 = vsel %vm1195, %v1391, -inf
      %1402 = vmax.xlane.f32.xlu0 %v1401
      %v1403 = vpop.xlane.xlu0 %1402
      %v1404 = vsub.f32 %v1388, %v1394
      %v1405 = vsub.f32 %v1389, %v1397
      %v1406 = vsub.f32 %v1390, %v1400
      %v1407 = vsub.f32 %v1391, %v1403
      %v1408 = vmul.f32 %v1404, 1.442695
      %v1409 = vpow.pop %v1408
      %v1410 = vmul.f32 %v1405, 1.442695
      %v1411 = vpow.pop %v1410
      %v1412 = vmul.f32 %v1406, 1.442695
      %v1413 = vpow.pop %v1412
      %v1414 = vmul.f32 %v1407, 1.442695
      %v1415 = vpow.pop %v1414
      %v1416 = vsel %vm1195, %v1409, 0.0
      %1417 = vadd.xlane.f32.xlu0 %v1416
      %v1418 = vpop.xlane.xlu0 %1417
      %v1419 = vsel %vm1195, %v1411, 0.0
      %1420 = vadd.xlane.f32.xlu0 %v1419
      %v1421 = vpop.xlane.xlu0 %1420
      %v1422 = vsel %vm1195, %v1413, 0.0
      %1423 = vadd.xlane.f32.xlu0 %v1422
      %v1424 = vpop.xlane.xlu0 %1423
      %v1425 = vsel %vm1195, %v1415, 0.0
      %1426 = vadd.xlane.f32.xlu0 %v1425
      %v1427 = vpop.xlane.xlu0 %1426
      %v1428 = vrcp.pop %v1418
      %v1429 = vrcp.pop %v1421
      %v1430 = vrcp.pop %v1424
      %v1431 = vrcp.pop %v1427
      %v1432 = vmul.f32 %v1409, %v1428
      %v1433 = vmul.f32 %v1411, %v1429
      %v1434 = vmul.f32 %v1413, %v1430
      %v1435 = vmul.f32 %v1415, %v1431
      %v1436 = vpack.c.bf16 %v1432, %v1432
      %v1437 = vpack.c.bf16 %v1433, %v1433
      %v1438 = vpack.c.bf16 %v1434, %v1434
      %v1439 = vpack.c.bf16 %v1435, %v1435
      %v1441 = vsel %vm1195, %v1436, 0
      %vm1443 = vcmask 1043456
      %v1445 = vsel %vm1443, %v1191, 0
      %1447 = vmatprep.subr.bf16.mxu0 0
      %1448 = vmatpush1.bf16.msra.mxu0 %v1445
      %1449 = vmatprep.subr.bf16.mxu0 0
      %1450 = vmatpush1.bf16.msra.mxu0 0
      %1451 = vmatprep.subr.bf16.mxu0 0
      %1452 = vmatpush1.bf16.msra.mxu0 0
      %1453 = vmatprep.subr.bf16.mxu0 0
      %1454 = vmatpush1.bf16.msra.mxu0 0
      %1455 = vmatprep.subr.bf16.mxu0 0
      %1456 = vmatpush1.bf16.msra.mxu0 0
      %1457 = vmatprep.subr.bf16.mxu0 0
      %1458 = vmatpush1.bf16.msra.mxu0 0
      %1459 = vmatprep.subr.bf16.mxu0 0
      %1460 = vmatpush1.bf16.msra.mxu0 0
      %1461 = vmatprep.subr.bf16.mxu0 0
      %1462 = vmatpush1.bf16.msra.mxu0 0
      %1463 = vmatprep.subr.bf16.mxu0 0
      %1464 = vmatpush1.bf16.msra.mxu0 0
      %1465 = vmatprep.subr.bf16.mxu0 0
      %1466 = vmatpush1.bf16.msra.mxu0 0
      %1467 = vmatprep.subr.bf16.mxu0 0
      %1468 = vmatpush1.bf16.msra.mxu0 0
      %1469 = vmatprep.subr.bf16.mxu0 0
      %1470 = vmatpush1.bf16.msra.mxu0 0
      %1471 = vmatprep.subr.bf16.mxu0 0
      %1472 = vmatpush1.bf16.msra.mxu0 0
      %1473 = vmatprep.subr.bf16.mxu0 0
      %1474 = vmatpush1.bf16.msra.mxu0 0
      %1475 = vmatprep.subr.bf16.mxu0 0
      %1476 = vmatpush1.bf16.msra.mxu0 0
      %1477 = vmatprep.subr.bf16.mxu0 0
      %1478 = vmatpush1.bf16.msra.mxu0 0
      %1479 = vmatprep.mubr.bf16.mxu0 0
      %1480 = vmatmul.mubr.bf16.gmra.mrb[0].mxu0 %v1441
      %v1481 = vpop.f32.mrb[0].mxu0
      %v1482 = vadd.f32 0.0, %v1481
      %v1483 = vpop.f32.mrb[0].mxu0
      %v1484 = vpop.f32.mrb[0].mxu0
      %v1485 = vpop.f32.mrb[0].mxu0
      %1486 = vdwg.mxu0
      %v1488 = vsel %vm1195, %v1437, 0
      %v1491 = vsel %vm1443, %v1192, 0
      %1493 = vmatprep.subr.bf16.mxu0 0
      %1494 = vmatpush1.bf16.msra.mxu0 %v1491
      %1495 = vmatprep.subr.bf16.mxu0 0
      %1496 = vmatpush1.bf16.msra.mxu0 0
      %1497 = vmatprep.subr.bf16.mxu0 0
      %1498 = vmatpush1.bf16.msra.mxu0 0
      %1499 = vmatprep.subr.bf16.mxu0 0
      %1500 = vmatpush1.bf16.msra.mxu0 0
      %1501 = vmatprep.subr.bf16.mxu0 0
      %1502 = vmatpush1.bf16.msra.mxu0 0
      %1503 = vmatprep.subr.bf16.mxu0 0
      %1504 = vmatpush1.bf16.msra.mxu0 0
      %1505 = vmatprep.subr.bf16.mxu0 0
      %1506 = vmatpush1.bf16.msra.mxu0 0
      %1507 = vmatprep.subr.bf16.mxu0 0
      %1508 = vmatpush1.bf16.msra.mxu0 0
      %1509 = vmatprep.subr.bf16.mxu0 0
      %1510 = vmatpush1.bf16.msra.mxu0 0
      %1511 = vmatprep.subr.bf16.mxu0 0
      %1512 = vmatpush1.bf16.msra.mxu0 0
      %1513 = vmatprep.subr.bf16.mxu0 0
      %1514 = vmatpush1.bf16.msra.mxu0 0
      %1515 = vmatprep.subr.bf16.mxu0 0
      %1516 = vmatpush1.bf16.msra.mxu0 0
      %1517 = vmatprep.subr.bf16.mxu0 0
      %1518 = vmatpush1.bf16.msra.mxu0 0
      %1519 = vmatprep.subr.bf16.mxu0 0
      %1520 = vmatpush1.bf16.msra.mxu0 0
      %1521 = vmatprep.subr.bf16.mxu0 0
      %1522 = vmatpush1.bf16.msra.mxu0 0
      %1523 = vmatprep.subr.bf16.mxu0 0
      %1524 = vmatpush1.bf16.msra.mxu0 0
      %1525 = vmatprep.mubr.bf16.mxu0 0
      %1526 = vmatmul.mubr.bf16.gmra.mrb[0].mxu0 %v1488
      %v1527 = vpop.f32.mrb[0].mxu0
      %v1528 = vadd.f32 0.0, %v1527
      %v1529 = vpop.f32.mrb[0].mxu0
      %v1530 = vpop.f32.mrb[0].mxu0
      %v1531 = vpop.f32.mrb[0].mxu0
      %1532 = vdwg.mxu0
      %v1534 = vsel %vm1195, %v1438, 0
      %v1537 = vsel %vm1443, %v1193, 0
      %1539 = vmatprep.subr.bf16.mxu0 0
      %1540 = vmatpush1.bf16.msra.mxu0 %v1537
      %1541 = vmatprep.subr.bf16.mxu0 0
      %1542 = vmatpush1.bf16.msra.mxu0 0
      %1543 = vmatprep.subr.bf16.mxu0 0
      %1544 = vmatpush1.bf16.msra.mxu0 0
      %1545 = vmatprep.subr.bf16.mxu0 0
      %1546 = vmatpush1.bf16.msra.mxu0 0
      %1547 = vmatprep.subr.bf16.mxu0 0
      %1548 = vmatpush1.bf16.msra.mxu0 0
      %1549 = vmatprep.subr.bf16.mxu0 0
      %1550 = vmatpush1.bf16.msra.mxu0 0
      %1551 = vmatprep.subr.bf16.mxu0 0
      %1552 = vmatpush1.bf16.msra.mxu0 0
      %1553 = vmatprep.subr.bf16.mxu0 0
      %1554 = vmatpush1.bf16.msra.mxu0 0
      %1555 = vmatprep.subr.bf16.mxu0 0
      %1556 = vmatpush1.bf16.msra.mxu0 0
      %1557 = vmatprep.subr.bf16.mxu0 0
      %1558 = vmatpush1.bf16.msra.mxu0 0
      %1559 = vmatprep.subr.bf16.mxu0 0
      %1560 = vmatpush1.bf16.msra.mxu0 0
      %1561 = vmatprep.subr.bf16.mxu0 0
      %1562 = vmatpush1.bf16.msra.mxu0 0
      %1563 = vmatprep.subr.bf16.mxu0 0
      %1564 = vmatpush1.bf16.msra.mxu0 0
      %1565 = vmatprep.subr.bf16.mxu0 0
      %1566 = vmatpush1.bf16.msra.mxu0 0
      %1567 = vmatprep.subr.bf16.mxu0 0
      %1568 = vmatpush1.bf16.msra.mxu0 0
      %1569 = vmatprep.subr.bf16.mxu0 0
      %1570 = vmatpush1.bf16.msra.mxu0 0
      %1571 = vmatprep.mubr.bf16.mxu0 0
      %1572 = vmatmul.mubr.bf16.gmra.mrb[0].mxu0 %v1534
      %v1573 = vpop.f32.mrb[0].mxu0
      %v1574 = vadd.f32 0.0, %v1573
      %v1575 = vpop.f32.mrb[0].mxu0
      %v1576 = vpop.f32.mrb[0].mxu0
      %v1577 = vpop.f32.mrb[0].mxu0
      %1578 = vdwg.mxu0
      %v1580 = vsel %vm1195, %v1439, 0
      %v1583 = vsel %vm1443, %v1194, 0
      %1585 = vmatprep.subr.bf16.mxu0 0
      %1586 = vmatpush1.bf16.msra.mxu0 %v1583
      %1587 = vmatprep.subr.bf16.mxu0 0
      %1588 = vmatpush1.bf16.msra.mxu0 0
      %1589 = vmatprep.subr.bf16.mxu0 0
      %1590 = vmatpush1.bf16.msra.mxu0 0
      %1591 = vmatprep.subr.bf16.mxu0 0
      %1592 = vmatpush1.bf16.msra.mxu0 0
      %1593 = vmatprep.subr.bf16.mxu0 0
      %1594 = vmatpush1.bf16.msra.mxu0 0
      %1595 = vmatprep.subr.bf16.mxu0 0
      %1596 = vmatpush1.bf16.msra.mxu0 0
      %1597 = vmatprep.subr.bf16.mxu0 0
      %1598 = vmatpush1.bf16.msra.mxu0 0
      %1599 = vmatprep.subr.bf16.mxu0 0
      %1600 = vmatpush1.bf16.msra.mxu0 0
      %1601 = vmatprep.subr.bf16.mxu0 0
      %1602 = vmatpush1.bf16.msra.mxu0 0
      %1603 = vmatprep.subr.bf16.mxu0 0
      %1604 = vmatpush1.bf16.msra.mxu0 0
      %1605 = vmatprep.subr.bf16.mxu0 0
      %1606 = vmatpush1.bf16.msra.mxu0 0
      %1607 = vmatprep.subr.bf16.mxu0 0
      %1608 = vmatpush1.bf16.msra.mxu0 0
      %1609 = vmatprep.subr.bf16.mxu0 0
      %1610 = vmatpush1.bf16.msra.mxu0 0
      %1611 = vmatprep.subr.bf16.mxu0 0
      %1612 = vmatpush1.bf16.msra.mxu0 0
      %1613 = vmatprep.subr.bf16.mxu0 0
      %1614 = vmatpush1.bf16.msra.mxu0 0
      %1615 = vmatprep.subr.bf16.mxu0 0
      %1616 = vmatpush1.bf16.msra.mxu0 0
      %1617 = vmatprep.mubr.bf16.mxu0 0
      %1618 = vmatmul.mubr.bf16.gmra.mrb[0].mxu0 %v1580
      %v1619 = vpop.f32.mrb[0].mxu0
      %v1620 = vadd.f32 0.0, %v1619
      %v1621 = vpop.f32.mrb[0].mxu0
      %v1622 = vpop.f32.mrb[0].mxu0
      %v1623 = vpop.f32.mrb[0].mxu0
      %1624 = vdwg.mxu0
      %v1625 = vpack.c.bf16 %v1482, %v1482
      %v1626 = vpack.c.bf16 %v1528, %v1528
      %v1627 = vpack.c.bf16 %v1574, %v1574
      %v1628 = vpack.c.bf16 %v1620, %v1620
      %v1629 = vld [vmem:[%s5] sm:$0xf]
      %v1630 = vld [vmem:[%s5 + $0x4] sm:$0xf]
      %v1631 = vld [vmem:[%s5 + $0x8] sm:$0xf]
      %v1632 = vld [vmem:[%s5 + $0xc] sm:$0xf]
      %v1634 = vsel %vm1195, %v1625, 0
      %v1637 = vsel %vm1443, %v1629, 0
      %1639 = vmatprep.subr.bf16.mxu0 0
      %1640 = vmatpush1.bf16.msra.mxu0 %v1637
      %1641 = vmatprep.subr.bf16.mxu0 0
      %1642 = vmatpush1.bf16.msra.mxu0 0
      %1643 = vmatprep.subr.bf16.mxu0 0
      %1644 = vmatpush1.bf16.msra.mxu0 0
      %1645 = vmatprep.subr.bf16.mxu0 0
      %1646 = vmatpush1.bf16.msra.mxu0 0
      %1647 = vmatprep.subr.bf16.mxu0 0
      %1648 = vmatpush1.bf16.msra.mxu0 0
      %1649 = vmatprep.subr.bf16.mxu0 0
      %1650 = vmatpush1.bf16.msra.mxu0 0
      %1651 = vmatprep.subr.bf16.mxu0 0
      %1652 = vmatpush1.bf16.msra.mxu0 0
      %1653 = vmatprep.subr.bf16.mxu0 0
      %1654 = vmatpush1.bf16.msra.mxu0 0
      %1655 = vmatprep.subr.bf16.mxu0 0
      %1656 = vmatpush1.bf16.msra.mxu0 0
      %1657 = vmatprep.subr.bf16.mxu0 0
      %1658 = vmatpush1.bf16.msra.mxu0 0
      %1659 = vmatprep.subr.bf16.mxu0 0
      %1660 = vmatpush1.bf16.msra.mxu0 0
      %1661 = vmatprep.subr.bf16.mxu0 0
      %1662 = vmatpush1.bf16.msra.mxu0 0
      %1663 = vmatprep.subr.bf16.mxu0 0
      %1664 = vmatpush1.bf16.msra.mxu0 0
      %1665 = vmatprep.subr.bf16.mxu0 0
      %1666 = vmatpush1.bf16.msra.mxu0 0
      %1667 = vmatprep.subr.bf16.mxu0 0
      %1668 = vmatpush1.bf16.msra.mxu0 0
      %1669 = vmatprep.subr.bf16.mxu0 0
      %1670 = vmatpush1.bf16.msra.mxu0 0
      %1671 = vmatprep.mubr.bf16.mxu0 0
      %1672 = vmatmul.mubr.bf16.gmra.mrb[0].mxu0 %v1634
      %v1673 = vpop.f32.mrb[0].mxu0
      %v1674 = vadd.f32 0.0, %v1673
      %v1675 = vpop.f32.mrb[0].mxu0
      %v1676 = vpop.f32.mrb[0].mxu0
      %v1677 = vpop.f32.mrb[0].mxu0
      %1678 = vdwg.mxu0
      %v1680 = vsel %vm1195, %v1626, 0
      %v1683 = vsel %vm1443, %v1630, 0
      %1685 = vmatprep.subr.bf16.mxu0 0
      %1686 = vmatpush1.bf16.msra.mxu0 %v1683
      %1687 = vmatprep.subr.bf16.mxu0 0
      %1688 = vmatpush1.bf16.msra.mxu0 0
      %1689 = vmatprep.subr.bf16.mxu0 0
      %1690 = vmatpush1.bf16.msra.mxu0 0
      %1691 = vmatprep.subr.bf16.mxu0 0
      %1692 = vmatpush1.bf16.msra.mxu0 0
      %1693 = vmatprep.subr.bf16.mxu0 0
      %1694 = vmatpush1.bf16.msra.mxu0 0
      %1695 = vmatprep.subr.bf16.mxu0 0
      %1696 = vmatpush1.bf16.msra.mxu0 0
      %1697 = vmatprep.subr.bf16.mxu0 0
      %1698 = vmatpush1.bf16.msra.mxu0 0
      %1699 = vmatprep.subr.bf16.mxu0 0
      %1700 = vmatpush1.bf16.msra.mxu0 0
      %1701 = vmatprep.subr.bf16.mxu0 0
      %1702 = vmatpush1.bf16.msra.mxu0 0
      %1703 = vmatprep.subr.bf16.mxu0 0
      %1704 = vmatpush1.bf16.msra.mxu0 0
      %1705 = vmatprep.subr.bf16.mxu0 0
      %1706 = vmatpush1.bf16.msra.mxu0 0
      %1707 = vmatprep.subr.bf16.mxu0 0
      %1708 = vmatpush1.bf16.msra.mxu0 0
      %1709 = vmatprep.subr.bf16.mxu0 0
      %1710 = vmatpush1.bf16.msra.mxu0 0
      %1711 = vmatprep.subr.bf16.mxu0 0
      %1712 = vmatpush1.bf16.msra.mxu0 0
      %1713 = vmatprep.subr.bf16.mxu0 0
      %1714 = vmatpush1.bf16.msra.mxu0 0
      %1715 = vmatprep.subr.bf16.mxu0 0
      %1716 = vmatpush1.bf16.msra.mxu0 0
      %1717 = vmatprep.mubr.bf16.mxu0 0
      %1718 = vmatmul.mubr.bf16.gmra.mrb[0].mxu0 %v1680
      %v1719 = vpop.f32.mrb[0].mxu0
      %v1720 = vadd.f32 0.0, %v1719
      %v1721 = vpop.f32.mrb[0].mxu0
      %v1722 = vpop.f32.mrb[0].mxu0
      %v1723 = vpop.f32.mrb[0].mxu0
      %1724 = vdwg.mxu0
      %v1726 = vsel %vm1195, %v1627, 0
      %v1729 = vsel %vm1443, %v1631, 0
      %1731 = vmatprep.subr.bf16.mxu0 0
      %1732 = vmatpush1.bf16.msra.mxu0 %v1729
      %1733 = vmatprep.subr.bf16.mxu0 0
      %1734 = vmatpush1.bf16.msra.mxu0 0
      %1735 = vmatprep.subr.bf16.mxu0 0
      %1736 = vmatpush1.bf16.msra.mxu0 0
      %1737 = vmatprep.subr.bf16.mxu0 0
      %1738 = vmatpush1.bf16.msra.mxu0 0
      %1739 = vmatprep.subr.bf16.mxu0 0
      %1740 = vmatpush1.bf16.msra.mxu0 0
      %1741 = vmatprep.subr.bf16.mxu0 0
      %1742 = vmatpush1.bf16.msra.mxu0 0
      %1743 = vmatprep.subr.bf16.mxu0 0
      %1744 = vmatpush1.bf16.msra.mxu0 0
      %1745 = vmatprep.subr.bf16.mxu0 0
      %1746 = vmatpush1.bf16.msra.mxu0 0
      %1747 = vmatprep.subr.bf16.mxu0 0
      %1748 = vmatpush1.bf16.msra.mxu0 0
      %1749 = vmatprep.subr.bf16.mxu0 0
      %1750 = vmatpush1.bf16.msra.mxu0 0
      %1751 = vmatprep.subr.bf16.mxu0 0
      %1752 = vmatpush1.bf16.msra.mxu0 0
      %1753 = vmatprep.subr.bf16.mxu0 0
      %1754 = vmatpush1.bf16.msra.mxu0 0
      %1755 = vmatprep.subr.bf16.mxu0 0
      %1756 = vmatpush1.bf16.msra.mxu0 0
      %1757 = vmatprep.subr.bf16.mxu0 0
      %1758 = vmatpush1.bf16.msra.mxu0 0
      %1759 = vmatprep.subr.bf16.mxu0 0
      %1760 = vmatpush1.bf16.msra.mxu0 0
      %1761 = vmatprep.subr.bf16.mxu0 0
      %1762 = vmatpush1.bf16.msra.mxu0 0
      %1763 = vmatprep.mubr.bf16.mxu0 0
      %1764 = vmatmul.mubr.bf16.gmra.mrb[0].mxu0 %v1726
      %v1765 = vpop.f32.mrb[0].mxu0
      %v1766 = vadd.f32 0.0, %v1765
      %v1767 = vpop.f32.mrb[0].mxu0
      %v1768 = vpop.f32.mrb[0].mxu0
      %v1769 = vpop.f32.mrb[0].mxu0
      %1770 = vdwg.mxu0
      %v1772 = vsel %vm1195, %v1628, 0
      %v1775 = vsel %vm1443, %v1632, 0
      %1777 = vmatprep.subr.bf16.mxu0 0
      %1778 = vmatpush1.bf16.msra.mxu0 %v1775
      %1779 = vmatprep.subr.bf16.mxu0 0
      %1780 = vmatpush1.bf16.msra.mxu0 0
      %1781 = vmatprep.subr.bf16.mxu0 0
      %1782 = vmatpush1.bf16.msra.mxu0 0
      %1783 = vmatprep.subr.bf16.mxu0 0
      %1784 = vmatpush1.bf16.msra.mxu0 0
      %1785 = vmatprep.subr.bf16.mxu0 0
      %1786 = vmatpush1.bf16.msra.mxu0 0
      %1787 = vmatprep.subr.bf16.mxu0 0
      %1788 = vmatpush1.bf16.msra.mxu0 0
      %1789 = vmatprep.subr.bf16.mxu0 0
      %1790 = vmatpush1.bf16.msra.mxu0 0
      %1791 = vmatprep.subr.bf16.mxu0 0
      %1792 = vmatpush1.bf16.msra.mxu0 0
      %1793 = vmatprep.subr.bf16.mxu0 0
      %1794 = vmatpush1.bf16.msra.mxu0 0
      %1795 = vmatprep.subr.bf16.mxu0 0
      %1796 = vmatpush1.bf16.msra.mxu0 0
      %1797 = vmatprep.subr.bf16.mxu0 0
      %1798 = vmatpush1.bf16.msra.mxu0 0
      %1799 = vmatprep.subr.bf16.mxu0 0
      %1800 = vmatpush1.bf16.msra.mxu0 0
      %1801 = vmatprep.subr.bf16.mxu0 0
      %1802 = vmatpush1.bf16.msra.mxu0 0
      %1803 = vmatprep.subr.bf16.mxu0 0
      %1804 = vmatpush1.bf16.msra.mxu0 0
      %1805 = vmatprep.subr.bf16.mxu0 0
      %1806 = vmatpush1.bf16.msra.mxu0 0
      %1807 = vmatprep.subr.bf16.mxu0 0
      %1808 = vmatpush1.bf16.msra.mxu0 0
      %1809 = vmatprep.mubr.bf16.mxu0 0
      %1810 = vmatmul.mubr.bf16.gmra.mrb[0].mxu0 %v1772
      %v1811 = vpop.f32.mrb[0].mxu0
      %v1812 = vadd.f32 0.0, %v1811
      %v1813 = vpop.f32.mrb[0].mxu0
      %v1814 = vpop.f32.mrb[0].mxu0
      %v1815 = vpop.f32.mrb[0].mxu0
      %1816 = vdwg.mxu0
      %v1817 = vsel %vm535, %v1674, 0.0
      %v1818 = vsel %vm535, %v1720, 0.0
      %v1819 = vadd.f32 %v1817, %v1818
      %v1820 = vsel %vm535, %v1766, 0.0
      %v1821 = vadd.f32 %v1819, %v1820
      %v1822 = vsel %vm535, %v1812, 0.0
      %v1823 = vadd.f32 %v1821, %v1822
      %v1824 = vld [vmem:[%s6] sm:$0x1]
      %v1826 = vlaneseq
      %v1827 = vshrl.u32 %v1826, 7
      %v1828 = vsub.s32 0, %v1827
      %v1829 = vrot.slane %v1824, %v1828
      %v1831 = vadd.f32 %v1823, %v1829
      %v1832 = vadd.f32 %v1831, %v506
      %v1833 = vld [vmem:[%s7] sm:$0x1]
      %v1834 = vld [vmem:[%s8] sm:$0x1]
      %v1835 = vsel %vm535, %v1832, 0.0
      %1836 = vadd.xlane.f32.xlu0 %v1835
      %v1837 = vpop.xlane.xlu0 %1836
      %v1838 = vrcp.pop 32.0
      %v1839 = vmul.f32 %v1837, %v1838
      %v1840 = vsub.f32 %v1832, %v1839
      %v1841 = vmul.f32 %v1840, %v1840
      %v1842 = vsel %vm535, %v1841, 0.0
      %1843 = vadd.xlane.f32.xlu0 %v1842
      %v1844 = vpop.xlane.xlu0 %1843
      %v1845 = vmul.f32 %v1844, %v1838
      %v1846 = vadd.f32 %v1845, 1e-12
      %v1847 = vrsqrt.pop %v1846
      %v1848 = vmul.f32 %v1840, %v1847
      %v1850 = vlaneseq
      %v1851 = vshrl.u32 %v1850, 7
      %v1852 = vsub.s32 0, %v1851
      %v1853 = vrot.slane %v1833, %v1852
      %v1855 = vmul.f32 %v1848, %v1853
      %v1857 = vlaneseq
      %v1858 = vshrl.u32 %v1857, 7
      %v1859 = vsub.s32 0, %v1858
      %v1860 = vrot.slane %v1834, %v1859
      %v1862 = vadd.f32 %v1855, %v1860
      %v1863 = vpack.c.bf16 %v1862, %v1862
      %v1864 = vld [vmem:[%s9] sm:$0xf]
      %v1865 = vld [vmem:[%s9 + $0x4] sm:$0xf]
      %v1866 = vld [vmem:[%s9 + $0x8] sm:$0xf]
      %v1867 = vld [vmem:[%s9 + $0xc] sm:$0xf]
      %v1868 = vld [vmem:[%s10] sm:$0x1]
      %v1870 = vlaneseq
      %v1871 = vshrl.u32 %v1870, 7
      %v1872 = vsub.s32 0, %v1871
      %v1873 = vrot.slane %v1868, %v1872
      %v1879 = vunpack.c.l.b16 %v1864
      %v1880 = vunpack.c.l.b16 %v1865
      %v1881 = vunpack.c.l.b16 %v1866
      %v1882 = vunpack.c.l.b16 %v1867
      %v1883 = vpack.c.b16 %v1880, %v1879
      %v1884 = vpack.c.b16 %v1882, %v1881
      %v1888 = vsel %vm535, %v1863, 0
      %1890 = vmatprep.subr.bf16.mxu0 0
      %1891 = vmatpush1.bf16.msra.mxu0 %v1883
      %1892 = vmatprep.subr.bf16.mxu0 0
      %1893 = vmatpush1.bf16.msra.mxu0 %v1884
      %1894 = vmatprep.subr.bf16.mxu0 0
      %1895 = vmatpush1.bf16.msra.mxu0 0
      %1896 = vmatprep.subr.bf16.mxu0 0
      %1897 = vmatpush1.bf16.msra.mxu0 0
      %1898 = vmatprep.subr.bf16.mxu0 0
      %1899 = vmatpush1.bf16.msra.mxu0 0
      %1900 = vmatprep.subr.bf16.mxu0 0
      %1901 = vmatpush1.bf16.msra.mxu0 0
      %1902 = vmatprep.subr.bf16.mxu0 0
      %1903 = vmatpush1.bf16.msra.mxu0 0
      %1904 = vmatprep.subr.bf16.mxu0 0
      %1905 = vmatpush1.bf16.msra.mxu0 0
      %1906 = vmatprep.subr.bf16.mxu0 0
      %1907 = vmatpush1.bf16.msra.mxu0 0
      %1908 = vmatprep.subr.bf16.mxu0 0
      %1909 = vmatpush1.bf16.msra.mxu0 0
      %1910 = vmatprep.subr.bf16.mxu0 0
      %1911 = vmatpush1.bf16.msra.mxu0 0
      %1912 = vmatprep.subr.bf16.mxu0 0
      %1913 = vmatpush1.bf16.msra.mxu0 0
      %1914 = vmatprep.subr.bf16.mxu0 0
      %1915 = vmatpush1.bf16.msra.mxu0 0
      %1916 = vmatprep.subr.bf16.mxu0 0
      %1917 = vmatpush1.bf16.msra.mxu0 0
      %1918 = vmatprep.subr.bf16.mxu0 0
      %1919 = vmatpush1.bf16.msra.mxu0 0
      %1920 = vmatprep.subr.bf16.mxu0 0
      %1921 = vmatpush1.bf16.msra.mxu0 0
      %1922 = vmatprep.mubr.bf16.mxu0 0
      %1923 = vmatmul.mubr.bf16.gmra.mrb[0].mxu0 %v1888
      %v1924 = vpop.f32.mrb[0].mxu0
      %v1925 = vadd.f32 %v1873, %v1924
      %v1926 = vpop.f32.mrb[0].mxu0
      %v1927 = vpop.f32.mrb[0].mxu0
      %v1928 = vpop.f32.mrb[0].mxu0
      %1929 = vdwg.mxu0
      %v1930 = vmul.f32 %v1925, 0.5
      %v1931 = vmul.f32 %v1925, 0.044715
      %v1932 = vmul.f32 %v1931, %v1925
      %v1933 = vmul.f32 %v1932, %v1925
      %v1934 = vadd.f32 %v1925, %v1933
      %v1935 = vmul.f32 %v1934, 0.7978846
      %v1936 = vtanh.pop %v1935
      %v1937 = vadd.f32 %v1936, 1.0
      %v1938 = vmul.f32 %v1930, %v1937
      %v1939 = vpack.c.bf16 %v1938, %v1938
      %v1940 = vld [vmem:[%s11] sm:$0xf]
      %v1941 = vld [vmem:[%s11 + $0x4] sm:$0xf]
      %v1942 = vld [vmem:[%s11 + $0x8] sm:$0xf]
      %v1943 = vld [vmem:[%s11 + $0xc] sm:$0xf]
      %v1944 = vld [vmem:[%s11 + $0x10] sm:$0xf]
      %v1945 = vld [vmem:[%s11 + $0x14] sm:$0xf]
      %v1946 = vld [vmem:[%s11 + $0x18] sm:$0xf]
      %v1947 = vld [vmem:[%s11 + $0x1c] sm:$0xf]
      %v1948 = vld [vmem:[%s12] sm:$0x1]
      %v1950 = vlaneseq
      %v1951 = vshrl.u32 %v1950, 7
      %v1952 = vsub.s32 0, %v1951
      %v1953 = vrot.slane %v1948, %v1952
      %v1963 = vunpack.c.l.b16 %v1940
      %v1964 = vunpack.c.l.b16 %v1941
      %v1965 = vunpack.c.l.b16 %v1942
      %v1966 = vunpack.c.l.b16 %v1943
      %v1967 = vunpack.c.l.b16 %v1944
      %v1968 = vunpack.c.l.b16 %v1945
      %v1969 = vunpack.c.l.b16 %v1946
      %v1970 = vunpack.c.l.b16 %v1947
      %v1971 = vpack.c.b16 %v1964, %v1963
      %v1972 = vpack.c.b16 %v1966, %v1965
      %v1973 = vpack.c.b16 %v1968, %v1967
      %v1974 = vpack.c.b16 %v1970, %v1969
      %vm1979 = vcmask 523264
      %v1981 = vsel %vm1979, %v1939, 0
      %1983 = vmatprep.subr.bf16.mxu0 0
      %1984 = vmatpush1.bf16.msra.mxu0 %v1971
      %1985 = vmatprep.subr.bf16.mxu0 0
      %1986 = vmatpush1.bf16.msra.mxu0 %v1972
      %1987 = vmatprep.subr.bf16.mxu0 0
      %1988 = vmatpush1.bf16.msra.mxu0 %v1973
      %1989 = vmatprep.subr.bf16.mxu0 0
      %1990 = vmatpush1.bf16.msra.mxu0 %v1974
      %1991 = vmatprep.subr.bf16.mxu0 0
      %1992 = vmatpush1.bf16.msra.mxu0 0
      %1993 = vmatprep.subr.bf16.mxu0 0
      %1994 = vmatpush1.bf16.msra.mxu0 0
      %1995 = vmatprep.subr.bf16.mxu0 0
      %1996 = vmatpush1.bf16.msra.mxu0 0
      %1997 = vmatprep.subr.bf16.mxu0 0
      %1998 = vmatpush1.bf16.msra.mxu0 0
      %1999 = vmatprep.subr.bf16.mxu0 0
      %2000 = vmatpush1.bf16.msra.mxu0 0
      %2001 = vmatprep.subr.bf16.mxu0 0
      %2002 = vmatpush1.bf16.msra.mxu0 0
      %2003 = vmatprep.subr.bf16.mxu0 0
      %2004 = vmatpush1.bf16.msra.mxu0 0
      %2005 = vmatprep.subr.bf16.mxu0 0
      %2006 = vmatpush1.bf16.msra.mxu0 0
      %2007 = vmatprep.subr.bf16.mxu0 0
      %2008 = vmatpush1.bf16.msra.mxu0 0
      %2009 = vmatprep.subr.bf16.mxu0 0
      %2010 = vmatpush1.bf16.msra.mxu0 0
      %2011 = vmatprep.subr.bf16.mxu0 0
      %2012 = vmatpush1.bf16.msra.mxu0 0
      %2013 = vmatprep.subr.bf16.mxu0 0
      %2014 = vmatpush1.bf16.msra.mxu0 0
      %2015 = vmatprep.mubr.bf16.mxu0 0
      %2016 = vmatmul.mubr.bf16.gmra.mrb[0].mxu0 %v1981
      %v2017 = vpop.f32.mrb[0].mxu0
      %v2018 = vadd.f32 %v1953, %v2017
      %v2019 = vpop.f32.mrb[0].mxu0
      %v2020 = vpop.f32.mrb[0].mxu0
      %v2021 = vpop.f32.mrb[0].mxu0
      %2022 = vdwg.mxu0
      %v2023 = vadd.f32 %v1862, %v2018
      %v2024 = vld [vmem:[%s13] sm:$0x1]
      %v2025 = vld [vmem:[%s14] sm:$0x1]
      %v2026 = vsel %vm535, %v2023, 0.0
      %2027 = vadd.xlane.f32.xlu0 %v2026
      %v2028 = vpop.xlane.xlu0 %2027
      %v2029 = vmul.f32 %v2028, %v1838
      %v2030 = vsub.f32 %v2023, %v2029
      %v2031 = vmul.f32 %v2030, %v2030
      %v2032 = vsel %vm535, %v2031, 0.0
      %2033 = vadd.xlane.f32.xlu0 %v2032
      %v2034 = vpop.xlane.xlu0 %2033
      %v2035 = vmul.f32 %v2034, %v1838
      %v2036 = vadd.f32 %v2035, 1e-12
      %v2037 = vrsqrt.pop %v2036
      %v2038 = vmul.f32 %v2030, %v2037
      %v2040 = vlaneseq
      %v2041 = vshrl.u32 %v2040, 7
      %v2042 = vsub.s32 0, %v2041
      %v2043 = vrot.slane %v2024, %v2042
      %v2045 = vmul.f32 %v2038, %v2043
      %v2047 = vlaneseq
      %v2048 = vshrl.u32 %v2047, 7
      %v2049 = vsub.s32 0, %v2048
      %v2050 = vrot.slane %v2025, %v2049
      %v2052 = vadd.f32 %v2045, %v2050
      %v2053 = vpack.c.bf16 %v2052, %v2052
      %vm2054 = vcmask 257024
      %2055 = vst.msk [vmem:[%s503] sm:$0xf] %vm2054, %v2053
      %p2056 = scmp.lt.s32.totalorder %s26, 1
      %s2057 = scalar_select %p2056, %s26, 1
      %s2058 = smul.addr %s2057, 4
      %s2059 = scalar_lea.vmem %s15, %s2058
      // Predicated region
      $region81: #{transformer_layers_pallas.2} parent=79 // pred_check
        %p2060 = pneg %p369
      $region82: #{transformer_layers_pallas.2} parent=79 // pred_check_branch
        %2062 = sbr.rel (%p2060) target = $region84
      $region83: #{transformer_layers_pallas.2} parent=79 // pred_region
        _
      $region84: #{transformer_layers_pallas.2} parent=79 // pred_fallthru
        _
    $region80: #{transformer_layers_pallas.2} parent=5 // pred_fallthru
      _
    %p2063 = scmp.le.s32.totalorder 2, %s21
    // Predicated region
    $region85: #{transformer_layers_pallas.2} parent=5 // pred_check
      %p2064 = pneg %p2063
    $region86: #{transformer_layers_pallas.2} parent=5 // pred_check_branch
      %2066 = sbr.rel (%p2064) target = $region88
    $region87: #{transformer_layers_pallas.2} parent=5 // pred_region
      %s2067 = ssub.s32 %s21, 2
      // Predicated region
      $region89: #{transformer_layers_pallas.2} parent=87 // pred_check
        %p2068 = pneg %p375
      $region90: #{transformer_layers_pallas.2} parent=87 // pred_check_branch
        %2070 = sbr.rel (%p2068) target = $region92
      $region91: #{transformer_layers_pallas.2} parent=87 // pred_region
        %p2071 = scmp.lt.s32.totalorder %s27, 1
        %s2072 = scalar_select %p2071, %s27, 1
        %s2073 = smul.addr %s2072, 4
        %s2074 = scalar_lea.vmem %s15, %s2073
      $region92: #{transformer_layers_pallas.2} parent=87 // pred_fallthru
        _
    $region88: #{transformer_layers_pallas.2} parent=5 // pred_fallthru
      _
  $region6: #{transformer_layers_pallas.2} parent=0 // loop_footer
    %s25 = sadd.s32 1, %s21
  $region7: #{transformer_layers_pallas.2} parent=0 // loop_footer_branch
    %20 = sbr.rel target = $region3
  $region8: #{transformer_layers_pallas.2} parent=0 // loop_exit
    _

</llo_original>
